<compile_context>
chip_gen: v7x
topology: tpu7x:2x2x1
jax: 0.10.0
libtpu: 0.0.40
codegen_flags: <defaults>
</compile_context>

<pallas_src>
import functools

import jax
import jax.numpy as jnp
from jax.experimental import pallas as pl
from jax.experimental.pallas import tpu as pltpu

# ----- small configuration consistent with ParallelSelector defaults (scaled down) -----
WORD_EMBED = 32
FEAT_EMBED = 16
ENC_HIDDEN = 32            # enc_hidden == dec_hidden (reference: 300 == 300)
DEC_HIDDEN = 32
GRU_HIDDEN = ENC_HIDDEN // 2
INPUT_SIZE = WORD_EMBED + 4 * FEAT_EMBED
N_MIXTURE = 5
V_WORD, V_AP, V_NER, V_POS, V_CASE = 50, 4, 8, 8, 4
LEAKY_SLOPE = 0.01         # torch nn.LeakyReLU default
TCN_KERNEL = 3


def _sigmoid(x):
    return 1.0 / (1.0 + jnp.exp(-x))


# =============================== Pallas kernels ===============================

def _encoder_kernel(x_ref, len_ref, wih_ref, bih_ref,
                    whhf_ref, bhhf_ref, whhb_ref, bhhb_ref,
                    c0a_w_ref, c0a_b_ref, c0b_w_ref, c0b_b_ref,
                    c1a_w_ref, c1a_b_ref, c1b_w_ref, c1b_b_ref,
                    down_w_ref, down_b_ref, dec_w_ref, dec_b_ref,
                    enc_ref, s_ref, gf_ref, gb_ref, *, L, B, G, dil0, dil1):
    """Fused: BiGRU (fwd+bwd input projection in one [Din,6G] matmul, masked recurrence with
    w_hh resident in VMEM) + both TemporalBlocks (causal convs as shifted accumulated matmuls,
    no im2col) + dec_init (Linear + LeakyReLU).  Data layout: time-major flat rows (t*B + b)."""
    # ---- one fused input projection for both GRU directions ----
    xp = jnp.dot(x_ref[...], wih_ref[...],
                 preferred_element_type=jnp.float32) + bih_ref[...]        # [L*B, 6G]
    lengths = len_ref[...]                                                 # [B, 1] int32
    whh_f, bhh_f = whhf_ref[...], bhhf_ref[...]
    whh_b, bhh_b = whhb_ref[...], bhhb_ref[...]

    def cell(gx, h, whh, bhh):
        gh = jnp.dot(h, whh, preferred_element_type=jnp.float32) + bhh
        r = _sigmoid(gx[:, 0:G] + gh[:, 0:G])
        z = _sigmoid(gx[:, G:2 * G] + gh[:, G:2 * G])
        n = jnp.tanh(gx[:, 2 * G:3 * G] + r * gh[:, 2 * G:3 * G])
        return (1.0 - z) * n + z * h

    hf = jnp.zeros((B, G), jnp.float32)
    hb = jnp.zeros((B, G), jnp.float32)
    for t in range(L):                      # static unroll, all indices compile-time constants
        tb = L - 1 - t
        vf = lengths > t                                                   # [B, 1] bool
        hf = jnp.where(vf, cell(xp[t * B:(t + 1) * B, 0:3 * G], hf, whh_f, bhh_f), hf)
        gf_ref[t * B:(t + 1) * B, :] = jnp.where(vf, hf, 0.0)
        vb = lengths > tb
        hb = jnp.where(vb, cell(xp[tb * B:(tb + 1) * B, 3 * G:6 * G], hb, whh_b, bhh_b), hb)
        gb_ref[tb * B:(tb + 1) * B, :] = jnp.where(vb, hb, 0.0)

    gru_out = jnp.concatenate([gf_ref[...], gb_ref[...]], axis=-1)         # [L*B, 2G] == [L*B, H]

    # ---- dilated causal conv (k shifted matmuls accumulated in VMEM; no im2col) ----
    def causal_conv_relu(x, wt_ref, b_ref, dil):
        k = wt_ref.shape[0]
        cout = wt_ref.shape[2]
        y = jnp.dot(x, wt_ref[0], preferred_element_type=jnp.float32) + b_ref[...]
        for m in range(1, k):
            sh = m * dil
            if sh >= L:
                continue
            contrib = jnp.dot(x[0:(L - sh) * B, :], wt_ref[m],
                              preferred_element_type=jnp.float32)
            y = y + jnp.concatenate(
                [jnp.zeros((sh * B, cout), jnp.float32), contrib], axis=0)
        return jnp.maximum(y, 0.0)

    # TemporalBlock 0: dilation 1, H -> H, identity residual
    y = causal_conv_relu(gru_out, c0a_w_ref, c0a_b_ref, dil0)
    y = causal_conv_relu(y, c0b_w_ref, c0b_b_ref, dil0)
    x1 = jnp.maximum(y + gru_out, 0.0)

    # TemporalBlock 1: dilation 2, H -> 2H, 1x1 downsample residual
    y = causal_conv_relu(x1, c1a_w_ref, c1a_b_ref, dil1)
    y = causal_conv_relu(y, c1b_w_ref, c1b_b_ref, dil1)
    res = jnp.dot(x1, down_w_ref[...], preferred_element_type=jnp.float32) + down_b_ref[...]
    enc_ref[...] = jnp.maximum(y + res, 0.0)                               # [L*B, 2H]

    # ---- dec_init: Linear + LeakyReLU on the final bidirectional hidden state ----
    h_cat = jnp.concatenate([hf, hb], axis=-1)                             # [B, 2G] == [B, H]
    s_lin = jnp.dot(h_cat, dec_w_ref[...], preferred_element_type=jnp.float32) + dec_b_ref[...]
    s_ref[...] = jnp.where(s_lin >= 0.0, s_lin, LEAKY_SLOPE * s_lin)


def _decoder_kernel(enc_ref, s_ref, mix_ref, bias_ref,
                    wh_ref, ws_ref, bs_ref, v_ref,
                    wcat_ref, bcat_ref, ucat_ref, ccat_ref,
                    ctx_ref, logit_ref):
    """Fused ParallelDecoder: batched Bahdanau attention (all B at once) + both out_mlps
    fused into one [4H, 2Hd] / [2Hd, 2] head.  concat_h is never materialized — the per-batch
    vectors (s, context, mixture embedding) contribute via partial matmuls on row-slices of
    the fused weight and are broadcast over the source length in VMEM."""
    B, L, H = enc_ref.shape
    Hd = wh_ref.shape[1]
    enc3 = enc_ref[...]                                                    # [B, L, H]
    enc2 = enc3.reshape(B * L, H)
    s = s_ref[...]                                                         # [B, Hd]
    mix = mix_ref[...]                                                     # [B, H]

    # ---- Bahdanau attention ----
    qproj = jnp.dot(mix, ws_ref[...], preferred_element_type=jnp.float32) + bs_ref[...]   # [B, Hd]
    eproj = jnp.dot(enc2, wh_ref[...], preferred_element_type=jnp.float32).reshape(B, L, Hd)
    e = jnp.tanh(eproj + qproj[:, None, :])                                # [B, L, Hd]
    scores = jnp.sum(e * v_ref[...], axis=-1, keepdims=True) + bias_ref[...]   # [B, L, 1]
    m = jnp.max(scores, axis=1, keepdims=True)
    p = jnp.exp(scores - m)
    attn = p / jnp.sum(p, axis=1, keepdims=True)                           # softmax over L
    context = jnp.sum(attn * enc3, axis=1)                                 # [B, H]
    ctx_ref[...] = context

    # ---- fused out_mlp1 / out_mlp2 ----
    w_enc = wcat_ref[0:H, :]
    w_s = wcat_ref[H:H + Hd, :]
    w_ctx = wcat_ref[H + Hd:2 * H + Hd, :]
    w_mix = wcat_ref[2 * H + Hd:3 * H + Hd, :]
    per_b = (jnp.dot(s, w_s, preferred_element_type=jnp.float32)
             + jnp.dot(context, w_ctx, preferred_element_type=jnp.float32)
             + jnp.dot(mix, w_mix, preferred_element_type=jnp.float32)
             + bcat_ref[...])                                              # [B, 2Hd]
    h12 = jnp.tanh(
        jnp.dot(enc2, w_enc, preferred_element_type=jnp.float32).reshape(B, L, 2 * Hd)
        + per_b[:, None, :])                                               # [B, L, 2Hd]
    logit_ref[...] = (jnp.dot(h12.reshape(B * L, 2 * Hd), ucat_ref[...],
                              preferred_element_type=jnp.float32) + ccat_ref[...])   # [B*L, 2]


# ============================ JAX glue (non-hot-path) ===========================

def _conv_taps(w):
    """torch Conv1d weight [Cout, Cin, k] -> stacked taps [k, Cin, Cout];
    tap m multiplies x[t - m*dilation]  (causal conv with Chomp1d => tap m uses torch index k-1-m)."""
    k = w.shape[-1]
    return jnp.stack([w[:, :, k - 1 - m].T for m in range(k)], axis=0)


# ============================ ParallelSelector forward ===========================

def parallel_selector_forward(params, source_WORD_encoding, answer_position_BIO_encoding,
                              ner_encoding, pos_encoding, case_encoding, mixture_id,
                              train=True):
    B, L = source_WORD_encoding.shape
    H, Hd, G = ENC_HIDDEN, DEC_HIDDEN, GRU_HIDDEN
    pad_mask = source_WORD_encoding == 0
    lengths = jnp.sum(~pad_mask, axis=1).astype(jnp.int32)

    # ---- embedding lookups (gathers stay in XLA) ----
    enc_input = jnp.concatenate([
        params["word_embed"][source_WORD_encoding],
        params["ap_embed"][answer_position_BIO_encoding],
        params["ner_embed"][ner_encoding],
        params["pos_embed"][pos_encoding],
        params["case_embed"][case_encoding],
    ], axis=-1)                                                            # [B, L, INPUT_SIZE]
    # time-major flat layout: row = t*B + b (causal time shifts become contiguous row shifts)
    x_flat = enc_input.transpose(1, 0, 2).reshape(L * B, INPUT_SIZE).astype(jnp.float32)

    # ---- weight plumbing (tiny, layout only) ----
    g = params["gru"]
    wih = jnp.concatenate([g["fwd"]["w_ih"], g["bwd"]["w_ih"]], axis=1)    # [Din, 6G]
    bih = jnp.concatenate([g["fwd"]["b_ih"], g["bwd"]["b_ih"]])[None, :]   # [1, 6G]
    t0, t1 = params["tcn0"], params["tcn1"]

    vmem = pl.BlockSpec(memory_space=pltpu.MemorySpace.VMEM)

    # ---- Kernel 1: GRUEncoder (BiGRU + TCN + dec_init) ----
    enc_full, s = pl.pallas_call(
        functools.partial(_encoder_kernel, L=L, B=B, G=G, dil0=1, dil1=2),
        out_shape=(jax.ShapeDtypeStruct((L * B, 2 * H), jnp.float32),
                   jax.ShapeDtypeStruct((B, Hd), jnp.float32)),
        in_specs=[vmem] * 20,
        out_specs=(vmem, vmem),
        scratch_shapes=[pltpu.VMEM((L * B, G), jnp.float32),
                        pltpu.VMEM((L * B, G), jnp.float32)],
    )(x_flat, lengths[:, None], wih, bih,
      g["fwd"]["w_hh"], g["fwd"]["b_hh"][None, :],
      g["bwd"]["w_hh"], g["bwd"]["b_hh"][None, :],
      _conv_taps(t0["conv1_w"]), t0["conv1_b"][None, :],
      _conv_taps(t0["conv2_w"]), t0["conv2_b"][None, :],
      _conv_taps(t1["conv1_w"]), t1["conv1_b"][None, :],
      _conv_taps(t1["conv2_w"]), t1["conv2_b"][None, :],
      t1["down_w"][:, :, 0].T, t1["down_b"][None, :],
      params["dec_init_w"], params["dec_init_b"][None, :])

    # MaxPool1d(2): input viewed as (N, C, W) = (B, L, 2H) -> pools adjacent feature pairs.
    enc_outputs = jnp.max(enc_full.reshape(L, B, H, 2), axis=-1).transpose(1, 0, 2)   # [B, L, H]

    # ---- Kernel 2: ParallelDecoder (attention + fused two-head MLP) ----
    mix_emb = params["mixture_embed"][mixture_id].astype(jnp.float32)      # [B, H]
    mask_bias = jnp.where(pad_mask, -1e30, 0.0).astype(jnp.float32)[:, :, None]       # [B, L, 1]
    ap, mlp = params["attn"], params["mlp"]
    wcat = jnp.concatenate([mlp["w1"], mlp["w2"]], axis=1)                 # [4H, 2Hd]
    bcat = jnp.concatenate([mlp["b1"], mlp["b2"]])[None, :]                # [1, 2Hd]
    ucat = jnp.concatenate(
        [jnp.concatenate([mlp["u1"], jnp.zeros_like(mlp["u1"])], axis=1),
         jnp.concatenate([jnp.zeros_like(mlp["u2"]), mlp["u2"]], axis=1)],
        axis=0)                                                            # [2Hd, 2] block-diag
    ccat = jnp.concatenate([mlp["c1"], mlp["c2"]])[None, :]                # [1, 2]

    pos_context, logits = pl.pallas_call(
        _decoder_kernel,
        out_shape=(jax.ShapeDtypeStruct((B, H), jnp.float32),
                   jax.ShapeDtypeStruct((B * L, 2), jnp.float32)),
        in_specs=[vmem] * 12,
        out_specs=(vmem, vmem),
    )(enc_outputs, s, mix_emb, mask_bias,
      ap["wh"], ap["ws"], ap["bs"][None, :], ap["v"].reshape(1, 1, Hd),
      wcat, bcat, ucat, ccat)

    focus_logit = logits[:, 0].reshape(B, L)
    focus_segment_logit = logits[:, 1].reshape(B, L)
    if train:
        return pos_context, focus_logit, focus_segment_logit
    return pos_context, jax.nn.sigmoid(focus_logit), jax.nn.sigmoid(focus_segment_logit)


# =================================== setup ===================================

def init_params(key):
    ks = iter(jax.random.split(key, 64))

    def nrm(shape, scale=0.1):
        return (scale * jax.random.normal(next(ks), shape)).astype(jnp.float32)

    H, Hd, G = ENC_HIDDEN, DEC_HIDDEN, GRU_HIDDEN

    def gru_dir():
        return dict(w_ih=nrm((INPUT_SIZE, 3 * G)), w_hh=nrm((G, 3 * G)),
                    b_ih=nrm((3 * G,)), b_hh=nrm((3 * G,)))

    return dict(
        word_embed=nrm((V_WORD, WORD_EMBED)),
        ap_embed=nrm((V_AP, FEAT_EMBED)),
        ner_embed=nrm((V_NER, FEAT_EMBED)),
        pos_embed=nrm((V_POS, FEAT_EMBED)),
        case_embed=nrm((V_CASE, FEAT_EMBED)),
        gru=dict(fwd=gru_dir(), bwd=gru_dir()),
        tcn0=dict(conv1_w=nrm((H, H, 3)), conv1_b=nrm((H,)),
                  conv2_w=nrm((H, H, 3)), conv2_b=nrm((H,))),
        tcn1=dict(conv1_w=nrm((2 * H, H, 3)), conv1_b=nrm((2 * H,)),
                  conv2_w=nrm((2 * H, 2 * H, 3)), conv2_b=nrm((2 * H,)),
                  down_w=nrm((2 * H, H, 1)), down_b=nrm((2 * H,))),
        dec_init_w=nrm((H, Hd)), dec_init_b=nrm((Hd,)),
        mixture_embed=nrm((400, H)),
        attn=dict(wh=nrm((H, Hd)), ws=nrm((H, Hd)), bs=nrm((Hd,)), v=nrm((Hd, 1))),
        mlp=dict(w1=nrm((4 * H, Hd)), b1=nrm((Hd,)), u1=nrm((Hd, 1)), c1=nrm((1,)),
                 w2=nrm((4 * H, Hd)), b2=nrm((Hd,)), u2=nrm((Hd, 1)), c2=nrm((1,))),
    )


if __name__ == "__main__":
    params = init_params(jax.random.PRNGKey(0))
    B, L = 2, 8
    dk = jax.random.split(jax.random.PRNGKey(0), 8)
    source = jax.random.randint(dk[1], (B, L), 1, V_WORD)
    source = source.at[1, 6:].set(0)                    # sequence 1 has length 6 (PAD_ID=0)
    ans_bio = jax.random.randint(dk[2], (B, L), 0, V_AP)
    ner = jax.random.randint(dk[3], (B, L), 0, V_NER)
    pos = jax.random.randint(dk[4], (B, L), 0, V_POS)
    case = jax.random.randint(dk[5], (B, L), 0, V_CASE)
    mixture_id = jax.random.randint(dk[6], (B,), 0, N_MIXTURE)

    fwd = jax.jit(functools.partial(parallel_selector_forward, train=True))
    pos_context, focus_logit, focus_segment_logit = fwd(
        params, source, ans_bio, ner, pos, case, mixture_id)
    jax.block_until_ready((pos_context, focus_logit, focus_segment_logit))

    assert pos_context.shape == (B, ENC_HIDDEN)
    assert focus_logit.shape == (B, L) and focus_segment_logit.shape == (B, L)
    assert bool(jnp.all(jnp.isfinite(pos_context)))
    assert bool(jnp.all(jnp.isfinite(focus_logit)))
    assert bool(jnp.all(jnp.isfinite(focus_segment_logit)))
    print("KERNEL_OK")
</pallas_src>

<mosaic_0001>
module attributes {stable_mosaic.version = 11 : i64} {
  func.func @_encoder_kernel(%arg0: memref<16x96xf32, #tpu.memory_space<vmem>>, %arg1: memref<2x1xi32, #tpu.memory_space<vmem>>, %arg2: memref<96x96xf32, #tpu.memory_space<vmem>>, %arg3: memref<1x96xf32, #tpu.memory_space<vmem>>, %arg4: memref<16x48xf32, #tpu.memory_space<vmem>>, %arg5: memref<1x48xf32, #tpu.memory_space<vmem>>, %arg6: memref<16x48xf32, #tpu.memory_space<vmem>>, %arg7: memref<1x48xf32, #tpu.memory_space<vmem>>, %arg8: memref<3x32x32xf32, #tpu.memory_space<vmem>>, %arg9: memref<1x32xf32, #tpu.memory_space<vmem>>, %arg10: memref<3x32x32xf32, #tpu.memory_space<vmem>>, %arg11: memref<1x32xf32, #tpu.memory_space<vmem>>, %arg12: memref<3x32x64xf32, #tpu.memory_space<vmem>>, %arg13: memref<1x64xf32, #tpu.memory_space<vmem>>, %arg14: memref<3x64x64xf32, #tpu.memory_space<vmem>>, %arg15: memref<1x64xf32, #tpu.memory_space<vmem>>, %arg16: memref<32x64xf32, #tpu.memory_space<vmem>>, %arg17: memref<1x64xf32, #tpu.memory_space<vmem>>, %arg18: memref<32x32xf32, #tpu.memory_space<vmem>>, %arg19: memref<1x32xf32, #tpu.memory_space<vmem>>, %arg20: memref<16x64xf32, #tpu.memory_space<vmem>>, %arg21: memref<2x32xf32, #tpu.memory_space<vmem>>, %arg22: memref<16x16xf32, #tpu.memory_space<vmem>>, %arg23: memref<16x16xf32, #tpu.memory_space<vmem>>) attributes {dimension_semantics = [], scalar_prefetch = 0 : i64, scratch_operands = 2 : i64, tpu.core_type = #tpu.core_type<tc>} {
    %c0 = arith.constant 0 : index
    %c0_0 = arith.constant 0 : index
    %0 = vector.load %arg0[%c0, %c0_0] : memref<16x96xf32, #tpu.memory_space<vmem>>, vector<16x96xf32>
    %c0_1 = arith.constant 0 : index
    %c0_2 = arith.constant 0 : index
    %1 = vector.load %arg2[%c0_1, %c0_2] : memref<96x96xf32, #tpu.memory_space<vmem>>, vector<96x96xf32>
    %cst = arith.constant dense<0.000000e+00> : vector<16x96xf32>
    %2 = tpu.matmul %0, %1, %cst {dimension_numbers = #tpu.dot_dimension_numbers<[1], [0], [0], [1], [0, 0, 1, 1], [], []>} : vector<16x96xf32>, vector<96x96xf32>, vector<16x96xf32> -> vector<16x96xf32>
    %c0_3 = arith.constant 0 : index
    %c0_4 = arith.constant 0 : index
    %3 = vector.load %arg3[%c0_3, %c0_4] : memref<1x96xf32, #tpu.memory_space<vmem>>, vector<1x96xf32>
    %4 = vector.broadcast %3 : vector<1x96xf32> to vector<16x96xf32>
    %5 = arith.addf %2, %4 : vector<16x96xf32>
    %c0_5 = arith.constant 0 : index
    %c0_6 = arith.constant 0 : index
    %6 = vector.load %arg1[%c0_5, %c0_6] : memref<2x1xi32, #tpu.memory_space<vmem>>, vector<2x1xi32>
    %c0_7 = arith.constant 0 : index
    %c0_8 = arith.constant 0 : index
    %7 = vector.load %arg4[%c0_7, %c0_8] : memref<16x48xf32, #tpu.memory_space<vmem>>, vector<16x48xf32>
    %c0_9 = arith.constant 0 : index
    %c0_10 = arith.constant 0 : index
    %8 = vector.load %arg5[%c0_9, %c0_10] : memref<1x48xf32, #tpu.memory_space<vmem>>, vector<1x48xf32>
    %c0_11 = arith.constant 0 : index
    %c0_12 = arith.constant 0 : index
    %9 = vector.load %arg6[%c0_11, %c0_12] : memref<16x48xf32, #tpu.memory_space<vmem>>, vector<16x48xf32>
    %c0_13 = arith.constant 0 : index
    %c0_14 = arith.constant 0 : index
    %10 = vector.load %arg7[%c0_13, %c0_14] : memref<1x48xf32, #tpu.memory_space<vmem>>, vector<1x48xf32>
    %cst_15 = arith.constant 0.000000e+00 : f32
    %11 = vector.broadcast %cst_15 : f32 to vector<2x16xf32>
    %cst_16 = arith.constant 0.000000e+00 : f32
    %12 = vector.broadcast %cst_16 : f32 to vector<2x16xf32>
    %c0_i32 = arith.constant 0 : i32
    %13 = vector.broadcast %c0_i32 : i32 to vector<2x1xi32>
    %14 = arith.cmpi sgt, %6, %13 : vector<2x1xi32>
    %15 = vector.extract_strided_slice %5 {offsets = [0, 0], sizes = [2, 48], strides = [1, 1]} : vector<16x96xf32> to vector<2x48xf32>
    %cst_17 = arith.constant dense<0.000000e+00> : vector<2x48xf32>
    %16 = tpu.matmul %11, %7, %cst_17 {dimension_numbers = #tpu.dot_dimension_numbers<[1], [0], [0], [1], [0, 0, 1, 1], [], []>} : vector<2x16xf32>, vector<16x48xf32>, vector<2x48xf32> -> vector<2x48xf32>
    %17 = vector.broadcast %8 : vector<1x48xf32> to vector<2x48xf32>
    %18 = arith.addf %16, %17 : vector<2x48xf32>
    %19 = vector.extract_strided_slice %15 {offsets = [0, 0], sizes = [2, 16], strides = [1, 1]} : vector<2x48xf32> to vector<2x16xf32>
    %20 = vector.extract_strided_slice %18 {offsets = [0, 0], sizes = [2, 16], strides = [1, 1]} : vector<2x48xf32> to vector<2x16xf32>
    %21 = arith.addf %19, %20 : vector<2x16xf32>
    %cst_18 = arith.constant 0.000000e+00 : f32
    %22 = vector.broadcast %cst_18 : f32 to vector<2x16xf32>
    %23 = arith.subf %22, %21 : vector<2x16xf32>
    %24 = math.exp %23 : vector<2x16xf32>
    %cst_19 = arith.constant 1.000000e+00 : f32
    %25 = vector.broadcast %cst_19 : f32 to vector<2x16xf32>
    %26 = arith.addf %25, %24 : vector<2x16xf32>
    %cst_20 = arith.constant 1.000000e+00 : f32
    %27 = vector.broadcast %cst_20 : f32 to vector<2x16xf32>
    %28 = arith.divf %27, %26 : vector<2x16xf32>
    %29 = vector.extract_strided_slice %15 {offsets = [0, 16], sizes = [2, 16], strides = [1, 1]} : vector<2x48xf32> to vector<2x16xf32>
    %30 = vector.extract_strided_slice %18 {offsets = [0, 16], sizes = [2, 16], strides = [1, 1]} : vector<2x48xf32> to vector<2x16xf32>
    %31 = arith.addf %29, %30 : vector<2x16xf32>
    %cst_21 = arith.constant 0.000000e+00 : f32
    %32 = vector.broadcast %cst_21 : f32 to vector<2x16xf32>
    %33 = arith.subf %32, %31 : vector<2x16xf32>
    %34 = math.exp %33 : vector<2x16xf32>
    %cst_22 = arith.constant 1.000000e+00 : f32
    %35 = vector.broadcast %cst_22 : f32 to vector<2x16xf32>
    %36 = arith.addf %35, %34 : vector<2x16xf32>
    %cst_23 = arith.constant 1.000000e+00 : f32
    %37 = vector.broadcast %cst_23 : f32 to vector<2x16xf32>
    %38 = arith.divf %37, %36 : vector<2x16xf32>
    %39 = vector.extract_strided_slice %15 {offsets = [0, 32], sizes = [2, 16], strides = [1, 1]} : vector<2x48xf32> to vector<2x16xf32>
    %40 = vector.extract_strided_slice %18 {offsets = [0, 32], sizes = [2, 16], strides = [1, 1]} : vector<2x48xf32> to vector<2x16xf32>
    %41 = arith.mulf %28, %40 : vector<2x16xf32>
    %42 = arith.addf %39, %41 : vector<2x16xf32>
    %43 = math.tanh %42 : vector<2x16xf32>
    %cst_24 = arith.constant 1.000000e+00 : f32
    %44 = vector.broadcast %cst_24 : f32 to vector<2x16xf32>
    %45 = arith.subf %44, %38 : vector<2x16xf32>
    %46 = arith.mulf %45, %43 : vector<2x16xf32>
    %47 = arith.mulf %38, %11 : vector<2x16xf32>
    %48 = arith.addf %46, %47 : vector<2x16xf32>
    %49 = vector.shape_cast %14 : vector<2x1xi1> to vector<2x1xi1>
    %50 = vector.broadcast %49 : vector<2x1xi1> to vector<2x16xi1>
    %51 = arith.select %50, %48, %11 : vector<2x16xi1>, vector<2x16xf32>
    %cst_25 = arith.constant 0.000000e+00 : f32
    %52 = vector.shape_cast %14 : vector<2x1xi1> to vector<2x1xi1>
    %53 = vector.broadcast %52 : vector<2x1xi1> to vector<2x16xi1>
    %54 = vector.broadcast %cst_25 : f32 to vector<2x16xf32>
    %55 = arith.select %53, %51, %54 : vector<2x16xi1>, vector<2x16xf32>
    %c0_26 = arith.constant 0 : index
    %c0_27 = arith.constant 0 : index
    %56 = vector.load %arg22[%c0_26, %c0_27] : memref<16x16xf32, #tpu.memory_space<vmem>>, vector<2x16xf32>
    tpu.vector_store %arg22[%c0_26, %c0_27], %55 {strides = array<i32>} : memref<16x16xf32, #tpu.memory_space<vmem>>, vector<2x16xf32>,
    %c7_i32 = arith.constant 7 : i32
    %57 = vector.broadcast %c7_i32 : i32 to vector<2x1xi32>
    %58 = arith.cmpi sgt, %6, %57 : vector<2x1xi32>
    %59 = vector.extract_strided_slice %5 {offsets = [14, 48], sizes = [2, 48], strides = [1, 1]} : vector<16x96xf32> to vector<2x48xf32>
    %cst_28 = arith.constant dense<0.000000e+00> : vector<2x48xf32>
    %60 = tpu.matmul %12, %9, %cst_28 {dimension_numbers = #tpu.dot_dimension_numbers<[1], [0], [0], [1], [0, 0, 1, 1], [], []>} : vector<2x16xf32>, vector<16x48xf32>, vector<2x48xf32> -> vector<2x48xf32>
    %61 = vector.broadcast %10 : vector<1x48xf32> to vector<2x48xf32>
    %62 = arith.addf %60, %61 : vector<2x48xf32>
    %63 = vector.extract_strided_slice %59 {offsets = [0, 0], sizes = [2, 16], strides = [1, 1]} : vector<2x48xf32> to vector<2x16xf32>
    %64 = vector.extract_strided_slice %62 {offsets = [0, 0], sizes = [2, 16], strides = [1, 1]} : vector<2x48xf32> to vector<2x16xf32>
    %65 = arith.addf %63, %64 : vector<2x16xf32>
    %cst_29 = arith.constant 0.000000e+00 : f32
    %66 = vector.broadcast %cst_29 : f32 to vector<2x16xf32>
    %67 = arith.subf %66, %65 : vector<2x16xf32>
    %68 = math.exp %67 : vector<2x16xf32>
    %cst_30 = arith.constant 1.000000e+00 : f32
    %69 = vector.broadcast %cst_30 : f32 to vector<2x16xf32>
    %70 = arith.addf %69, %68 : vector<2x16xf32>
    %cst_31 = arith.constant 1.000000e+00 : f32
    %71 = vector.broadcast %cst_31 : f32 to vector<2x16xf32>
    %72 = arith.divf %71, %70 : vector<2x16xf32>
    %73 = vector.extract_strided_slice %59 {offsets = [0, 16], sizes = [2, 16], strides = [1, 1]} : vector<2x48xf32> to vector<2x16xf32>
    %74 = vector.extract_strided_slice %62 {offsets = [0, 16], sizes = [2, 16], strides = [1, 1]} : vector<2x48xf32> to vector<2x16xf32>
    %75 = arith.addf %73, %74 : vector<2x16xf32>
    %cst_32 = arith.constant 0.000000e+00 : f32
    %76 = vector.broadcast %cst_32 : f32 to vector<2x16xf32>
    %77 = arith.subf %76, %75 : vector<2x16xf32>
    %78 = math.exp %77 : vector<2x16xf32>
    %cst_33 = arith.constant 1.000000e+00 : f32
    %79 = vector.broadcast %cst_33 : f32 to vector<2x16xf32>
    %80 = arith.addf %79, %78 : vector<2x16xf32>
    %cst_34 = arith.constant 1.000000e+00 : f32
    %81 = vector.broadcast %cst_34 : f32 to vector<2x16xf32>
    %82 = arith.divf %81, %80 : vector<2x16xf32>
    %83 = vector.extract_strided_slice %59 {offsets = [0, 32], sizes = [2, 16], strides = [1, 1]} : vector<2x48xf32> to vector<2x16xf32>
    %84 = vector.extract_strided_slice %62 {offsets = [0, 32], sizes = [2, 16], strides = [1, 1]} : vector<2x48xf32> to vector<2x16xf32>
    %85 = arith.mulf %72, %84 : vector<2x16xf32>
    %86 = arith.addf %83, %85 : vector<2x16xf32>
    %87 = math.tanh %86 : vector<2x16xf32>
    %cst_35 = arith.constant 1.000000e+00 : f32
    %88 = vector.broadcast %cst_35 : f32 to vector<2x16xf32>
    %89 = arith.subf %88, %82 : vector<2x16xf32>
    %90 = arith.mulf %89, %87 : vector<2x16xf32>
    %91 = arith.mulf %82, %12 : vector<2x16xf32>
    %92 = arith.addf %90, %91 : vector<2x16xf32>
    %93 = vector.shape_cast %58 : vector<2x1xi1> to vector<2x1xi1>
    %94 = vector.broadcast %93 : vector<2x1xi1> to vector<2x16xi1>
    %95 = arith.select %94, %92, %12 : vector<2x16xi1>, vector<2x16xf32>
    %cst_36 = arith.constant 0.000000e+00 : f32
    %96 = vector.shape_cast %58 : vector<2x1xi1> to vector<2x1xi1>
    %97 = vector.broadcast %96 : vector<2x1xi1> to vector<2x16xi1>
    %98 = vector.broadcast %cst_36 : f32 to vector<2x16xf32>
    %99 = arith.select %97, %95, %98 : vector<2x16xi1>, vector<2x16xf32>
    %c14 = arith.constant 14 : index
    %c0_37 = arith.constant 0 : index
    %100 = vector.load %arg23[%c14, %c0_37] : memref<16x16xf32, #tpu.memory_space<vmem>>, vector<2x16xf32>
    tpu.vector_store %arg23[%c14, %c0_37], %99 {strides = array<i32>} : memref<16x16xf32, #tpu.memory_space<vmem>>, vector<2x16xf32>,
    %c1_i32 = arith.constant 1 : i32
    %101 = vector.broadcast %c1_i32 : i32 to vector<2x1xi32>
    %102 = arith.cmpi sgt, %6, %101 : vector<2x1xi32>
    %103 = vector.extract_strided_slice %5 {offsets = [2, 0], sizes = [2, 48], strides = [1, 1]} : vector<16x96xf32> to vector<2x48xf32>
    %cst_38 = arith.constant dense<0.000000e+00> : vector<2x48xf32>
    %104 = tpu.matmul %51, %7, %cst_38 {dimension_numbers = #tpu.dot_dimension_numbers<[1], [0], [0], [1], [0, 0, 1, 1], [], []>} : vector<2x16xf32>, vector<16x48xf32>, vector<2x48xf32> -> vector<2x48xf32>
    %105 = vector.broadcast %8 : vector<1x48xf32> to vector<2x48xf32>
    %106 = arith.addf %104, %105 : vector<2x48xf32>
    %107 = vector.extract_strided_slice %103 {offsets = [0, 0], sizes = [2, 16], strides = [1, 1]} : vector<2x48xf32> to vector<2x16xf32>
    %108 = vector.extract_strided_slice %106 {offsets = [0, 0], sizes = [2, 16], strides = [1, 1]} : vector<2x48xf32> to vector<2x16xf32>
    %109 = arith.addf %107, %108 : vector<2x16xf32>
    %cst_39 = arith.constant 0.000000e+00 : f32
    %110 = vector.broadcast %cst_39 : f32 to vector<2x16xf32>
    %111 = arith.subf %110, %109 : vector<2x16xf32>
    %112 = math.exp %111 : vector<2x16xf32>
    %cst_40 = arith.constant 1.000000e+00 : f32
    %113 = vector.broadcast %cst_40 : f32 to vector<2x16xf32>
    %114 = arith.addf %113, %112 : vector<2x16xf32>
    %cst_41 = arith.constant 1.000000e+00 : f32
    %115 = vector.broadcast %cst_41 : f32 to vector<2x16xf32>
    %116 = arith.divf %115, %114 : vector<2x16xf32>
    %117 = vector.extract_strided_slice %103 {offsets = [0, 16], sizes = [2, 16], strides = [1, 1]} : vector<2x48xf32> to vector<2x16xf32>
    %118 = vector.extract_strided_slice %106 {offsets = [0, 16], sizes = [2, 16], strides = [1, 1]} : vector<2x48xf32> to vector<2x16xf32>
    %119 = arith.addf %117, %118 : vector<2x16xf32>
    %cst_42 = arith.constant 0.000000e+00 : f32
    %120 = vector.broadcast %cst_42 : f32 to vector<2x16xf32>
    %121 = arith.subf %120, %119 : vector<2x16xf32>
    %122 = math.exp %121 : vector<2x16xf32>
    %cst_43 = arith.constant 1.000000e+00 : f32
    %123 = vector.broadcast %cst_43 : f32 to vector<2x16xf32>
    %124 = arith.addf %123, %122 : vector<2x16xf32>
    %cst_44 = arith.constant 1.000000e+00 : f32
    %125 = vector.broadcast %cst_44 : f32 to vector<2x16xf32>
    %126 = arith.divf %125, %124 : vector<2x16xf32>
    %127 = vector.extract_strided_slice %103 {offsets = [0, 32], sizes = [2, 16], strides = [1, 1]} : vector<2x48xf32> to vector<2x16xf32>
    %128 = vector.extract_strided_slice %106 {offsets = [0, 32], sizes = [2, 16], strides = [1, 1]} : vector<2x48xf32> to vector<2x16xf32>
    %129 = arith.mulf %116, %128 : vector<2x16xf32>
    %130 = arith.addf %127, %129 : vector<2x16xf32>
    %131 = math.tanh %130 : vector<2x16xf32>
    %cst_45 = arith.constant 1.000000e+00 : f32
    %132 = vector.broadcast %cst_45 : f32 to vector<2x16xf32>
    %133 = arith.subf %132, %126 : vector<2x16xf32>
    %134 = arith.mulf %133, %131 : vector<2x16xf32>
    %135 = arith.mulf %126, %51 : vector<2x16xf32>
    %136 = arith.addf %134, %135 : vector<2x16xf32>
    %137 = vector.shape_cast %102 : vector<2x1xi1> to vector<2x1xi1>
    %138 = vector.broadcast %137 : vector<2x1xi1> to vector<2x16xi1>
    %139 = arith.select %138, %136, %51 : vector<2x16xi1>, vector<2x16xf32>
    %cst_46 = arith.constant 0.000000e+00 : f32
    %140 = vector.shape_cast %102 : vector<2x1xi1> to vector<2x1xi1>
    %141 = vector.broadcast %140 : vector<2x1xi1> to vector<2x16xi1>
    %142 = vector.broadcast %cst_46 : f32 to vector<2x16xf32>
    %143 = arith.select %141, %139, %142 : vector<2x16xi1>, vector<2x16xf32>
    %c2 = arith.constant 2 : index
    %c0_47 = arith.constant 0 : index
    %144 = vector.load %arg22[%c2, %c0_47] : memref<16x16xf32, #tpu.memory_space<vmem>>, vector<2x16xf32>
    tpu.vector_store %arg22[%c2, %c0_47], %143 {strides = array<i32>} : memref<16x16xf32, #tpu.memory_space<vmem>>, vector<2x16xf32>,
    %c6_i32 = arith.constant 6 : i32
    %145 = vector.broadcast %c6_i32 : i32 to vector<2x1xi32>
    %146 = arith.cmpi sgt, %6, %145 : vector<2x1xi32>
    %147 = vector.extract_strided_slice %5 {offsets = [12, 48], sizes = [2, 48], strides = [1, 1]} : vector<16x96xf32> to vector<2x48xf32>
    %cst_48 = arith.constant dense<0.000000e+00> : vector<2x48xf32>
    %148 = tpu.matmul %95, %9, %cst_48 {dimension_numbers = #tpu.dot_dimension_numbers<[1], [0], [0], [1], [0, 0, 1, 1], [], []>} : vector<2x16xf32>, vector<16x48xf32>, vector<2x48xf32> -> vector<2x48xf32>
    %149 = vector.broadcast %10 : vector<1x48xf32> to vector<2x48xf32>
    %150 = arith.addf %148, %149 : vector<2x48xf32>
    %151 = vector.extract_strided_slice %147 {offsets = [0, 0], sizes = [2, 16], strides = [1, 1]} : vector<2x48xf32> to vector<2x16xf32>
    %152 = vector.extract_strided_slice %150 {offsets = [0, 0], sizes = [2, 16], strides = [1, 1]} : vector<2x48xf32> to vector<2x16xf32>
    %153 = arith.addf %151, %152 : vector<2x16xf32>
    %cst_49 = arith.constant 0.000000e+00 : f32
    %154 = vector.broadcast %cst_49 : f32 to vector<2x16xf32>
    %155 = arith.subf %154, %153 : vector<2x16xf32>
    %156 = math.exp %155 : vector<2x16xf32>
    %cst_50 = arith.constant 1.000000e+00 : f32
    %157 = vector.broadcast %cst_50 : f32 to vector<2x16xf32>
    %158 = arith.addf %157, %156 : vector<2x16xf32>
    %cst_51 = arith.constant 1.000000e+00 : f32
    %159 = vector.broadcast %cst_51 : f32 to vector<2x16xf32>
    %160 = arith.divf %159, %158 : vector<2x16xf32>
    %161 = vector.extract_strided_slice %147 {offsets = [0, 16], sizes = [2, 16], strides = [1, 1]} : vector<2x48xf32> to vector<2x16xf32>
    %162 = vector.extract_strided_slice %150 {offsets = [0, 16], sizes = [2, 16], strides = [1, 1]} : vector<2x48xf32> to vector<2x16xf32>
    %163 = arith.addf %161, %162 : vector<2x16xf32>
    %cst_52 = arith.constant 0.000000e+00 : f32
    %164 = vector.broadcast %cst_52 : f32 to vector<2x16xf32>
    %165 = arith.subf %164, %163 : vector<2x16xf32>
    %166 = math.exp %165 : vector<2x16xf32>
    %cst_53 = arith.constant 1.000000e+00 : f32
    %167 = vector.broadcast %cst_53 : f32 to vector<2x16xf32>
    %168 = arith.addf %167, %166 : vector<2x16xf32>
    %cst_54 = arith.constant 1.000000e+00 : f32
    %169 = vector.broadcast %cst_54 : f32 to vector<2x16xf32>
    %170 = arith.divf %169, %168 : vector<2x16xf32>
    %171 = vector.extract_strided_slice %147 {offsets = [0, 32], sizes = [2, 16], strides = [1, 1]} : vector<2x48xf32> to vector<2x16xf32>
    %172 = vector.extract_strided_slice %150 {offsets = [0, 32], sizes = [2, 16], strides = [1, 1]} : vector<2x48xf32> to vector<2x16xf32>
    %173 = arith.mulf %160, %172 : vector<2x16xf32>
    %174 = arith.addf %171, %173 : vector<2x16xf32>
    %175 = math.tanh %174 : vector<2x16xf32>
    %cst_55 = arith.constant 1.000000e+00 : f32
    %176 = vector.broadcast %cst_55 : f32 to vector<2x16xf32>
    %177 = arith.subf %176, %170 : vector<2x16xf32>
    %178 = arith.mulf %177, %175 : vector<2x16xf32>
    %179 = arith.mulf %170, %95 : vector<2x16xf32>
    %180 = arith.addf %178, %179 : vector<2x16xf32>
    %181 = vector.shape_cast %146 : vector<2x1xi1> to vector<2x1xi1>
    %182 = vector.broadcast %181 : vector<2x1xi1> to vector<2x16xi1>
    %183 = arith.select %182, %180, %95 : vector<2x16xi1>, vector<2x16xf32>
    %cst_56 = arith.constant 0.000000e+00 : f32
    %184 = vector.shape_cast %146 : vector<2x1xi1> to vector<2x1xi1>
    %185 = vector.broadcast %184 : vector<2x1xi1> to vector<2x16xi1>
    %186 = vector.broadcast %cst_56 : f32 to vector<2x16xf32>
    %187 = arith.select %185, %183, %186 : vector<2x16xi1>, vector<2x16xf32>
    %c12 = arith.constant 12 : index
    %c0_57 = arith.constant 0 : index
    %188 = vector.load %arg23[%c12, %c0_57] : memref<16x16xf32, #tpu.memory_space<vmem>>, vector<2x16xf32>
    tpu.vector_store %arg23[%c12, %c0_57], %187 {strides = array<i32>} : memref<16x16xf32, #tpu.memory_space<vmem>>, vector<2x16xf32>,
    %c2_i32 = arith.constant 2 : i32
    %189 = vector.broadcast %c2_i32 : i32 to vector<2x1xi32>
    %190 = arith.cmpi sgt, %6, %189 : vector<2x1xi32>
    %191 = vector.extract_strided_slice %5 {offsets = [4, 0], sizes = [2, 48], strides = [1, 1]} : vector<16x96xf32> to vector<2x48xf32>
    %cst_58 = arith.constant dense<0.000000e+00> : vector<2x48xf32>
    %192 = tpu.matmul %139, %7, %cst_58 {dimension_numbers = #tpu.dot_dimension_numbers<[1], [0], [0], [1], [0, 0, 1, 1], [], []>} : vector<2x16xf32>, vector<16x48xf32>, vector<2x48xf32> -> vector<2x48xf32>
    %193 = vector.broadcast %8 : vector<1x48xf32> to vector<2x48xf32>
    %194 = arith.addf %192, %193 : vector<2x48xf32>
    %195 = vector.extract_strided_slice %191 {offsets = [0, 0], sizes = [2, 16], strides = [1, 1]} : vector<2x48xf32> to vector<2x16xf32>
    %196 = vector.extract_strided_slice %194 {offsets = [0, 0], sizes = [2, 16], strides = [1, 1]} : vector<2x48xf32> to vector<2x16xf32>
    %197 = arith.addf %195, %196 : vector<2x16xf32>
    %cst_59 = arith.constant 0.000000e+00 : f32
    %198 = vector.broadcast %cst_59 : f32 to vector<2x16xf32>
    %199 = arith.subf %198, %197 : vector<2x16xf32>
    %200 = math.exp %199 : vector<2x16xf32>
    %cst_60 = arith.constant 1.000000e+00 : f32
    %201 = vector.broadcast %cst_60 : f32 to vector<2x16xf32>
    %202 = arith.addf %201, %200 : vector<2x16xf32>
    %cst_61 = arith.constant 1.000000e+00 : f32
    %203 = vector.broadcast %cst_61 : f32 to vector<2x16xf32>
    %204 = arith.divf %203, %202 : vector<2x16xf32>
    %205 = vector.extract_strided_slice %191 {offsets = [0, 16], sizes = [2, 16], strides = [1, 1]} : vector<2x48xf32> to vector<2x16xf32>
    %206 = vector.extract_strided_slice %194 {offsets = [0, 16], sizes = [2, 16], strides = [1, 1]} : vector<2x48xf32> to vector<2x16xf32>
    %207 = arith.addf %205, %206 : vector<2x16xf32>
    %cst_62 = arith.constant 0.000000e+00 : f32
    %208 = vector.broadcast %cst_62 : f32 to vector<2x16xf32>
    %209 = arith.subf %208, %207 : vector<2x16xf32>
    %210 = math.exp %209 : vector<2x16xf32>
    %cst_63 = arith.constant 1.000000e+00 : f32
    %211 = vector.broadcast %cst_63 : f32 to vector<2x16xf32>
    %212 = arith.addf %211, %210 : vector<2x16xf32>
    %cst_64 = arith.constant 1.000000e+00 : f32
    %213 = vector.broadcast %cst_64 : f32 to vector<2x16xf32>
    %214 = arith.divf %213, %212 : vector<2x16xf32>
    %215 = vector.extract_strided_slice %191 {offsets = [0, 32], sizes = [2, 16], strides = [1, 1]} : vector<2x48xf32> to vector<2x16xf32>
    %216 = vector.extract_strided_slice %194 {offsets = [0, 32], sizes = [2, 16], strides = [1, 1]} : vector<2x48xf32> to vector<2x16xf32>
    %217 = arith.mulf %204, %216 : vector<2x16xf32>
    %218 = arith.addf %215, %217 : vector<2x16xf32>
    %219 = math.tanh %218 : vector<2x16xf32>
    %cst_65 = arith.constant 1.000000e+00 : f32
    %220 = vector.broadcast %cst_65 : f32 to vector<2x16xf32>
    %221 = arith.subf %220, %214 : vector<2x16xf32>
    %222 = arith.mulf %221, %219 : vector<2x16xf32>
    %223 = arith.mulf %214, %139 : vector<2x16xf32>
    %224 = arith.addf %222, %223 : vector<2x16xf32>
    %225 = vector.shape_cast %190 : vector<2x1xi1> to vector<2x1xi1>
    %226 = vector.broadcast %225 : vector<2x1xi1> to vector<2x16xi1>
    %227 = arith.select %226, %224, %139 : vector<2x16xi1>, vector<2x16xf32>
    %cst_66 = arith.constant 0.000000e+00 : f32
    %228 = vector.shape_cast %190 : vector<2x1xi1> to vector<2x1xi1>
    %229 = vector.broadcast %228 : vector<2x1xi1> to vector<2x16xi1>
    %230 = vector.broadcast %cst_66 : f32 to vector<2x16xf32>
    %231 = arith.select %229, %227, %230 : vector<2x16xi1>, vector<2x16xf32>
    %c4 = arith.constant 4 : index
    %c0_67 = arith.constant 0 : index
    %232 = vector.load %arg22[%c4, %c0_67] : memref<16x16xf32, #tpu.memory_space<vmem>>, vector<2x16xf32>
    tpu.vector_store %arg22[%c4, %c0_67], %231 {strides = array<i32>} : memref<16x16xf32, #tpu.memory_space<vmem>>, vector<2x16xf32>,
    %c5_i32 = arith.constant 5 : i32
    %233 = vector.broadcast %c5_i32 : i32 to vector<2x1xi32>
    %234 = arith.cmpi sgt, %6, %233 : vector<2x1xi32>
    %235 = vector.extract_strided_slice %5 {offsets = [10, 48], sizes = [2, 48], strides = [1, 1]} : vector<16x96xf32> to vector<2x48xf32>
    %cst_68 = arith.constant dense<0.000000e+00> : vector<2x48xf32>
    %236 = tpu.matmul %183, %9, %cst_68 {dimension_numbers = #tpu.dot_dimension_numbers<[1], [0], [0], [1], [0, 0, 1, 1], [], []>} : vector<2x16xf32>, vector<16x48xf32>, vector<2x48xf32> -> vector<2x48xf32>
    %237 = vector.broadcast %10 : vector<1x48xf32> to vector<2x48xf32>
    %238 = arith.addf %236, %237 : vector<2x48xf32>
    %239 = vector.extract_strided_slice %235 {offsets = [0, 0], sizes = [2, 16], strides = [1, 1]} : vector<2x48xf32> to vector<2x16xf32>
    %240 = vector.extract_strided_slice %238 {offsets = [0, 0], sizes = [2, 16], strides = [1, 1]} : vector<2x48xf32> to vector<2x16xf32>
    %241 = arith.addf %239, %240 : vector<2x16xf32>
    %cst_69 = arith.constant 0.000000e+00 : f32
    %242 = vector.broadcast %cst_69 : f32 to vector<2x16xf32>
    %243 = arith.subf %242, %241 : vector<2x16xf32>
    %244 = math.exp %243 : vector<2x16xf32>
    %cst_70 = arith.constant 1.000000e+00 : f32
    %245 = vector.broadcast %cst_70 : f32 to vector<2x16xf32>
    %246 = arith.addf %245, %244 : vector<2x16xf32>
    %cst_71 = arith.constant 1.000000e+00 : f32
    %247 = vector.broadcast %cst_71 : f32 to vector<2x16xf32>
    %248 = arith.divf %247, %246 : vector<2x16xf32>
    %249 = vector.extract_strided_slice %235 {offsets = [0, 16], sizes = [2, 16], strides = [1, 1]} : vector<2x48xf32> to vector<2x16xf32>
    %250 = vector.extract_strided_slice %238 {offsets = [0, 16], sizes = [2, 16], strides = [1, 1]} : vector<2x48xf32> to vector<2x16xf32>
    %251 = arith.addf %249, %250 : vector<2x16xf32>
    %cst_72 = arith.constant 0.000000e+00 : f32
    %252 = vector.broadcast %cst_72 : f32 to vector<2x16xf32>
    %253 = arith.subf %252, %251 : vector<2x16xf32>
    %254 = math.exp %253 : vector<2x16xf32>
    %cst_73 = arith.constant 1.000000e+00 : f32
    %255 = vector.broadcast %cst_73 : f32 to vector<2x16xf32>
    %256 = arith.addf %255, %254 : vector<2x16xf32>
    %cst_74 = arith.constant 1.000000e+00 : f32
    %257 = vector.broadcast %cst_74 : f32 to vector<2x16xf32>
    %258 = arith.divf %257, %256 : vector<2x16xf32>
    %259 = vector.extract_strided_slice %235 {offsets = [0, 32], sizes = [2, 16], strides = [1, 1]} : vector<2x48xf32> to vector<2x16xf32>
    %260 = vector.extract_strided_slice %238 {offsets = [0, 32], sizes = [2, 16], strides = [1, 1]} : vector<2x48xf32> to vector<2x16xf32>
    %261 = arith.mulf %248, %260 : vector<2x16xf32>
    %262 = arith.addf %259, %261 : vector<2x16xf32>
    %263 = math.tanh %262 : vector<2x16xf32>
    %cst_75 = arith.constant 1.000000e+00 : f32
    %264 = vector.broadcast %cst_75 : f32 to vector<2x16xf32>
    %265 = arith.subf %264, %258 : vector<2x16xf32>
    %266 = arith.mulf %265, %263 : vector<2x16xf32>
    %267 = arith.mulf %258, %183 : vector<2x16xf32>
    %268 = arith.addf %266, %267 : vector<2x16xf32>
    %269 = vector.shape_cast %234 : vector<2x1xi1> to vector<2x1xi1>
    %270 = vector.broadcast %269 : vector<2x1xi1> to vector<2x16xi1>
    %271 = arith.select %270, %268, %183 : vector<2x16xi1>, vector<2x16xf32>
    %cst_76 = arith.constant 0.000000e+00 : f32
    %272 = vector.shape_cast %234 : vector<2x1xi1> to vector<2x1xi1>
    %273 = vector.broadcast %272 : vector<2x1xi1> to vector<2x16xi1>
    %274 = vector.broadcast %cst_76 : f32 to vector<2x16xf32>
    %275 = arith.select %273, %271, %274 : vector<2x16xi1>, vector<2x16xf32>
    %c10 = arith.constant 10 : index
    %c0_77 = arith.constant 0 : index
    %276 = vector.load %arg23[%c10, %c0_77] : memref<16x16xf32, #tpu.memory_space<vmem>>, vector<2x16xf32>
    tpu.vector_store %arg23[%c10, %c0_77], %275 {strides = array<i32>} : memref<16x16xf32, #tpu.memory_space<vmem>>, vector<2x16xf32>,
    %c3_i32 = arith.constant 3 : i32
    %277 = vector.broadcast %c3_i32 : i32 to vector<2x1xi32>
    %278 = arith.cmpi sgt, %6, %277 : vector<2x1xi32>
    %279 = vector.extract_strided_slice %5 {offsets = [6, 0], sizes = [2, 48], strides = [1, 1]} : vector<16x96xf32> to vector<2x48xf32>
    %cst_78 = arith.constant dense<0.000000e+00> : vector<2x48xf32>
    %280 = tpu.matmul %227, %7, %cst_78 {dimension_numbers = #tpu.dot_dimension_numbers<[1], [0], [0], [1], [0, 0, 1, 1], [], []>} : vector<2x16xf32>, vector<16x48xf32>, vector<2x48xf32> -> vector<2x48xf32>
    %281 = vector.broadcast %8 : vector<1x48xf32> to vector<2x48xf32>
    %282 = arith.addf %280, %281 : vector<2x48xf32>
    %283 = vector.extract_strided_slice %279 {offsets = [0, 0], sizes = [2, 16], strides = [1, 1]} : vector<2x48xf32> to vector<2x16xf32>
    %284 = vector.extract_strided_slice %282 {offsets = [0, 0], sizes = [2, 16], strides = [1, 1]} : vector<2x48xf32> to vector<2x16xf32>
    %285 = arith.addf %283, %284 : vector<2x16xf32>
    %cst_79 = arith.constant 0.000000e+00 : f32
    %286 = vector.broadcast %cst_79 : f32 to vector<2x16xf32>
    %287 = arith.subf %286, %285 : vector<2x16xf32>
    %288 = math.exp %287 : vector<2x16xf32>
    %cst_80 = arith.constant 1.000000e+00 : f32
    %289 = vector.broadcast %cst_80 : f32 to vector<2x16xf32>
    %290 = arith.addf %289, %288 : vector<2x16xf32>
    %cst_81 = arith.constant 1.000000e+00 : f32
    %291 = vector.broadcast %cst_81 : f32 to vector<2x16xf32>
    %292 = arith.divf %291, %290 : vector<2x16xf32>
    %293 = vector.extract_strided_slice %279 {offsets = [0, 16], sizes = [2, 16], strides = [1, 1]} : vector<2x48xf32> to vector<2x16xf32>
    %294 = vector.extract_strided_slice %282 {offsets = [0, 16], sizes = [2, 16], strides = [1, 1]} : vector<2x48xf32> to vector<2x16xf32>
    %295 = arith.addf %293, %294 : vector<2x16xf32>
    %cst_82 = arith.constant 0.000000e+00 : f32
    %296 = vector.broadcast %cst_82 : f32 to vector<2x16xf32>
    %297 = arith.subf %296, %295 : vector<2x16xf32>
    %298 = math.exp %297 : vector<2x16xf32>
    %cst_83 = arith.constant 1.000000e+00 : f32
    %299 = vector.broadcast %cst_83 : f32 to vector<2x16xf32>
    %300 = arith.addf %299, %298 : vector<2x16xf32>
    %cst_84 = arith.constant 1.000000e+00 : f32
    %301 = vector.broadcast %cst_84 : f32 to vector<2x16xf32>
    %302 = arith.divf %301, %300 : vector<2x16xf32>
    %303 = vector.extract_strided_slice %279 {offsets = [0, 32], sizes = [2, 16], strides = [1, 1]} : vector<2x48xf32> to vector<2x16xf32>
    %304 = vector.extract_strided_slice %282 {offsets = [0, 32], sizes = [2, 16], strides = [1, 1]} : vector<2x48xf32> to vector<2x16xf32>
    %305 = arith.mulf %292, %304 : vector<2x16xf32>
    %306 = arith.addf %303, %305 : vector<2x16xf32>
    %307 = math.tanh %306 : vector<2x16xf32>
    %cst_85 = arith.constant 1.000000e+00 : f32
    %308 = vector.broadcast %cst_85 : f32 to vector<2x16xf32>
    %309 = arith.subf %308, %302 : vector<2x16xf32>
    %310 = arith.mulf %309, %307 : vector<2x16xf32>
    %311 = arith.mulf %302, %227 : vector<2x16xf32>
    %312 = arith.addf %310, %311 : vector<2x16xf32>
    %313 = vector.shape_cast %278 : vector<2x1xi1> to vector<2x1xi1>
    %314 = vector.broadcast %313 : vector<2x1xi1> to vector<2x16xi1>
    %315 = arith.select %314, %312, %227 : vector<2x16xi1>, vector<2x16xf32>
    %cst_86 = arith.constant 0.000000e+00 : f32
    %316 = vector.shape_cast %278 : vector<2x1xi1> to vector<2x1xi1>
    %317 = vector.broadcast %316 : vector<2x1xi1> to vector<2x16xi1>
    %318 = vector.broadcast %cst_86 : f32 to vector<2x16xf32>
    %319 = arith.select %317, %315, %318 : vector<2x16xi1>, vector<2x16xf32>
    %c6 = arith.constant 6 : index
    %c0_87 = arith.constant 0 : index
    %320 = vector.load %arg22[%c6, %c0_87] : memref<16x16xf32, #tpu.memory_space<vmem>>, vector<2x16xf32>
    tpu.vector_store %arg22[%c6, %c0_87], %319 {strides = array<i32>} : memref<16x16xf32, #tpu.memory_space<vmem>>, vector<2x16xf32>,
    %c4_i32 = arith.constant 4 : i32
    %321 = vector.broadcast %c4_i32 : i32 to vector<2x1xi32>
    %322 = arith.cmpi sgt, %6, %321 : vector<2x1xi32>
    %323 = vector.extract_strided_slice %5 {offsets = [8, 48], sizes = [2, 48], strides = [1, 1]} : vector<16x96xf32> to vector<2x48xf32>
    %cst_88 = arith.constant dense<0.000000e+00> : vector<2x48xf32>
    %324 = tpu.matmul %271, %9, %cst_88 {dimension_numbers = #tpu.dot_dimension_numbers<[1], [0], [0], [1], [0, 0, 1, 1], [], []>} : vector<2x16xf32>, vector<16x48xf32>, vector<2x48xf32> -> vector<2x48xf32>
    %325 = vector.broadcast %10 : vector<1x48xf32> to vector<2x48xf32>
    %326 = arith.addf %324, %325 : vector<2x48xf32>
    %327 = vector.extract_strided_slice %323 {offsets = [0, 0], sizes = [2, 16], strides = [1, 1]} : vector<2x48xf32> to vector<2x16xf32>
    %328 = vector.extract_strided_slice %326 {offsets = [0, 0], sizes = [2, 16], strides = [1, 1]} : vector<2x48xf32> to vector<2x16xf32>
    %329 = arith.addf %327, %328 : vector<2x16xf32>
    %cst_89 = arith.constant 0.000000e+00 : f32
    %330 = vector.broadcast %cst_89 : f32 to vector<2x16xf32>
    %331 = arith.subf %330, %329 : vector<2x16xf32>
    %332 = math.exp %331 : vector<2x16xf32>
    %cst_90 = arith.constant 1.000000e+00 : f32
    %333 = vector.broadcast %cst_90 : f32 to vector<2x16xf32>
    %334 = arith.addf %333, %332 : vector<2x16xf32>
    %cst_91 = arith.constant 1.000000e+00 : f32
    %335 = vector.broadcast %cst_91 : f32 to vector<2x16xf32>
    %336 = arith.divf %335, %334 : vector<2x16xf32>
    %337 = vector.extract_strided_slice %323 {offsets = [0, 16], sizes = [2, 16], strides = [1, 1]} : vector<2x48xf32> to vector<2x16xf32>
    %338 = vector.extract_strided_slice %326 {offsets = [0, 16], sizes = [2, 16], strides = [1, 1]} : vector<2x48xf32> to vector<2x16xf32>
    %339 = arith.addf %337, %338 : vector<2x16xf32>
    %cst_92 = arith.constant 0.000000e+00 : f32
    %340 = vector.broadcast %cst_92 : f32 to vector<2x16xf32>
    %341 = arith.subf %340, %339 : vector<2x16xf32>
    %342 = math.exp %341 : vector<2x16xf32>
    %cst_93 = arith.constant 1.000000e+00 : f32
    %343 = vector.broadcast %cst_93 : f32 to vector<2x16xf32>
    %344 = arith.addf %343, %342 : vector<2x16xf32>
    %cst_94 = arith.constant 1.000000e+00 : f32
    %345 = vector.broadcast %cst_94 : f32 to vector<2x16xf32>
    %346 = arith.divf %345, %344 : vector<2x16xf32>
    %347 = vector.extract_strided_slice %323 {offsets = [0, 32], sizes = [2, 16], strides = [1, 1]} : vector<2x48xf32> to vector<2x16xf32>
    %348 = vector.extract_strided_slice %326 {offsets = [0, 32], sizes = [2, 16], strides = [1, 1]} : vector<2x48xf32> to vector<2x16xf32>
    %349 = arith.mulf %336, %348 : vector<2x16xf32>
    %350 = arith.addf %347, %349 : vector<2x16xf32>
    %351 = math.tanh %350 : vector<2x16xf32>
    %cst_95 = arith.constant 1.000000e+00 : f32
    %352 = vector.broadcast %cst_95 : f32 to vector<2x16xf32>
    %353 = arith.subf %352, %346 : vector<2x16xf32>
    %354 = arith.mulf %353, %351 : vector<2x16xf32>
    %355 = arith.mulf %346, %271 : vector<2x16xf32>
    %356 = arith.addf %354, %355 : vector<2x16xf32>
    %357 = vector.shape_cast %322 : vector<2x1xi1> to vector<2x1xi1>
    %358 = vector.broadcast %357 : vector<2x1xi1> to vector<2x16xi1>
    %359 = arith.select %358, %356, %271 : vector<2x16xi1>, vector<2x16xf32>
    %cst_96 = arith.constant 0.000000e+00 : f32
    %360 = vector.shape_cast %322 : vector<2x1xi1> to vector<2x1xi1>
    %361 = vector.broadcast %360 : vector<2x1xi1> to vector<2x16xi1>
    %362 = vector.broadcast %cst_96 : f32 to vector<2x16xf32>
    %363 = arith.select %361, %359, %362 : vector<2x16xi1>, vector<2x16xf32>
    %c8 = arith.constant 8 : index
    %c0_97 = arith.constant 0 : index
    %364 = vector.load %arg23[%c8, %c0_97] : memref<16x16xf32, #tpu.memory_space<vmem>>, vector<2x16xf32>
    tpu.vector_store %arg23[%c8, %c0_97], %363 {strides = array<i32>} : memref<16x16xf32, #tpu.memory_space<vmem>>, vector<2x16xf32>,
    %c4_i32_98 = arith.constant 4 : i32
    %365 = vector.broadcast %c4_i32_98 : i32 to vector<2x1xi32>
    %366 = arith.cmpi sgt, %6, %365 : vector<2x1xi32>
    %367 = vector.extract_strided_slice %5 {offsets = [8, 0], sizes = [2, 48], strides = [1, 1]} : vector<16x96xf32> to vector<2x48xf32>
    %cst_99 = arith.constant dense<0.000000e+00> : vector<2x48xf32>
    %368 = tpu.matmul %315, %7, %cst_99 {dimension_numbers = #tpu.dot_dimension_numbers<[1], [0], [0], [1], [0, 0, 1, 1], [], []>} : vector<2x16xf32>, vector<16x48xf32>, vector<2x48xf32> -> vector<2x48xf32>
    %369 = vector.broadcast %8 : vector<1x48xf32> to vector<2x48xf32>
    %370 = arith.addf %368, %369 : vector<2x48xf32>
    %371 = vector.extract_strided_slice %367 {offsets = [0, 0], sizes = [2, 16], strides = [1, 1]} : vector<2x48xf32> to vector<2x16xf32>
    %372 = vector.extract_strided_slice %370 {offsets = [0, 0], sizes = [2, 16], strides = [1, 1]} : vector<2x48xf32> to vector<2x16xf32>
    %373 = arith.addf %371, %372 : vector<2x16xf32>
    %cst_100 = arith.constant 0.000000e+00 : f32
    %374 = vector.broadcast %cst_100 : f32 to vector<2x16xf32>
    %375 = arith.subf %374, %373 : vector<2x16xf32>
    %376 = math.exp %375 : vector<2x16xf32>
    %cst_101 = arith.constant 1.000000e+00 : f32
    %377 = vector.broadcast %cst_101 : f32 to vector<2x16xf32>
    %378 = arith.addf %377, %376 : vector<2x16xf32>
    %cst_102 = arith.constant 1.000000e+00 : f32
    %379 = vector.broadcast %cst_102 : f32 to vector<2x16xf32>
    %380 = arith.divf %379, %378 : vector<2x16xf32>
    %381 = vector.extract_strided_slice %367 {offsets = [0, 16], sizes = [2, 16], strides = [1, 1]} : vector<2x48xf32> to vector<2x16xf32>
    %382 = vector.extract_strided_slice %370 {offsets = [0, 16], sizes = [2, 16], strides = [1, 1]} : vector<2x48xf32> to vector<2x16xf32>
    %383 = arith.addf %381, %382 : vector<2x16xf32>
    %cst_103 = arith.constant 0.000000e+00 : f32
    %384 = vector.broadcast %cst_103 : f32 to vector<2x16xf32>
    %385 = arith.subf %384, %383 : vector<2x16xf32>
    %386 = math.exp %385 : vector<2x16xf32>
    %cst_104 = arith.constant 1.000000e+00 : f32
    %387 = vector.broadcast %cst_104 : f32 to vector<2x16xf32>
    %388 = arith.addf %387, %386 : vector<2x16xf32>
    %cst_105 = arith.constant 1.000000e+00 : f32
    %389 = vector.broadcast %cst_105 : f32 to vector<2x16xf32>
    %390 = arith.divf %389, %388 : vector<2x16xf32>
    %391 = vector.extract_strided_slice %367 {offsets = [0, 32], sizes = [2, 16], strides = [1, 1]} : vector<2x48xf32> to vector<2x16xf32>
    %392 = vector.extract_strided_slice %370 {offsets = [0, 32], sizes = [2, 16], strides = [1, 1]} : vector<2x48xf32> to vector<2x16xf32>
    %393 = arith.mulf %380, %392 : vector<2x16xf32>
    %394 = arith.addf %391, %393 : vector<2x16xf32>
    %395 = math.tanh %394 : vector<2x16xf32>
    %cst_106 = arith.constant 1.000000e+00 : f32
    %396 = vector.broadcast %cst_106 : f32 to vector<2x16xf32>
    %397 = arith.subf %396, %390 : vector<2x16xf32>
    %398 = arith.mulf %397, %395 : vector<2x16xf32>
    %399 = arith.mulf %390, %315 : vector<2x16xf32>
    %400 = arith.addf %398, %399 : vector<2x16xf32>
    %401 = vector.shape_cast %366 : vector<2x1xi1> to vector<2x1xi1>
    %402 = vector.broadcast %401 : vector<2x1xi1> to vector<2x16xi1>
    %403 = arith.select %402, %400, %315 : vector<2x16xi1>, vector<2x16xf32>
    %cst_107 = arith.constant 0.000000e+00 : f32
    %404 = vector.shape_cast %366 : vector<2x1xi1> to vector<2x1xi1>
    %405 = vector.broadcast %404 : vector<2x1xi1> to vector<2x16xi1>
    %406 = vector.broadcast %cst_107 : f32 to vector<2x16xf32>
    %407 = arith.select %405, %403, %406 : vector<2x16xi1>, vector<2x16xf32>
    %c8_108 = arith.constant 8 : index
    %c0_109 = arith.constant 0 : index
    %408 = vector.load %arg22[%c8_108, %c0_109] : memref<16x16xf32, #tpu.memory_space<vmem>>, vector<2x16xf32>
    tpu.vector_store %arg22[%c8_108, %c0_109], %407 {strides = array<i32>} : memref<16x16xf32, #tpu.memory_space<vmem>>, vector<2x16xf32>,
    %c3_i32_110 = arith.constant 3 : i32
    %409 = vector.broadcast %c3_i32_110 : i32 to vector<2x1xi32>
    %410 = arith.cmpi sgt, %6, %409 : vector<2x1xi32>
    %411 = vector.extract_strided_slice %5 {offsets = [6, 48], sizes = [2, 48], strides = [1, 1]} : vector<16x96xf32> to vector<2x48xf32>
    %cst_111 = arith.constant dense<0.000000e+00> : vector<2x48xf32>
    %412 = tpu.matmul %359, %9, %cst_111 {dimension_numbers = #tpu.dot_dimension_numbers<[1], [0], [0], [1], [0, 0, 1, 1], [], []>} : vector<2x16xf32>, vector<16x48xf32>, vector<2x48xf32> -> vector<2x48xf32>
    %413 = vector.broadcast %10 : vector<1x48xf32> to vector<2x48xf32>
    %414 = arith.addf %412, %413 : vector<2x48xf32>
    %415 = vector.extract_strided_slice %411 {offsets = [0, 0], sizes = [2, 16], strides = [1, 1]} : vector<2x48xf32> to vector<2x16xf32>
    %416 = vector.extract_strided_slice %414 {offsets = [0, 0], sizes = [2, 16], strides = [1, 1]} : vector<2x48xf32> to vector<2x16xf32>
    %417 = arith.addf %415, %416 : vector<2x16xf32>
    %cst_112 = arith.constant 0.000000e+00 : f32
    %418 = vector.broadcast %cst_112 : f32 to vector<2x16xf32>
    %419 = arith.subf %418, %417 : vector<2x16xf32>
    %420 = math.exp %419 : vector<2x16xf32>
    %cst_113 = arith.constant 1.000000e+00 : f32
    %421 = vector.broadcast %cst_113 : f32 to vector<2x16xf32>
    %422 = arith.addf %421, %420 : vector<2x16xf32>
    %cst_114 = arith.constant 1.000000e+00 : f32
    %423 = vector.broadcast %cst_114 : f32 to vector<2x16xf32>
    %424 = arith.divf %423, %422 : vector<2x16xf32>
    %425 = vector.extract_strided_slice %411 {offsets = [0, 16], sizes = [2, 16], strides = [1, 1]} : vector<2x48xf32> to vector<2x16xf32>
    %426 = vector.extract_strided_slice %414 {offsets = [0, 16], sizes = [2, 16], strides = [1, 1]} : vector<2x48xf32> to vector<2x16xf32>
    %427 = arith.addf %425, %426 : vector<2x16xf32>
    %cst_115 = arith.constant 0.000000e+00 : f32
    %428 = vector.broadcast %cst_115 : f32 to vector<2x16xf32>
    %429 = arith.subf %428, %427 : vector<2x16xf32>
    %430 = math.exp %429 : vector<2x16xf32>
    %cst_116 = arith.constant 1.000000e+00 : f32
    %431 = vector.broadcast %cst_116 : f32 to vector<2x16xf32>
    %432 = arith.addf %431, %430 : vector<2x16xf32>
    %cst_117 = arith.constant 1.000000e+00 : f32
    %433 = vector.broadcast %cst_117 : f32 to vector<2x16xf32>
    %434 = arith.divf %433, %432 : vector<2x16xf32>
    %435 = vector.extract_strided_slice %411 {offsets = [0, 32], sizes = [2, 16], strides = [1, 1]} : vector<2x48xf32> to vector<2x16xf32>
    %436 = vector.extract_strided_slice %414 {offsets = [0, 32], sizes = [2, 16], strides = [1, 1]} : vector<2x48xf32> to vector<2x16xf32>
    %437 = arith.mulf %424, %436 : vector<2x16xf32>
    %438 = arith.addf %435, %437 : vector<2x16xf32>
    %439 = math.tanh %438 : vector<2x16xf32>
    %cst_118 = arith.constant 1.000000e+00 : f32
    %440 = vector.broadcast %cst_118 : f32 to vector<2x16xf32>
    %441 = arith.subf %440, %434 : vector<2x16xf32>
    %442 = arith.mulf %441, %439 : vector<2x16xf32>
    %443 = arith.mulf %434, %359 : vector<2x16xf32>
    %444 = arith.addf %442, %443 : vector<2x16xf32>
    %445 = vector.shape_cast %410 : vector<2x1xi1> to vector<2x1xi1>
    %446 = vector.broadcast %445 : vector<2x1xi1> to vector<2x16xi1>
    %447 = arith.select %446, %444, %359 : vector<2x16xi1>, vector<2x16xf32>
    %cst_119 = arith.constant 0.000000e+00 : f32
    %448 = vector.shape_cast %410 : vector<2x1xi1> to vector<2x1xi1>
    %449 = vector.broadcast %448 : vector<2x1xi1> to vector<2x16xi1>
    %450 = vector.broadcast %cst_119 : f32 to vector<2x16xf32>
    %451 = arith.select %449, %447, %450 : vector<2x16xi1>, vector<2x16xf32>
    %c6_120 = arith.constant 6 : index
    %c0_121 = arith.constant 0 : index
    %452 = vector.load %arg23[%c6_120, %c0_121] : memref<16x16xf32, #tpu.memory_space<vmem>>, vector<2x16xf32>
    tpu.vector_store %arg23[%c6_120, %c0_121], %451 {strides = array<i32>} : memref<16x16xf32, #tpu.memory_space<vmem>>, vector<2x16xf32>,
    %c5_i32_122 = arith.constant 5 : i32
    %453 = vector.broadcast %c5_i32_122 : i32 to vector<2x1xi32>
    %454 = arith.cmpi sgt, %6, %453 : vector<2x1xi32>
    %455 = vector.extract_strided_slice %5 {offsets = [10, 0], sizes = [2, 48], strides = [1, 1]} : vector<16x96xf32> to vector<2x48xf32>
    %cst_123 = arith.constant dense<0.000000e+00> : vector<2x48xf32>
    %456 = tpu.matmul %403, %7, %cst_123 {dimension_numbers = #tpu.dot_dimension_numbers<[1], [0], [0], [1], [0, 0, 1, 1], [], []>} : vector<2x16xf32>, vector<16x48xf32>, vector<2x48xf32> -> vector<2x48xf32>
    %457 = vector.broadcast %8 : vector<1x48xf32> to vector<2x48xf32>
    %458 = arith.addf %456, %457 : vector<2x48xf32>
    %459 = vector.extract_strided_slice %455 {offsets = [0, 0], sizes = [2, 16], strides = [1, 1]} : vector<2x48xf32> to vector<2x16xf32>
    %460 = vector.extract_strided_slice %458 {offsets = [0, 0], sizes = [2, 16], strides = [1, 1]} : vector<2x48xf32> to vector<2x16xf32>
    %461 = arith.addf %459, %460 : vector<2x16xf32>
    %cst_124 = arith.constant 0.000000e+00 : f32
    %462 = vector.broadcast %cst_124 : f32 to vector<2x16xf32>
    %463 = arith.subf %462, %461 : vector<2x16xf32>
    %464 = math.exp %463 : vector<2x16xf32>
    %cst_125 = arith.constant 1.000000e+00 : f32
    %465 = vector.broadcast %cst_125 : f32 to vector<2x16xf32>
    %466 = arith.addf %465, %464 : vector<2x16xf32>
    %cst_126 = arith.constant 1.000000e+00 : f32
    %467 = vector.broadcast %cst_126 : f32 to vector<2x16xf32>
    %468 = arith.divf %467, %466 : vector<2x16xf32>
    %469 = vector.extract_strided_slice %455 {offsets = [0, 16], sizes = [2, 16], strides = [1, 1]} : vector<2x48xf32> to vector<2x16xf32>
    %470 = vector.extract_strided_slice %458 {offsets = [0, 16], sizes = [2, 16], strides = [1, 1]} : vector<2x48xf32> to vector<2x16xf32>
    %471 = arith.addf %469, %470 : vector<2x16xf32>
    %cst_127 = arith.constant 0.000000e+00 : f32
    %472 = vector.broadcast %cst_127 : f32 to vector<2x16xf32>
    %473 = arith.subf %472, %471 : vector<2x16xf32>
    %474 = math.exp %473 : vector<2x16xf32>
    %cst_128 = arith.constant 1.000000e+00 : f32
    %475 = vector.broadcast %cst_128 : f32 to vector<2x16xf32>
    %476 = arith.addf %475, %474 : vector<2x16xf32>
    %cst_129 = arith.constant 1.000000e+00 : f32
    %477 = vector.broadcast %cst_129 : f32 to vector<2x16xf32>
    %478 = arith.divf %477, %476 : vector<2x16xf32>
    %479 = vector.extract_strided_slice %455 {offsets = [0, 32], sizes = [2, 16], strides = [1, 1]} : vector<2x48xf32> to vector<2x16xf32>
    %480 = vector.extract_strided_slice %458 {offsets = [0, 32], sizes = [2, 16], strides = [1, 1]} : vector<2x48xf32> to vector<2x16xf32>
    %481 = arith.mulf %468, %480 : vector<2x16xf32>
    %482 = arith.addf %479, %481 : vector<2x16xf32>
    %483 = math.tanh %482 : vector<2x16xf32>
    %cst_130 = arith.constant 1.000000e+00 : f32
    %484 = vector.broadcast %cst_130 : f32 to vector<2x16xf32>
    %485 = arith.subf %484, %478 : vector<2x16xf32>
    %486 = arith.mulf %485, %483 : vector<2x16xf32>
    %487 = arith.mulf %478, %403 : vector<2x16xf32>
    %488 = arith.addf %486, %487 : vector<2x16xf32>
    %489 = vector.shape_cast %454 : vector<2x1xi1> to vector<2x1xi1>
    %490 = vector.broadcast %489 : vector<2x1xi1> to vector<2x16xi1>
    %491 = arith.select %490, %488, %403 : vector<2x16xi1>, vector<2x16xf32>
    %cst_131 = arith.constant 0.000000e+00 : f32
    %492 = vector.shape_cast %454 : vector<2x1xi1> to vector<2x1xi1>
    %493 = vector.broadcast %492 : vector<2x1xi1> to vector<2x16xi1>
    %494 = vector.broadcast %cst_131 : f32 to vector<2x16xf32>
    %495 = arith.select %493, %491, %494 : vector<2x16xi1>, vector<2x16xf32>
    %c10_132 = arith.constant 10 : index
    %c0_133 = arith.constant 0 : index
    %496 = vector.load %arg22[%c10_132, %c0_133] : memref<16x16xf32, #tpu.memory_space<vmem>>, vector<2x16xf32>
    tpu.vector_store %arg22[%c10_132, %c0_133], %495 {strides = array<i32>} : memref<16x16xf32, #tpu.memory_space<vmem>>, vector<2x16xf32>,
    %c2_i32_134 = arith.constant 2 : i32
    %497 = vector.broadcast %c2_i32_134 : i32 to vector<2x1xi32>
    %498 = arith.cmpi sgt, %6, %497 : vector<2x1xi32>
    %499 = vector.extract_strided_slice %5 {offsets = [4, 48], sizes = [2, 48], strides = [1, 1]} : vector<16x96xf32> to vector<2x48xf32>
    %cst_135 = arith.constant dense<0.000000e+00> : vector<2x48xf32>
    %500 = tpu.matmul %447, %9, %cst_135 {dimension_numbers = #tpu.dot_dimension_numbers<[1], [0], [0], [1], [0, 0, 1, 1], [], []>} : vector<2x16xf32>, vector<16x48xf32>, vector<2x48xf32> -> vector<2x48xf32>
    %501 = vector.broadcast %10 : vector<1x48xf32> to vector<2x48xf32>
    %502 = arith.addf %500, %501 : vector<2x48xf32>
    %503 = vector.extract_strided_slice %499 {offsets = [0, 0], sizes = [2, 16], strides = [1, 1]} : vector<2x48xf32> to vector<2x16xf32>
    %504 = vector.extract_strided_slice %502 {offsets = [0, 0], sizes = [2, 16], strides = [1, 1]} : vector<2x48xf32> to vector<2x16xf32>
    %505 = arith.addf %503, %504 : vector<2x16xf32>
    %cst_136 = arith.constant 0.000000e+00 : f32
    %506 = vector.broadcast %cst_136 : f32 to vector<2x16xf32>
    %507 = arith.subf %506, %505 : vector<2x16xf32>
    %508 = math.exp %507 : vector<2x16xf32>
    %cst_137 = arith.constant 1.000000e+00 : f32
    %509 = vector.broadcast %cst_137 : f32 to vector<2x16xf32>
    %510 = arith.addf %509, %508 : vector<2x16xf32>
    %cst_138 = arith.constant 1.000000e+00 : f32
    %511 = vector.broadcast %cst_138 : f32 to vector<2x16xf32>
    %512 = arith.divf %511, %510 : vector<2x16xf32>
    %513 = vector.extract_strided_slice %499 {offsets = [0, 16], sizes = [2, 16], strides = [1, 1]} : vector<2x48xf32> to vector<2x16xf32>
    %514 = vector.extract_strided_slice %502 {offsets = [0, 16], sizes = [2, 16], strides = [1, 1]} : vector<2x48xf32> to vector<2x16xf32>
    %515 = arith.addf %513, %514 : vector<2x16xf32>
    %cst_139 = arith.constant 0.000000e+00 : f32
    %516 = vector.broadcast %cst_139 : f32 to vector<2x16xf32>
    %517 = arith.subf %516, %515 : vector<2x16xf32>
    %518 = math.exp %517 : vector<2x16xf32>
    %cst_140 = arith.constant 1.000000e+00 : f32
    %519 = vector.broadcast %cst_140 : f32 to vector<2x16xf32>
    %520 = arith.addf %519, %518 : vector<2x16xf32>
    %cst_141 = arith.constant 1.000000e+00 : f32
    %521 = vector.broadcast %cst_141 : f32 to vector<2x16xf32>
    %522 = arith.divf %521, %520 : vector<2x16xf32>
    %523 = vector.extract_strided_slice %499 {offsets = [0, 32], sizes = [2, 16], strides = [1, 1]} : vector<2x48xf32> to vector<2x16xf32>
    %524 = vector.extract_strided_slice %502 {offsets = [0, 32], sizes = [2, 16], strides = [1, 1]} : vector<2x48xf32> to vector<2x16xf32>
    %525 = arith.mulf %512, %524 : vector<2x16xf32>
    %526 = arith.addf %523, %525 : vector<2x16xf32>
    %527 = math.tanh %526 : vector<2x16xf32>
    %cst_142 = arith.constant 1.000000e+00 : f32
    %528 = vector.broadcast %cst_142 : f32 to vector<2x16xf32>
    %529 = arith.subf %528, %522 : vector<2x16xf32>
    %530 = arith.mulf %529, %527 : vector<2x16xf32>
    %531 = arith.mulf %522, %447 : vector<2x16xf32>
    %532 = arith.addf %530, %531 : vector<2x16xf32>
    %533 = vector.shape_cast %498 : vector<2x1xi1> to vector<2x1xi1>
    %534 = vector.broadcast %533 : vector<2x1xi1> to vector<2x16xi1>
    %535 = arith.select %534, %532, %447 : vector<2x16xi1>, vector<2x16xf32>
    %cst_143 = arith.constant 0.000000e+00 : f32
    %536 = vector.shape_cast %498 : vector<2x1xi1> to vector<2x1xi1>
    %537 = vector.broadcast %536 : vector<2x1xi1> to vector<2x16xi1>
    %538 = vector.broadcast %cst_143 : f32 to vector<2x16xf32>
    %539 = arith.select %537, %535, %538 : vector<2x16xi1>, vector<2x16xf32>
    %c4_144 = arith.constant 4 : index
    %c0_145 = arith.constant 0 : index
    %540 = vector.load %arg23[%c4_144, %c0_145] : memref<16x16xf32, #tpu.memory_space<vmem>>, vector<2x16xf32>
    tpu.vector_store %arg23[%c4_144, %c0_145], %539 {strides = array<i32>} : memref<16x16xf32, #tpu.memory_space<vmem>>, vector<2x16xf32>,
    %c6_i32_146 = arith.constant 6 : i32
    %541 = vector.broadcast %c6_i32_146 : i32 to vector<2x1xi32>
    %542 = arith.cmpi sgt, %6, %541 : vector<2x1xi32>
    %543 = vector.extract_strided_slice %5 {offsets = [12, 0], sizes = [2, 48], strides = [1, 1]} : vector<16x96xf32> to vector<2x48xf32>
    %cst_147 = arith.constant dense<0.000000e+00> : vector<2x48xf32>
    %544 = tpu.matmul %491, %7, %cst_147 {dimension_numbers = #tpu.dot_dimension_numbers<[1], [0], [0], [1], [0, 0, 1, 1], [], []>} : vector<2x16xf32>, vector<16x48xf32>, vector<2x48xf32> -> vector<2x48xf32>
    %545 = vector.broadcast %8 : vector<1x48xf32> to vector<2x48xf32>
    %546 = arith.addf %544, %545 : vector<2x48xf32>
    %547 = vector.extract_strided_slice %543 {offsets = [0, 0], sizes = [2, 16], strides = [1, 1]} : vector<2x48xf32> to vector<2x16xf32>
    %548 = vector.extract_strided_slice %546 {offsets = [0, 0], sizes = [2, 16], strides = [1, 1]} : vector<2x48xf32> to vector<2x16xf32>
    %549 = arith.addf %547, %548 : vector<2x16xf32>
    %cst_148 = arith.constant 0.000000e+00 : f32
    %550 = vector.broadcast %cst_148 : f32 to vector<2x16xf32>
    %551 = arith.subf %550, %549 : vector<2x16xf32>
    %552 = math.exp %551 : vector<2x16xf32>
    %cst_149 = arith.constant 1.000000e+00 : f32
    %553 = vector.broadcast %cst_149 : f32 to vector<2x16xf32>
    %554 = arith.addf %553, %552 : vector<2x16xf32>
    %cst_150 = arith.constant 1.000000e+00 : f32
    %555 = vector.broadcast %cst_150 : f32 to vector<2x16xf32>
    %556 = arith.divf %555, %554 : vector<2x16xf32>
    %557 = vector.extract_strided_slice %543 {offsets = [0, 16], sizes = [2, 16], strides = [1, 1]} : vector<2x48xf32> to vector<2x16xf32>
    %558 = vector.extract_strided_slice %546 {offsets = [0, 16], sizes = [2, 16], strides = [1, 1]} : vector<2x48xf32> to vector<2x16xf32>
    %559 = arith.addf %557, %558 : vector<2x16xf32>
    %cst_151 = arith.constant 0.000000e+00 : f32
    %560 = vector.broadcast %cst_151 : f32 to vector<2x16xf32>
    %561 = arith.subf %560, %559 : vector<2x16xf32>
    %562 = math.exp %561 : vector<2x16xf32>
    %cst_152 = arith.constant 1.000000e+00 : f32
    %563 = vector.broadcast %cst_152 : f32 to vector<2x16xf32>
    %564 = arith.addf %563, %562 : vector<2x16xf32>
    %cst_153 = arith.constant 1.000000e+00 : f32
    %565 = vector.broadcast %cst_153 : f32 to vector<2x16xf32>
    %566 = arith.divf %565, %564 : vector<2x16xf32>
    %567 = vector.extract_strided_slice %543 {offsets = [0, 32], sizes = [2, 16], strides = [1, 1]} : vector<2x48xf32> to vector<2x16xf32>
    %568 = vector.extract_strided_slice %546 {offsets = [0, 32], sizes = [2, 16], strides = [1, 1]} : vector<2x48xf32> to vector<2x16xf32>
    %569 = arith.mulf %556, %568 : vector<2x16xf32>
    %570 = arith.addf %567, %569 : vector<2x16xf32>
    %571 = math.tanh %570 : vector<2x16xf32>
    %cst_154 = arith.constant 1.000000e+00 : f32
    %572 = vector.broadcast %cst_154 : f32 to vector<2x16xf32>
    %573 = arith.subf %572, %566 : vector<2x16xf32>
    %574 = arith.mulf %573, %571 : vector<2x16xf32>
    %575 = arith.mulf %566, %491 : vector<2x16xf32>
    %576 = arith.addf %574, %575 : vector<2x16xf32>
    %577 = vector.shape_cast %542 : vector<2x1xi1> to vector<2x1xi1>
    %578 = vector.broadcast %577 : vector<2x1xi1> to vector<2x16xi1>
    %579 = arith.select %578, %576, %491 : vector<2x16xi1>, vector<2x16xf32>
    %cst_155 = arith.constant 0.000000e+00 : f32
    %580 = vector.shape_cast %542 : vector<2x1xi1> to vector<2x1xi1>
    %581 = vector.broadcast %580 : vector<2x1xi1> to vector<2x16xi1>
    %582 = vector.broadcast %cst_155 : f32 to vector<2x16xf32>
    %583 = arith.select %581, %579, %582 : vector<2x16xi1>, vector<2x16xf32>
    %c12_156 = arith.constant 12 : index
    %c0_157 = arith.constant 0 : index
    %584 = vector.load %arg22[%c12_156, %c0_157] : memref<16x16xf32, #tpu.memory_space<vmem>>, vector<2x16xf32>
    tpu.vector_store %arg22[%c12_156, %c0_157], %583 {strides = array<i32>} : memref<16x16xf32, #tpu.memory_space<vmem>>, vector<2x16xf32>,
    %c1_i32_158 = arith.constant 1 : i32
    %585 = vector.broadcast %c1_i32_158 : i32 to vector<2x1xi32>
    %586 = arith.cmpi sgt, %6, %585 : vector<2x1xi32>
    %587 = vector.extract_strided_slice %5 {offsets = [2, 48], sizes = [2, 48], strides = [1, 1]} : vector<16x96xf32> to vector<2x48xf32>
    %cst_159 = arith.constant dense<0.000000e+00> : vector<2x48xf32>
    %588 = tpu.matmul %535, %9, %cst_159 {dimension_numbers = #tpu.dot_dimension_numbers<[1], [0], [0], [1], [0, 0, 1, 1], [], []>} : vector<2x16xf32>, vector<16x48xf32>, vector<2x48xf32> -> vector<2x48xf32>
    %589 = vector.broadcast %10 : vector<1x48xf32> to vector<2x48xf32>
    %590 = arith.addf %588, %589 : vector<2x48xf32>
    %591 = vector.extract_strided_slice %587 {offsets = [0, 0], sizes = [2, 16], strides = [1, 1]} : vector<2x48xf32> to vector<2x16xf32>
    %592 = vector.extract_strided_slice %590 {offsets = [0, 0], sizes = [2, 16], strides = [1, 1]} : vector<2x48xf32> to vector<2x16xf32>
    %593 = arith.addf %591, %592 : vector<2x16xf32>
    %cst_160 = arith.constant 0.000000e+00 : f32
    %594 = vector.broadcast %cst_160 : f32 to vector<2x16xf32>
    %595 = arith.subf %594, %593 : vector<2x16xf32>
    %596 = math.exp %595 : vector<2x16xf32>
    %cst_161 = arith.constant 1.000000e+00 : f32
    %597 = vector.broadcast %cst_161 : f32 to vector<2x16xf32>
    %598 = arith.addf %597, %596 : vector<2x16xf32>
    %cst_162 = arith.constant 1.000000e+00 : f32
    %599 = vector.broadcast %cst_162 : f32 to vector<2x16xf32>
    %600 = arith.divf %599, %598 : vector<2x16xf32>
    %601 = vector.extract_strided_slice %587 {offsets = [0, 16], sizes = [2, 16], strides = [1, 1]} : vector<2x48xf32> to vector<2x16xf32>
    %602 = vector.extract_strided_slice %590 {offsets = [0, 16], sizes = [2, 16], strides = [1, 1]} : vector<2x48xf32> to vector<2x16xf32>
    %603 = arith.addf %601, %602 : vector<2x16xf32>
    %cst_163 = arith.constant 0.000000e+00 : f32
    %604 = vector.broadcast %cst_163 : f32 to vector<2x16xf32>
    %605 = arith.subf %604, %603 : vector<2x16xf32>
    %606 = math.exp %605 : vector<2x16xf32>
    %cst_164 = arith.constant 1.000000e+00 : f32
    %607 = vector.broadcast %cst_164 : f32 to vector<2x16xf32>
    %608 = arith.addf %607, %606 : vector<2x16xf32>
    %cst_165 = arith.constant 1.000000e+00 : f32
    %609 = vector.broadcast %cst_165 : f32 to vector<2x16xf32>
    %610 = arith.divf %609, %608 : vector<2x16xf32>
    %611 = vector.extract_strided_slice %587 {offsets = [0, 32], sizes = [2, 16], strides = [1, 1]} : vector<2x48xf32> to vector<2x16xf32>
    %612 = vector.extract_strided_slice %590 {offsets = [0, 32], sizes = [2, 16], strides = [1, 1]} : vector<2x48xf32> to vector<2x16xf32>
    %613 = arith.mulf %600, %612 : vector<2x16xf32>
    %614 = arith.addf %611, %613 : vector<2x16xf32>
    %615 = math.tanh %614 : vector<2x16xf32>
    %cst_166 = arith.constant 1.000000e+00 : f32
    %616 = vector.broadcast %cst_166 : f32 to vector<2x16xf32>
    %617 = arith.subf %616, %610 : vector<2x16xf32>
    %618 = arith.mulf %617, %615 : vector<2x16xf32>
    %619 = arith.mulf %610, %535 : vector<2x16xf32>
    %620 = arith.addf %618, %619 : vector<2x16xf32>
    %621 = vector.shape_cast %586 : vector<2x1xi1> to vector<2x1xi1>
    %622 = vector.broadcast %621 : vector<2x1xi1> to vector<2x16xi1>
    %623 = arith.select %622, %620, %535 : vector<2x16xi1>, vector<2x16xf32>
    %cst_167 = arith.constant 0.000000e+00 : f32
    %624 = vector.shape_cast %586 : vector<2x1xi1> to vector<2x1xi1>
    %625 = vector.broadcast %624 : vector<2x1xi1> to vector<2x16xi1>
    %626 = vector.broadcast %cst_167 : f32 to vector<2x16xf32>
    %627 = arith.select %625, %623, %626 : vector<2x16xi1>, vector<2x16xf32>
    %c2_168 = arith.constant 2 : index
    %c0_169 = arith.constant 0 : index
    %628 = vector.load %arg23[%c2_168, %c0_169] : memref<16x16xf32, #tpu.memory_space<vmem>>, vector<2x16xf32>
    tpu.vector_store %arg23[%c2_168, %c0_169], %627 {strides = array<i32>} : memref<16x16xf32, #tpu.memory_space<vmem>>, vector<2x16xf32>,
    %c7_i32_170 = arith.constant 7 : i32
    %629 = vector.broadcast %c7_i32_170 : i32 to vector<2x1xi32>
    %630 = arith.cmpi sgt, %6, %629 : vector<2x1xi32>
    %631 = vector.extract_strided_slice %5 {offsets = [14, 0], sizes = [2, 48], strides = [1, 1]} : vector<16x96xf32> to vector<2x48xf32>
    %cst_171 = arith.constant dense<0.000000e+00> : vector<2x48xf32>
    %632 = tpu.matmul %579, %7, %cst_171 {dimension_numbers = #tpu.dot_dimension_numbers<[1], [0], [0], [1], [0, 0, 1, 1], [], []>} : vector<2x16xf32>, vector<16x48xf32>, vector<2x48xf32> -> vector<2x48xf32>
    %633 = vector.broadcast %8 : vector<1x48xf32> to vector<2x48xf32>
    %634 = arith.addf %632, %633 : vector<2x48xf32>
    %635 = vector.extract_strided_slice %631 {offsets = [0, 0], sizes = [2, 16], strides = [1, 1]} : vector<2x48xf32> to vector<2x16xf32>
    %636 = vector.extract_strided_slice %634 {offsets = [0, 0], sizes = [2, 16], strides = [1, 1]} : vector<2x48xf32> to vector<2x16xf32>
    %637 = arith.addf %635, %636 : vector<2x16xf32>
    %cst_172 = arith.constant 0.000000e+00 : f32
    %638 = vector.broadcast %cst_172 : f32 to vector<2x16xf32>
    %639 = arith.subf %638, %637 : vector<2x16xf32>
    %640 = math.exp %639 : vector<2x16xf32>
    %cst_173 = arith.constant 1.000000e+00 : f32
    %641 = vector.broadcast %cst_173 : f32 to vector<2x16xf32>
    %642 = arith.addf %641, %640 : vector<2x16xf32>
    %cst_174 = arith.constant 1.000000e+00 : f32
    %643 = vector.broadcast %cst_174 : f32 to vector<2x16xf32>
    %644 = arith.divf %643, %642 : vector<2x16xf32>
    %645 = vector.extract_strided_slice %631 {offsets = [0, 16], sizes = [2, 16], strides = [1, 1]} : vector<2x48xf32> to vector<2x16xf32>
    %646 = vector.extract_strided_slice %634 {offsets = [0, 16], sizes = [2, 16], strides = [1, 1]} : vector<2x48xf32> to vector<2x16xf32>
    %647 = arith.addf %645, %646 : vector<2x16xf32>
    %cst_175 = arith.constant 0.000000e+00 : f32
    %648 = vector.broadcast %cst_175 : f32 to vector<2x16xf32>
    %649 = arith.subf %648, %647 : vector<2x16xf32>
    %650 = math.exp %649 : vector<2x16xf32>
    %cst_176 = arith.constant 1.000000e+00 : f32
    %651 = vector.broadcast %cst_176 : f32 to vector<2x16xf32>
    %652 = arith.addf %651, %650 : vector<2x16xf32>
    %cst_177 = arith.constant 1.000000e+00 : f32
    %653 = vector.broadcast %cst_177 : f32 to vector<2x16xf32>
    %654 = arith.divf %653, %652 : vector<2x16xf32>
    %655 = vector.extract_strided_slice %631 {offsets = [0, 32], sizes = [2, 16], strides = [1, 1]} : vector<2x48xf32> to vector<2x16xf32>
    %656 = vector.extract_strided_slice %634 {offsets = [0, 32], sizes = [2, 16], strides = [1, 1]} : vector<2x48xf32> to vector<2x16xf32>
    %657 = arith.mulf %644, %656 : vector<2x16xf32>
    %658 = arith.addf %655, %657 : vector<2x16xf32>
    %659 = math.tanh %658 : vector<2x16xf32>
    %cst_178 = arith.constant 1.000000e+00 : f32
    %660 = vector.broadcast %cst_178 : f32 to vector<2x16xf32>
    %661 = arith.subf %660, %654 : vector<2x16xf32>
    %662 = arith.mulf %661, %659 : vector<2x16xf32>
    %663 = arith.mulf %654, %579 : vector<2x16xf32>
    %664 = arith.addf %662, %663 : vector<2x16xf32>
    %665 = vector.shape_cast %630 : vector<2x1xi1> to vector<2x1xi1>
    %666 = vector.broadcast %665 : vector<2x1xi1> to vector<2x16xi1>
    %667 = arith.select %666, %664, %579 : vector<2x16xi1>, vector<2x16xf32>
    %cst_179 = arith.constant 0.000000e+00 : f32
    %668 = vector.shape_cast %630 : vector<2x1xi1> to vector<2x1xi1>
    %669 = vector.broadcast %668 : vector<2x1xi1> to vector<2x16xi1>
    %670 = vector.broadcast %cst_179 : f32 to vector<2x16xf32>
    %671 = arith.select %669, %667, %670 : vector<2x16xi1>, vector<2x16xf32>
    %c14_180 = arith.constant 14 : index
    %c0_181 = arith.constant 0 : index
    %672 = vector.load %arg22[%c14_180, %c0_181] : memref<16x16xf32, #tpu.memory_space<vmem>>, vector<2x16xf32>
    tpu.vector_store %arg22[%c14_180, %c0_181], %671 {strides = array<i32>} : memref<16x16xf32, #tpu.memory_space<vmem>>, vector<2x16xf32>,
    %c0_i32_182 = arith.constant 0 : i32
    %673 = vector.broadcast %c0_i32_182 : i32 to vector<2x1xi32>
    %674 = arith.cmpi sgt, %6, %673 : vector<2x1xi32>
    %675 = vector.extract_strided_slice %5 {offsets = [0, 48], sizes = [2, 48], strides = [1, 1]} : vector<16x96xf32> to vector<2x48xf32>
    %cst_183 = arith.constant dense<0.000000e+00> : vector<2x48xf32>
    %676 = tpu.matmul %623, %9, %cst_183 {dimension_numbers = #tpu.dot_dimension_numbers<[1], [0], [0], [1], [0, 0, 1, 1], [], []>} : vector<2x16xf32>, vector<16x48xf32>, vector<2x48xf32> -> vector<2x48xf32>
    %677 = vector.broadcast %10 : vector<1x48xf32> to vector<2x48xf32>
    %678 = arith.addf %676, %677 : vector<2x48xf32>
    %679 = vector.extract_strided_slice %675 {offsets = [0, 0], sizes = [2, 16], strides = [1, 1]} : vector<2x48xf32> to vector<2x16xf32>
    %680 = vector.extract_strided_slice %678 {offsets = [0, 0], sizes = [2, 16], strides = [1, 1]} : vector<2x48xf32> to vector<2x16xf32>
    %681 = arith.addf %679, %680 : vector<2x16xf32>
    %cst_184 = arith.constant 0.000000e+00 : f32
    %682 = vector.broadcast %cst_184 : f32 to vector<2x16xf32>
    %683 = arith.subf %682, %681 : vector<2x16xf32>
    %684 = math.exp %683 : vector<2x16xf32>
    %cst_185 = arith.constant 1.000000e+00 : f32
    %685 = vector.broadcast %cst_185 : f32 to vector<2x16xf32>
    %686 = arith.addf %685, %684 : vector<2x16xf32>
    %cst_186 = arith.constant 1.000000e+00 : f32
    %687 = vector.broadcast %cst_186 : f32 to vector<2x16xf32>
    %688 = arith.divf %687, %686 : vector<2x16xf32>
    %689 = vector.extract_strided_slice %675 {offsets = [0, 16], sizes = [2, 16], strides = [1, 1]} : vector<2x48xf32> to vector<2x16xf32>
    %690 = vector.extract_strided_slice %678 {offsets = [0, 16], sizes = [2, 16], strides = [1, 1]} : vector<2x48xf32> to vector<2x16xf32>
    %691 = arith.addf %689, %690 : vector<2x16xf32>
    %cst_187 = arith.constant 0.000000e+00 : f32
    %692 = vector.broadcast %cst_187 : f32 to vector<2x16xf32>
    %693 = arith.subf %692, %691 : vector<2x16xf32>
    %694 = math.exp %693 : vector<2x16xf32>
    %cst_188 = arith.constant 1.000000e+00 : f32
    %695 = vector.broadcast %cst_188 : f32 to vector<2x16xf32>
    %696 = arith.addf %695, %694 : vector<2x16xf32>
    %cst_189 = arith.constant 1.000000e+00 : f32
    %697 = vector.broadcast %cst_189 : f32 to vector<2x16xf32>
    %698 = arith.divf %697, %696 : vector<2x16xf32>
    %699 = vector.extract_strided_slice %675 {offsets = [0, 32], sizes = [2, 16], strides = [1, 1]} : vector<2x48xf32> to vector<2x16xf32>
    %700 = vector.extract_strided_slice %678 {offsets = [0, 32], sizes = [2, 16], strides = [1, 1]} : vector<2x48xf32> to vector<2x16xf32>
    %701 = arith.mulf %688, %700 : vector<2x16xf32>
    %702 = arith.addf %699, %701 : vector<2x16xf32>
    %703 = math.tanh %702 : vector<2x16xf32>
    %cst_190 = arith.constant 1.000000e+00 : f32
    %704 = vector.broadcast %cst_190 : f32 to vector<2x16xf32>
    %705 = arith.subf %704, %698 : vector<2x16xf32>
    %706 = arith.mulf %705, %703 : vector<2x16xf32>
    %707 = arith.mulf %698, %623 : vector<2x16xf32>
    %708 = arith.addf %706, %707 : vector<2x16xf32>
    %709 = vector.shape_cast %674 : vector<2x1xi1> to vector<2x1xi1>
    %710 = vector.broadcast %709 : vector<2x1xi1> to vector<2x16xi1>
    %711 = arith.select %710, %708, %623 : vector<2x16xi1>, vector<2x16xf32>
    %cst_191 = arith.constant 0.000000e+00 : f32
    %712 = vector.shape_cast %674 : vector<2x1xi1> to vector<2x1xi1>
    %713 = vector.broadcast %712 : vector<2x1xi1> to vector<2x16xi1>
    %714 = vector.broadcast %cst_191 : f32 to vector<2x16xf32>
    %715 = arith.select %713, %711, %714 : vector<2x16xi1>, vector<2x16xf32>
    %c0_192 = arith.constant 0 : index
    %c0_193 = arith.constant 0 : index
    %716 = vector.load %arg23[%c0_192, %c0_193] : memref<16x16xf32, #tpu.memory_space<vmem>>, vector<2x16xf32>
    tpu.vector_store %arg23[%c0_192, %c0_193], %715 {strides = array<i32>} : memref<16x16xf32, #tpu.memory_space<vmem>>, vector<2x16xf32>,
    %c0_194 = arith.constant 0 : index
    %c0_195 = arith.constant 0 : index
    %717 = vector.load %arg22[%c0_194, %c0_195] : memref<16x16xf32, #tpu.memory_space<vmem>>, vector<16x16xf32>
    %c0_196 = arith.constant 0 : index
    %c0_197 = arith.constant 0 : index
    %718 = vector.load %arg23[%c0_196, %c0_197] : memref<16x16xf32, #tpu.memory_space<vmem>>, vector<16x16xf32>
    %719 = tpu.concatenate %717, %718 in 1 : vector<16x16xf32>, vector<16x16xf32> -> vector<16x32xf32>
    %c0_198 = arith.constant 0 : index
    %c0_199 = arith.constant 0 : index
    %c0_200 = arith.constant 0 : index
    %720 = vector.load %arg8[%c0_198, %c0_199, %c0_200] : memref<3x32x32xf32, #tpu.memory_space<vmem>>, vector<1x32x32xf32>
    %721 = vector.shape_cast %720 : vector<1x32x32xf32> to vector<32x32xf32>
    %cst_201 = arith.constant dense<0.000000e+00> : vector<16x32xf32>
    %722 = tpu.matmul %719, %721, %cst_201 {dimension_numbers = #tpu.dot_dimension_numbers<[1], [0], [0], [1], [0, 0, 1, 1], [], []>} : vector<16x32xf32>, vector<32x32xf32>, vector<16x32xf32> -> vector<16x32xf32>
    %c0_202 = arith.constant 0 : index
    %c0_203 = arith.constant 0 : index
    %723 = vector.load %arg9[%c0_202, %c0_203] : memref<1x32xf32, #tpu.memory_space<vmem>>, vector<1x32xf32>
    %724 = vector.broadcast %723 : vector<1x32xf32> to vector<16x32xf32>
    %725 = arith.addf %722, %724 : vector<16x32xf32>
    %726 = vector.extract_strided_slice %719 {offsets = [0, 0], sizes = [14, 32], strides = [1, 1]} : vector<16x32xf32> to vector<14x32xf32>
    %c1 = arith.constant 1 : index
    %c0_204 = arith.constant 0 : index
    %c0_205 = arith.constant 0 : index
    %727 = vector.load %arg8[%c1, %c0_204, %c0_205] : memref<3x32x32xf32, #tpu.memory_space<vmem>>, vector<1x32x32xf32>
    %728 = vector.shape_cast %727 : vector<1x32x32xf32> to vector<32x32xf32>
    %cst_206 = arith.constant dense<0.000000e+00> : vector<14x32xf32>
    %729 = tpu.matmul %726, %728, %cst_206 {dimension_numbers = #tpu.dot_dimension_numbers<[1], [0], [0], [1], [0, 0, 1, 1], [], []>} : vector<14x32xf32>, vector<32x32xf32>, vector<14x32xf32> -> vector<14x32xf32>
    %cst_207 = arith.constant 0.000000e+00 : f32
    %730 = vector.broadcast %cst_207 : f32 to vector<2x32xf32>
    %731 = tpu.concatenate %730, %729 in 0 : vector<2x32xf32>, vector<14x32xf32> -> vector<16x32xf32>
    %732 = arith.addf %725, %731 : vector<16x32xf32>
    %733 = vector.extract_strided_slice %719 {offsets = [0, 0], sizes = [12, 32], strides = [1, 1]} : vector<16x32xf32> to vector<12x32xf32>
    %c2_208 = arith.constant 2 : index
    %c0_209 = arith.constant 0 : index
    %c0_210 = arith.constant 0 : index
    %734 = vector.load %arg8[%c2_208, %c0_209, %c0_210] : memref<3x32x32xf32, #tpu.memory_space<vmem>>, vector<1x32x32xf32>
    %735 = vector.shape_cast %734 : vector<1x32x32xf32> to vector<32x32xf32>
    %cst_211 = arith.constant dense<0.000000e+00> : vector<12x32xf32>
    %736 = tpu.matmul %733, %735, %cst_211 {dimension_numbers = #tpu.dot_dimension_numbers<[1], [0], [0], [1], [0, 0, 1, 1], [], []>} : vector<12x32xf32>, vector<32x32xf32>, vector<12x32xf32> -> vector<12x32xf32>
    %cst_212 = arith.constant 0.000000e+00 : f32
    %737 = vector.broadcast %cst_212 : f32 to vector<4x32xf32>
    %738 = tpu.concatenate %737, %736 in 0 : vector<4x32xf32>, vector<12x32xf32> -> vector<16x32xf32>
    %739 = arith.addf %732, %738 : vector<16x32xf32>
    %cst_213 = arith.constant 0.000000e+00 : f32
    %740 = vector.broadcast %cst_213 : f32 to vector<16x32xf32>
    %741 = arith.maximumf %739, %740 : vector<16x32xf32>
    %c0_214 = arith.constant 0 : index
    %c0_215 = arith.constant 0 : index
    %c0_216 = arith.constant 0 : index
    %742 = vector.load %arg10[%c0_214, %c0_215, %c0_216] : memref<3x32x32xf32, #tpu.memory_space<vmem>>, vector<1x32x32xf32>
    %743 = vector.shape_cast %742 : vector<1x32x32xf32> to vector<32x32xf32>
    %cst_217 = arith.constant dense<0.000000e+00> : vector<16x32xf32>
    %744 = tpu.matmul %741, %743, %cst_217 {dimension_numbers = #tpu.dot_dimension_numbers<[1], [0], [0], [1], [0, 0, 1, 1], [], []>} : vector<16x32xf32>, vector<32x32xf32>, vector<16x32xf32> -> vector<16x32xf32>
    %c0_218 = arith.constant 0 : index
    %c0_219 = arith.constant 0 : index
    %745 = vector.load %arg11[%c0_218, %c0_219] : memref<1x32xf32, #tpu.memory_space<vmem>>, vector<1x32xf32>
    %746 = vector.broadcast %745 : vector<1x32xf32> to vector<16x32xf32>
    %747 = arith.addf %744, %746 : vector<16x32xf32>
    %748 = vector.extract_strided_slice %741 {offsets = [0, 0], sizes = [14, 32], strides = [1, 1]} : vector<16x32xf32> to vector<14x32xf32>
    %c1_220 = arith.constant 1 : index
    %c0_221 = arith.constant 0 : index
    %c0_222 = arith.constant 0 : index
    %749 = vector.load %arg10[%c1_220, %c0_221, %c0_222] : memref<3x32x32xf32, #tpu.memory_space<vmem>>, vector<1x32x32xf32>
    %750 = vector.shape_cast %749 : vector<1x32x32xf32> to vector<32x32xf32>
    %cst_223 = arith.constant dense<0.000000e+00> : vector<14x32xf32>
    %751 = tpu.matmul %748, %750, %cst_223 {dimension_numbers = #tpu.dot_dimension_numbers<[1], [0], [0], [1], [0, 0, 1, 1], [], []>} : vector<14x32xf32>, vector<32x32xf32>, vector<14x32xf32> -> vector<14x32xf32>
    %cst_224 = arith.constant 0.000000e+00 : f32
    %752 = vector.broadcast %cst_224 : f32 to vector<2x32xf32>
    %753 = tpu.concatenate %752, %751 in 0 : vector<2x32xf32>, vector<14x32xf32> -> vector<16x32xf32>
    %754 = arith.addf %747, %753 : vector<16x32xf32>
    %755 = vector.extract_strided_slice %741 {offsets = [0, 0], sizes = [12, 32], strides = [1, 1]} : vector<16x32xf32> to vector<12x32xf32>
    %c2_225 = arith.constant 2 : index
    %c0_226 = arith.constant 0 : index
    %c0_227 = arith.constant 0 : index
    %756 = vector.load %arg10[%c2_225, %c0_226, %c0_227] : memref<3x32x32xf32, #tpu.memory_space<vmem>>, vector<1x32x32xf32>
    %757 = vector.shape_cast %756 : vector<1x32x32xf32> to vector<32x32xf32>
    %cst_228 = arith.constant dense<0.000000e+00> : vector<12x32xf32>
    %758 = tpu.matmul %755, %757, %cst_228 {dimension_numbers = #tpu.dot_dimension_numbers<[1], [0], [0], [1], [0, 0, 1, 1], [], []>} : vector<12x32xf32>, vector<32x32xf32>, vector<12x32xf32> -> vector<12x32xf32>
    %cst_229 = arith.constant 0.000000e+00 : f32
    %759 = vector.broadcast %cst_229 : f32 to vector<4x32xf32>
    %760 = tpu.concatenate %759, %758 in 0 : vector<4x32xf32>, vector<12x32xf32> -> vector<16x32xf32>
    %761 = arith.addf %754, %760 : vector<16x32xf32>
    %cst_230 = arith.constant 0.000000e+00 : f32
    %762 = vector.broadcast %cst_230 : f32 to vector<16x32xf32>
    %763 = arith.maximumf %761, %762 : vector<16x32xf32>
    %764 = arith.addf %763, %719 : vector<16x32xf32>
    %cst_231 = arith.constant 0.000000e+00 : f32
    %765 = vector.broadcast %cst_231 : f32 to vector<16x32xf32>
    %766 = arith.maximumf %764, %765 : vector<16x32xf32>
    %c0_232 = arith.constant 0 : index
    %c0_233 = arith.constant 0 : index
    %c0_234 = arith.constant 0 : index
    %767 = vector.load %arg12[%c0_232, %c0_233, %c0_234] : memref<3x32x64xf32, #tpu.memory_space<vmem>>, vector<1x32x64xf32>
    %768 = vector.shape_cast %767 : vector<1x32x64xf32> to vector<32x64xf32>
    %cst_235 = arith.constant dense<0.000000e+00> : vector<16x64xf32>
    %769 = tpu.matmul %766, %768, %cst_235 {dimension_numbers = #tpu.dot_dimension_numbers<[1], [0], [0], [1], [0, 0, 1, 1], [], []>} : vector<16x32xf32>, vector<32x64xf32>, vector<16x64xf32> -> vector<16x64xf32>
    %c0_236 = arith.constant 0 : index
    %c0_237 = arith.constant 0 : index
    %770 = vector.load %arg13[%c0_236, %c0_237] : memref<1x64xf32, #tpu.memory_space<vmem>>, vector<1x64xf32>
    %771 = vector.broadcast %770 : vector<1x64xf32> to vector<16x64xf32>
    %772 = arith.addf %769, %771 : vector<16x64xf32>
    %773 = vector.extract_strided_slice %766 {offsets = [0, 0], sizes = [12, 32], strides = [1, 1]} : vector<16x32xf32> to vector<12x32xf32>
    %c1_238 = arith.constant 1 : index
    %c0_239 = arith.constant 0 : index
    %c0_240 = arith.constant 0 : index
    %774 = vector.load %arg12[%c1_238, %c0_239, %c0_240] : memref<3x32x64xf32, #tpu.memory_space<vmem>>, vector<1x32x64xf32>
    %775 = vector.shape_cast %774 : vector<1x32x64xf32> to vector<32x64xf32>
    %cst_241 = arith.constant dense<0.000000e+00> : vector<12x64xf32>
    %776 = tpu.matmul %773, %775, %cst_241 {dimension_numbers = #tpu.dot_dimension_numbers<[1], [0], [0], [1], [0, 0, 1, 1], [], []>} : vector<12x32xf32>, vector<32x64xf32>, vector<12x64xf32> -> vector<12x64xf32>
    %cst_242 = arith.constant 0.000000e+00 : f32
    %777 = vector.broadcast %cst_242 : f32 to vector<4x64xf32>
    %778 = tpu.concatenate %777, %776 in 0 : vector<4x64xf32>, vector<12x64xf32> -> vector<16x64xf32>
    %779 = arith.addf %772, %778 : vector<16x64xf32>
    %780 = vector.extract_strided_slice %766 {offsets = [0, 0], sizes = [8, 32], strides = [1, 1]} : vector<16x32xf32> to vector<8x32xf32>
    %c2_243 = arith.constant 2 : index
    %c0_244 = arith.constant 0 : index
    %c0_245 = arith.constant 0 : index
    %781 = vector.load %arg12[%c2_243, %c0_244, %c0_245] : memref<3x32x64xf32, #tpu.memory_space<vmem>>, vector<1x32x64xf32>
    %782 = vector.shape_cast %781 : vector<1x32x64xf32> to vector<32x64xf32>
    %cst_246 = arith.constant dense<0.000000e+00> : vector<8x64xf32>
    %783 = tpu.matmul %780, %782, %cst_246 {dimension_numbers = #tpu.dot_dimension_numbers<[1], [0], [0], [1], [0, 0, 1, 1], [], []>} : vector<8x32xf32>, vector<32x64xf32>, vector<8x64xf32> -> vector<8x64xf32>
    %cst_247 = arith.constant 0.000000e+00 : f32
    %784 = vector.broadcast %cst_247 : f32 to vector<8x64xf32>
    %785 = tpu.concatenate %784, %783 in 0 : vector<8x64xf32>, vector<8x64xf32> -> vector<16x64xf32>
    %786 = arith.addf %779, %785 : vector<16x64xf32>
    %cst_248 = arith.constant 0.000000e+00 : f32
    %787 = vector.broadcast %cst_248 : f32 to vector<16x64xf32>
    %788 = arith.maximumf %786, %787 : vector<16x64xf32>
    %c0_249 = arith.constant 0 : index
    %c0_250 = arith.constant 0 : index
    %c0_251 = arith.constant 0 : index
    %789 = vector.load %arg14[%c0_249, %c0_250, %c0_251] : memref<3x64x64xf32, #tpu.memory_space<vmem>>, vector<1x64x64xf32>
    %790 = vector.shape_cast %789 : vector<1x64x64xf32> to vector<64x64xf32>
    %cst_252 = arith.constant dense<0.000000e+00> : vector<16x64xf32>
    %791 = tpu.matmul %788, %790, %cst_252 {dimension_numbers = #tpu.dot_dimension_numbers<[1], [0], [0], [1], [0, 0, 1, 1], [], []>} : vector<16x64xf32>, vector<64x64xf32>, vector<16x64xf32> -> vector<16x64xf32>
    %c0_253 = arith.constant 0 : index
    %c0_254 = arith.constant 0 : index
    %792 = vector.load %arg15[%c0_253, %c0_254] : memref<1x64xf32, #tpu.memory_space<vmem>>, vector<1x64xf32>
    %793 = vector.broadcast %792 : vector<1x64xf32> to vector<16x64xf32>
    %794 = arith.addf %791, %793 : vector<16x64xf32>
    %795 = vector.extract_strided_slice %788 {offsets = [0, 0], sizes = [12, 64], strides = [1, 1]} : vector<16x64xf32> to vector<12x64xf32>
    %c1_255 = arith.constant 1 : index
    %c0_256 = arith.constant 0 : index
    %c0_257 = arith.constant 0 : index
    %796 = vector.load %arg14[%c1_255, %c0_256, %c0_257] : memref<3x64x64xf32, #tpu.memory_space<vmem>>, vector<1x64x64xf32>
    %797 = vector.shape_cast %796 : vector<1x64x64xf32> to vector<64x64xf32>
    %cst_258 = arith.constant dense<0.000000e+00> : vector<12x64xf32>
    %798 = tpu.matmul %795, %797, %cst_258 {dimension_numbers = #tpu.dot_dimension_numbers<[1], [0], [0], [1], [0, 0, 1, 1], [], []>} : vector<12x64xf32>, vector<64x64xf32>, vector<12x64xf32> -> vector<12x64xf32>
    %cst_259 = arith.constant 0.000000e+00 : f32
    %799 = vector.broadcast %cst_259 : f32 to vector<4x64xf32>
    %800 = tpu.concatenate %799, %798 in 0 : vector<4x64xf32>, vector<12x64xf32> -> vector<16x64xf32>
    %801 = arith.addf %794, %800 : vector<16x64xf32>
    %802 = vector.extract_strided_slice %788 {offsets = [0, 0], sizes = [8, 64], strides = [1, 1]} : vector<16x64xf32> to vector<8x64xf32>
    %c2_260 = arith.constant 2 : index
    %c0_261 = arith.constant 0 : index
    %c0_262 = arith.constant 0 : index
    %803 = vector.load %arg14[%c2_260, %c0_261, %c0_262] : memref<3x64x64xf32, #tpu.memory_space<vmem>>, vector<1x64x64xf32>
    %804 = vector.shape_cast %803 : vector<1x64x64xf32> to vector<64x64xf32>
    %cst_263 = arith.constant dense<0.000000e+00> : vector<8x64xf32>
    %805 = tpu.matmul %802, %804, %cst_263 {dimension_numbers = #tpu.dot_dimension_numbers<[1], [0], [0], [1], [0, 0, 1, 1], [], []>} : vector<8x64xf32>, vector<64x64xf32>, vector<8x64xf32> -> vector<8x64xf32>
    %cst_264 = arith.constant 0.000000e+00 : f32
    %806 = vector.broadcast %cst_264 : f32 to vector<8x64xf32>
    %807 = tpu.concatenate %806, %805 in 0 : vector<8x64xf32>, vector<8x64xf32> -> vector<16x64xf32>
    %808 = arith.addf %801, %807 : vector<16x64xf32>
    %cst_265 = arith.constant 0.000000e+00 : f32
    %809 = vector.broadcast %cst_265 : f32 to vector<16x64xf32>
    %810 = arith.maximumf %808, %809 : vector<16x64xf32>
    %c0_266 = arith.constant 0 : index
    %c0_267 = arith.constant 0 : index
    %811 = vector.load %arg16[%c0_266, %c0_267] : memref<32x64xf32, #tpu.memory_space<vmem>>, vector<32x64xf32>
    %cst_268 = arith.constant dense<0.000000e+00> : vector<16x64xf32>
    %812 = tpu.matmul %766, %811, %cst_268 {dimension_numbers = #tpu.dot_dimension_numbers<[1], [0], [0], [1], [0, 0, 1, 1], [], []>} : vector<16x32xf32>, vector<32x64xf32>, vector<16x64xf32> -> vector<16x64xf32>
    %c0_269 = arith.constant 0 : index
    %c0_270 = arith.constant 0 : index
    %813 = vector.load %arg17[%c0_269, %c0_270] : memref<1x64xf32, #tpu.memory_space<vmem>>, vector<1x64xf32>
    %814 = vector.broadcast %813 : vector<1x64xf32> to vector<16x64xf32>
    %815 = arith.addf %812, %814 : vector<16x64xf32>
    %816 = arith.addf %810, %815 : vector<16x64xf32>
    %cst_271 = arith.constant 0.000000e+00 : f32
    %817 = vector.broadcast %cst_271 : f32 to vector<16x64xf32>
    %818 = arith.maximumf %816, %817 : vector<16x64xf32>
    %c0_272 = arith.constant 0 : index
    %c0_273 = arith.constant 0 : index
    %819 = vector.load %arg20[%c0_272, %c0_273] : memref<16x64xf32, #tpu.memory_space<vmem>>, vector<16x64xf32>
    tpu.vector_store %arg20[%c0_272, %c0_273], %818 {strides = array<i32>} : memref<16x64xf32, #tpu.memory_space<vmem>>, vector<16x64xf32>,
    %820 = tpu.concatenate %667, %711 in 1 : vector<2x16xf32>, vector<2x16xf32> -> vector<2x32xf32>
    %c0_274 = arith.constant 0 : index
    %c0_275 = arith.constant 0 : index
    %821 = vector.load %arg18[%c0_274, %c0_275] : memref<32x32xf32, #tpu.memory_space<vmem>>, vector<32x32xf32>
    %cst_276 = arith.constant dense<0.000000e+00> : vector<2x32xf32>
    %822 = tpu.matmul %820, %821, %cst_276 {dimension_numbers = #tpu.dot_dimension_numbers<[1], [0], [0], [1], [0, 0, 1, 1], [], []>} : vector<2x32xf32>, vector<32x32xf32>, vector<2x32xf32> -> vector<2x32xf32>
    %c0_277 = arith.constant 0 : index
    %c0_278 = arith.constant 0 : index
    %823 = vector.load %arg19[%c0_277, %c0_278] : memref<1x32xf32, #tpu.memory_space<vmem>>, vector<1x32xf32>
    %824 = vector.broadcast %823 : vector<1x32xf32> to vector<2x32xf32>
    %825 = arith.addf %822, %824 : vector<2x32xf32>
    %cst_279 = arith.constant 0.000000e+00 : f32
    %826 = vector.broadcast %cst_279 : f32 to vector<2x32xf32>
    %827 = arith.cmpf oge, %825, %826 : vector<2x32xf32>
    %cst_280 = arith.constant 0.00999999977 : f32
    %828 = vector.broadcast %cst_280 : f32 to vector<2x32xf32>
    %829 = arith.mulf %828, %825 : vector<2x32xf32>
    %830 = arith.select %827, %825, %829 : vector<2x32xi1>, vector<2x32xf32>
    %c0_281 = arith.constant 0 : index
    %c0_282 = arith.constant 0 : index
    %831 = vector.load %arg21[%c0_281, %c0_282] : memref<2x32xf32, #tpu.memory_space<vmem>>, vector<2x32xf32>
    tpu.vector_store %arg21[%c0_281, %c0_282], %830 {strides = array<i32>} : memref<2x32xf32, #tpu.memory_space<vmem>>, vector<2x32xf32>,
    return
  }
}

module attributes {stable_mosaic.version = 11 : i64} {
  func.func @_decoder_kernel(%arg0: memref<2x8x32xf32, #tpu.memory_space<vmem>>, %arg1: memref<2x32xf32, #tpu.memory_space<vmem>>, %arg2: memref<2x32xf32, #tpu.memory_space<vmem>>, %arg3: memref<2x8x1xf32, #tpu.memory_space<vmem>>, %arg4: memref<32x32xf32, #tpu.memory_space<vmem>>, %arg5: memref<32x32xf32, #tpu.memory_space<vmem>>, %arg6: memref<1x32xf32, #tpu.memory_space<vmem>>, %arg7: memref<1x1x32xf32, #tpu.memory_space<vmem>>, %arg8: memref<128x64xf32, #tpu.memory_space<vmem>>, %arg9: memref<1x64xf32, #tpu.memory_space<vmem>>, %arg10: memref<64x2xf32, #tpu.memory_space<vmem>>, %arg11: memref<1x2xf32, #tpu.memory_space<vmem>>, %arg12: memref<2x32xf32, #tpu.memory_space<vmem>>, %arg13: memref<16x2xf32, #tpu.memory_space<vmem>>) attributes {dimension_semantics = [], scalar_prefetch = 0 : i64, scratch_operands = 0 : i64, tpu.core_type = #tpu.core_type<tc>} {
    %c0 = arith.constant 0 : index
    %c0_0 = arith.constant 0 : index
    %c0_1 = arith.constant 0 : index
    %0 = vector.load %arg0[%c0, %c0_0, %c0_1] : memref<2x8x32xf32, #tpu.memory_space<vmem>>, vector<2x8x32xf32>
    %1 = vector.shape_cast %0 : vector<2x8x32xf32> to vector<16x32xf32>
    %c0_2 = arith.constant 0 : index
    %c0_3 = arith.constant 0 : index
    %2 = vector.load %arg1[%c0_2, %c0_3] : memref<2x32xf32, #tpu.memory_space<vmem>>, vector<2x32xf32>
    %c0_4 = arith.constant 0 : index
    %c0_5 = arith.constant 0 : index
    %3 = vector.load %arg2[%c0_4, %c0_5] : memref<2x32xf32, #tpu.memory_space<vmem>>, vector<2x32xf32>
    %c0_6 = arith.constant 0 : index
    %c0_7 = arith.constant 0 : index
    %4 = vector.load %arg5[%c0_6, %c0_7] : memref<32x32xf32, #tpu.memory_space<vmem>>, vector<32x32xf32>
    %cst = arith.constant dense<0.000000e+00> : vector<2x32xf32>
    %5 = tpu.matmul %3, %4, %cst {dimension_numbers = #tpu.dot_dimension_numbers<[1], [0], [0], [1], [0, 0, 1, 1], [], []>} : vector<2x32xf32>, vector<32x32xf32>, vector<2x32xf32> -> vector<2x32xf32>
    %c0_8 = arith.constant 0 : index
    %c0_9 = arith.constant 0 : index
    %6 = vector.load %arg6[%c0_8, %c0_9] : memref<1x32xf32, #tpu.memory_space<vmem>>, vector<1x32xf32>
    %7 = vector.broadcast %6 : vector<1x32xf32> to vector<2x32xf32>
    %8 = arith.addf %5, %7 : vector<2x32xf32>
    %c0_10 = arith.constant 0 : index
    %c0_11 = arith.constant 0 : index
    %9 = vector.load %arg4[%c0_10, %c0_11] : memref<32x32xf32, #tpu.memory_space<vmem>>, vector<32x32xf32>
    %cst_12 = arith.constant dense<0.000000e+00> : vector<16x32xf32>
    %10 = tpu.matmul %1, %9, %cst_12 {dimension_numbers = #tpu.dot_dimension_numbers<[1], [0], [0], [1], [0, 0, 1, 1], [], []>} : vector<16x32xf32>, vector<32x32xf32>, vector<16x32xf32> -> vector<16x32xf32>
    %11 = vector.shape_cast %10 : vector<16x32xf32> to vector<2x8x32xf32>
    %12 = vector.shape_cast %8 : vector<2x32xf32> to vector<2x1x32xf32>
    %13 = vector.broadcast %12 : vector<2x1x32xf32> to vector<2x8x32xf32>
    %14 = arith.addf %11, %13 : vector<2x8x32xf32>
    %15 = math.tanh %14 : vector<2x8x32xf32>
    %c0_13 = arith.constant 0 : index
    %c0_14 = arith.constant 0 : index
    %c0_15 = arith.constant 0 : index
    %16 = vector.load %arg7[%c0_13, %c0_14, %c0_15] : memref<1x1x32xf32, #tpu.memory_space<vmem>>, vector<1x1x32xf32>
    %17 = vector.broadcast %16 : vector<1x1x32xf32> to vector<2x8x32xf32>
    %18 = arith.mulf %15, %17 : vector<2x8x32xf32>
    %cst_16 = arith.constant dense<0.000000e+00> : vector<2x8xf32>
    %19 = vector.multi_reduction <add>, %18, %cst_16 [2] : vector<2x8x32xf32> to vector<2x8xf32>
    %20 = vector.shape_cast %19 : vector<2x8xf32> to vector<2x8x1xf32>
    %c0_17 = arith.constant 0 : index
    %c0_18 = arith.constant 0 : index
    %c0_19 = arith.constant 0 : index
    %21 = vector.load %arg3[%c0_17, %c0_18, %c0_19] : memref<2x8x1xf32, #tpu.memory_space<vmem>>, vector<2x8x1xf32>
    %22 = arith.addf %20, %21 : vector<2x8x1xf32>
    %cst_20 = arith.constant dense<0xFF800000> : vector<2x1xf32>
    %23 = vector.multi_reduction <maximumf>, %22, %cst_20 [1] : vector<2x8x1xf32> to vector<2x1xf32>
    %24 = vector.shape_cast %23 : vector<2x1xf32> to vector<2x1x1xf32>
    %25 = vector.broadcast %24 : vector<2x1x1xf32> to vector<2x8x1xf32>
    %26 = arith.subf %22, %25 : vector<2x8x1xf32>
    %27 = math.exp %26 : vector<2x8x1xf32>
    %cst_21 = arith.constant dense<0.000000e+00> : vector<2x1xf32>
    %28 = vector.multi_reduction <add>, %27, %cst_21 [1] : vector<2x8x1xf32> to vector<2x1xf32>
    %29 = vector.shape_cast %28 : vector<2x1xf32> to vector<2x1x1xf32>
    %30 = vector.broadcast %29 : vector<2x1x1xf32> to vector<2x8x1xf32>
    %31 = arith.divf %27, %30 : vector<2x8x1xf32>
    %32 = vector.broadcast %31 : vector<2x8x1xf32> to vector<2x8x32xf32>
    %33 = arith.mulf %32, %0 : vector<2x8x32xf32>
    %cst_22 = arith.constant dense<0.000000e+00> : vector<2x32xf32>
    %34 = vector.multi_reduction <add>, %33, %cst_22 [1] : vector<2x8x32xf32> to vector<2x32xf32>
    %c0_23 = arith.constant 0 : index
    %c0_24 = arith.constant 0 : index
    %35 = vector.load %arg12[%c0_23, %c0_24] : memref<2x32xf32, #tpu.memory_space<vmem>>, vector<2x32xf32>
    tpu.vector_store %arg12[%c0_23, %c0_24], %34 {strides = array<i32>} : memref<2x32xf32, #tpu.memory_space<vmem>>, vector<2x32xf32>,
    %c0_25 = arith.constant 0 : index
    %c0_26 = arith.constant 0 : index
    %36 = vector.load %arg8[%c0_25, %c0_26] : memref<128x64xf32, #tpu.memory_space<vmem>>, vector<32x64xf32>
    %c32 = arith.constant 32 : index
    %c0_27 = arith.constant 0 : index
    %37 = vector.load %arg8[%c32, %c0_27] : memref<128x64xf32, #tpu.memory_space<vmem>>, vector<32x64xf32>
    %c64 = arith.constant 64 : index
    %c0_28 = arith.constant 0 : index
    %38 = vector.load %arg8[%c64, %c0_28] : memref<128x64xf32, #tpu.memory_space<vmem>>, vector<32x64xf32>
    %c96 = arith.constant 96 : index
    %c0_29 = arith.constant 0 : index
    %39 = vector.load %arg8[%c96, %c0_29] : memref<128x64xf32, #tpu.memory_space<vmem>>, vector<32x64xf32>
    %cst_30 = arith.constant dense<0.000000e+00> : vector<2x64xf32>
    %40 = tpu.matmul %2, %37, %cst_30 {dimension_numbers = #tpu.dot_dimension_numbers<[1], [0], [0], [1], [0, 0, 1, 1], [], []>} : vector<2x32xf32>, vector<32x64xf32>, vector<2x64xf32> -> vector<2x64xf32>
    %cst_31 = arith.constant dense<0.000000e+00> : vector<2x64xf32>
    %41 = tpu.matmul %34, %38, %cst_31 {dimension_numbers = #tpu.dot_dimension_numbers<[1], [0], [0], [1], [0, 0, 1, 1], [], []>} : vector<2x32xf32>, vector<32x64xf32>, vector<2x64xf32> -> vector<2x64xf32>
    %42 = arith.addf %40, %41 : vector<2x64xf32>
    %cst_32 = arith.constant dense<0.000000e+00> : vector<2x64xf32>
    %43 = tpu.matmul %3, %39, %cst_32 {dimension_numbers = #tpu.dot_dimension_numbers<[1], [0], [0], [1], [0, 0, 1, 1], [], []>} : vector<2x32xf32>, vector<32x64xf32>, vector<2x64xf32> -> vector<2x64xf32>
    %44 = arith.addf %42, %43 : vector<2x64xf32>
    %c0_33 = arith.constant 0 : index
    %c0_34 = arith.constant 0 : index
    %45 = vector.load %arg9[%c0_33, %c0_34] : memref<1x64xf32, #tpu.memory_space<vmem>>, vector<1x64xf32>
    %46 = vector.broadcast %45 : vector<1x64xf32> to vector<2x64xf32>
    %47 = arith.addf %44, %46 : vector<2x64xf32>
    %cst_35 = arith.constant dense<0.000000e+00> : vector<16x64xf32>
    %48 = tpu.matmul %1, %36, %cst_35 {dimension_numbers = #tpu.dot_dimension_numbers<[1], [0], [0], [1], [0, 0, 1, 1], [], []>} : vector<16x32xf32>, vector<32x64xf32>, vector<16x64xf32> -> vector<16x64xf32>
    %49 = vector.shape_cast %48 : vector<16x64xf32> to vector<2x8x64xf32>
    %50 = vector.shape_cast %47 : vector<2x64xf32> to vector<2x1x64xf32>
    %51 = vector.broadcast %50 : vector<2x1x64xf32> to vector<2x8x64xf32>
    %52 = arith.addf %49, %51 : vector<2x8x64xf32>
    %53 = math.tanh %52 : vector<2x8x64xf32>
    %54 = vector.shape_cast %53 : vector<2x8x64xf32> to vector<16x64xf32>
    %c0_36 = arith.constant 0 : index
    %c0_37 = arith.constant 0 : index
    %55 = vector.load %arg10[%c0_36, %c0_37] : memref<64x2xf32, #tpu.memory_space<vmem>>, vector<64x2xf32>
    %cst_38 = arith.constant dense<0.000000e+00> : vector<16x2xf32>
    %56 = tpu.matmul %54, %55, %cst_38 {dimension_numbers = #tpu.dot_dimension_numbers<[1], [0], [0], [1], [0, 0, 1, 1], [], []>} : vector<16x64xf32>, vector<64x2xf32>, vector<16x2xf32> -> vector<16x2xf32>
    %c0_39 = arith.constant 0 : index
    %c0_40 = arith.constant 0 : index
    %57 = vector.load %arg11[%c0_39, %c0_40] : memref<1x2xf32, #tpu.memory_space<vmem>>, vector<1x2xf32>
    %58 = vector.broadcast %57 : vector<1x2xf32> to vector<16x2xf32>
    %59 = arith.addf %56, %58 : vector<16x2xf32>
    %c0_41 = arith.constant 0 : index
    %c0_42 = arith.constant 0 : index
    %60 = vector.load %arg13[%c0_41, %c0_42] : memref<16x2xf32, #tpu.memory_space<vmem>>, vector<16x2xf32>
    tpu.vector_store %arg13[%c0_41, %c0_42], %59 {strides = array<i32>} : memref<16x2xf32, #tpu.memory_space<vmem>>, vector<16x2xf32>,
    return
  }
}

</mosaic_0001>

<llo_original>
// kernel: squeeze.28
$region0: #{squeeze.28}
  %s0 = inlined_call_operand.vmem [shape: f32[16], index: 0, kind: input, shape index: {}]
  %s1 = inlined_call_operand.hbm [shape: f32[2,8], index: 1, kind: output, shape index: {}]
  $region1: #{squeeze.28} parent=0
    #allocation0 [shape = 'u8[1024]{0}', space=vmem, size = 0x400, scoped, tag = 'operand span for operand 1']
    #allocation1 [shape = 's32[1]{0}', space=sflag, size = 0x4, scoped, tag = 'scoped memory for squeeze.28']
    #allocation2 [shape = 'u8[4096]{0}', space=vmem, size = 0x1000, scoped, tag = 'scoped mem for output reshape']
    #allocation3 [shape = 'u8[4096]{0}', space=vmem, size = 0x1000, scoped, tag = 'scoped mem for input reshape']
    %2 = vsyncpa [#allocation1], 0
    %s4 = sshllo.u32 0, 1
    %v5 = vld [vmem:[%s0] sm:%s4]
    %6 = vst [vmem:[#allocation3] sm:%s4] %v5
    %v7 = vld [vmem:[#allocation3] sm:$0x1]
    %vm8 = vcmask 64512
    %9 = vst.msk [vmem:[#allocation2] sm:$0x1] %vm8, %v7
    %v10 = vld [vmem:[#allocation3] sm:$0x1]
    %11 = vrot.lane.b32.xlu0 %v10, 120
    %v12 = vpop.permute.xlu0 %11
    %vm13 = vcmask 64512
    %s14 = scalar_lea.vmem [#allocation2], 1
    %15 = vst.msk [vmem:[%s14] sm:$0x1] %vm13, %v12
    %s17 = sshllo.u32 0, 2
    %v19 = vld [vmem:[#allocation2] sm:%s17]
    %s20 = sshllo.u32 0, 2
    %21 = vst [vmem:[#allocation0] sm:%s20] %v19
    %s23 = ssub.s32 32, 32
    %24 = vsyncadd [#allocation1], %s23
    %s26 = sshll.u32 [#allocation0], 4
    %s27 = int_to_ptr.vmem [resolvable:$true] %s26
    %29 = dma.vmem_to_hbm [thread:$0]  %s27, 32, %s1, [#allocation1]
    %30 = dma.done [#allocation1], 32
    %31 = vsyncpa [#allocation1], 1

// kernel: parallel_selector_forward.3
$region0: #{parallel_selector_forward.3}
  #allocation0 [shape = 'u32[]', space=smem, size = 0x4, offset = 0x4, fixed_abs, tag = 'smem constant byte address 0x4 - core index']
  #allocation1 [shape = 'u32[144,128]{1,0:T(1,128)}', space=vmem, size = 0x12000, scoped, tag = 'internal scratch']
  %s0 = inlined_call_operand.vmem [shape: f32[2,8,32], index: 0, kind: input, shape index: {}]
  %s1 = inlined_call_operand.vmem [shape: f32[2,32], index: 1, kind: input, shape index: {}]
  %s2 = inlined_call_operand.vmem [shape: f32[2,32], index: 2, kind: input, shape index: {}]
  %s3 = inlined_call_operand.vmem [shape: f32[2,8,1], index: 3, kind: input, shape index: {}]
  %s4 = inlined_call_operand.vmem [shape: f32[32,32], index: 4, kind: input, shape index: {}]
  %s5 = inlined_call_operand.vmem [shape: f32[32,32], index: 5, kind: input, shape index: {}]
  %s6 = inlined_call_operand.vmem [shape: f32[1,32], index: 6, kind: input, shape index: {}]
  %s7 = inlined_call_operand.vmem [shape: f32[1,1,32], index: 7, kind: input, shape index: {}]
  %s8 = inlined_call_operand.vmem [shape: f32[128,64], index: 8, kind: input, shape index: {}]
  %s9 = inlined_call_operand.vmem [shape: f32[1,64], index: 9, kind: input, shape index: {}]
  %s10 = inlined_call_operand.vmem [shape: f32[64,2], index: 10, kind: input, shape index: {}]
  %s11 = inlined_call_operand.vmem [shape: f32[1,2], index: 11, kind: input, shape index: {}]
  %s12 = inlined_call_operand.hbm [shape: f32[2,32], index: 12, kind: output, shape index: {0}]
  %s13 = inlined_call_operand.vmem [shape: f32[16,2], index: 13, kind: output, shape index: {1}]
  %14 = xla_tuple %s12, %s13
  %s15 = sld [smem:[#allocation0]]
  $region66: #{parallel_selector_forward.3} parent=0
    _
  %s17 = ssub.s32 1, %s15
  %s18 = scalar_select 0, %s17, %s15
  $region1: #{parallel_selector_forward.3} parent=0
    #allocation2 [shape = 'u8[1024]{0}', space=vmem, size = 0x400, scoped, tag = 'output window, operand 0, single buffered']
    #allocation3 [shape = 's32[1]{0}', space=sflag, size = 0x4, scoped, tag = 'scoped memory for parallel_selector_forward.3']
    %19 = vsyncpa [#allocation3], 0
    // Predicated region
    $region2: #{parallel_selector_forward.3} parent=1 // pred_check
      _
    $region3: #{parallel_selector_forward.3} parent=1 // pred_check_branch
      %21 = sbr.rel (0) target = $region5
    $region4: #{parallel_selector_forward.3} parent=1 // pred_region
      _
    $region5: #{parallel_selector_forward.3} parent=1 // pred_fallthru
      _
    // Predicated region
    $region6: #{parallel_selector_forward.3} parent=1 // pred_check
      _
    $region7: #{parallel_selector_forward.3} parent=1 // pred_check_branch
      %23 = sbr.rel (0) target = $region9
    $region8: #{parallel_selector_forward.3} parent=1 // pred_region
      _
    $region9: #{parallel_selector_forward.3} parent=1 // pred_fallthru
      _
    // Predicated region
    $region10: #{parallel_selector_forward.3} parent=1 // pred_check
      _
    $region11: #{parallel_selector_forward.3} parent=1 // pred_check_branch
      %25 = sbr.rel (0) target = $region13
    $region12: #{parallel_selector_forward.3} parent=1 // pred_region
      _
    $region13: #{parallel_selector_forward.3} parent=1 // pred_fallthru
      _
    // Predicated region
    $region14: #{parallel_selector_forward.3} parent=1 // pred_check
      _
    $region15: #{parallel_selector_forward.3} parent=1 // pred_check_branch
      %27 = sbr.rel (0) target = $region17
    $region16: #{parallel_selector_forward.3} parent=1 // pred_region
      _
    $region17: #{parallel_selector_forward.3} parent=1 // pred_fallthru
      _
    // Predicated region
    $region18: #{parallel_selector_forward.3} parent=1 // pred_check
      _
    $region19: #{parallel_selector_forward.3} parent=1 // pred_check_branch
      %29 = sbr.rel (0) target = $region21
    $region20: #{parallel_selector_forward.3} parent=1 // pred_region
      _
    $region21: #{parallel_selector_forward.3} parent=1 // pred_fallthru
      _
    // Predicated region
    $region22: #{parallel_selector_forward.3} parent=1 // pred_check
      _
    $region23: #{parallel_selector_forward.3} parent=1 // pred_check_branch
      %31 = sbr.rel (0) target = $region25
    $region24: #{parallel_selector_forward.3} parent=1 // pred_region
      _
    $region25: #{parallel_selector_forward.3} parent=1 // pred_fallthru
      _
    // Predicated region
    $region26: #{parallel_selector_forward.3} parent=1 // pred_check
      _
    $region27: #{parallel_selector_forward.3} parent=1 // pred_check_branch
      %33 = sbr.rel (0) target = $region29
    $region28: #{parallel_selector_forward.3} parent=1 // pred_region
      _
    $region29: #{parallel_selector_forward.3} parent=1 // pred_fallthru
      _
    // Predicated region
    $region30: #{parallel_selector_forward.3} parent=1 // pred_check
      _
    $region31: #{parallel_selector_forward.3} parent=1 // pred_check_branch
      %35 = sbr.rel (0) target = $region33
    $region32: #{parallel_selector_forward.3} parent=1 // pred_region
      _
    $region33: #{parallel_selector_forward.3} parent=1 // pred_fallthru
      _
    // Predicated region
    $region34: #{parallel_selector_forward.3} parent=1 // pred_check
      _
    $region35: #{parallel_selector_forward.3} parent=1 // pred_check_branch
      %37 = sbr.rel (0) target = $region37
    $region36: #{parallel_selector_forward.3} parent=1 // pred_region
      _
    $region37: #{parallel_selector_forward.3} parent=1 // pred_fallthru
      _
    // Predicated region
    $region38: #{parallel_selector_forward.3} parent=1 // pred_check
      _
    $region39: #{parallel_selector_forward.3} parent=1 // pred_check_branch
      %39 = sbr.rel (0) target = $region41
    $region40: #{parallel_selector_forward.3} parent=1 // pred_region
      _
    $region41: #{parallel_selector_forward.3} parent=1 // pred_fallthru
      _
    // Predicated region
    $region42: #{parallel_selector_forward.3} parent=1 // pred_check
      _
    $region43: #{parallel_selector_forward.3} parent=1 // pred_check_branch
      %41 = sbr.rel (0) target = $region45
    $region44: #{parallel_selector_forward.3} parent=1 // pred_region
      _
    $region45: #{parallel_selector_forward.3} parent=1 // pred_fallthru
      _
    // Predicated region
    $region46: #{parallel_selector_forward.3} parent=1 // pred_check
      _
    $region47: #{parallel_selector_forward.3} parent=1 // pred_check_branch
      %43 = sbr.rel (0) target = $region49
    $region48: #{parallel_selector_forward.3} parent=1 // pred_region
      _
    $region49: #{parallel_selector_forward.3} parent=1 // pred_fallthru
      _
    %v44 = vld [vmem:[%s0] sm:$0xff]
    %v45 = vld [vmem:[%s0 + $0x8] sm:$0xff]
    %v46 = vld [vmem:[%s1] sm:$0x3]
    %v47 = vld [vmem:[%s2] sm:$0x3]
    %v48 = vld [vmem:[%s5] sm:$0xff]
    %v49 = vld [vmem:[%s5 + $0x8] sm:$0xff]
    %v50 = vld [vmem:[%s5 + $0x10] sm:$0xff]
    %v51 = vld [vmem:[%s5 + $0x18] sm:$0xff]
    %v52 = vld [vmem:[%s6] sm:$0x1]
    %v54 = vlaneseq
    %v55 = vshrl.u32 %v54, 7
    %v56 = vsub.s32 0, %v55
    %v57 = vrot.slane %v52, %v56
    %vm59 = vcmask 261120
    %v61 = vsel %vm59, %v47, 0
    %63 = vmatprep.subr.mxu0 0.0
    %64 = vmatpush1.msra.mxu0 %v48
    %65 = vmatprep.subr.mxu0 0.0
    %66 = vmatpush1.msra.mxu0 %v49
    %67 = vmatprep.subr.mxu0 0.0
    %68 = vmatpush1.msra.mxu0 %v50
    %69 = vmatprep.subr.mxu0 0.0
    %70 = vmatpush1.msra.mxu0 %v51
    %71 = vmatprep.subr.mxu0 0.0
    %72 = vmatpush1.msra.mxu0 0.0
    %73 = vmatprep.subr.mxu0 0.0
    %74 = vmatpush1.msra.mxu0 0.0
    %75 = vmatprep.subr.mxu0 0.0
    %76 = vmatpush1.msra.mxu0 0.0
    %77 = vmatprep.subr.mxu0 0.0
    %78 = vmatpush1.msra.mxu0 0.0
    %79 = vmatprep.subr.mxu0 0.0
    %80 = vmatpush1.msra.mxu0 0.0
    %81 = vmatprep.subr.mxu0 0.0
    %82 = vmatpush1.msra.mxu0 0.0
    %83 = vmatprep.subr.mxu0 0.0
    %84 = vmatpush1.msra.mxu0 0.0
    %85 = vmatprep.subr.mxu0 0.0
    %86 = vmatpush1.msra.mxu0 0.0
    %87 = vmatprep.subr.mxu0 0.0
    %88 = vmatpush1.msra.mxu0 0.0
    %89 = vmatprep.subr.mxu0 0.0
    %90 = vmatpush1.msra.mxu0 0.0
    %91 = vmatprep.subr.mxu0 0.0
    %92 = vmatpush1.msra.mxu0 0.0
    %93 = vmatprep.subr.mxu0 0.0
    %94 = vmatpush1.msra.mxu0 0.0
    %95 = vmatprep.subr.mxu0 0.0
    %96 = vmatpush1.msra.mxu0 0.0
    %97 = vmatprep.subr.mxu0 0.0
    %98 = vmatpush1.msra.mxu0 0.0
    %99 = vmatprep.subr.mxu0 0.0
    %100 = vmatpush1.msra.mxu0 0.0
    %101 = vmatprep.subr.mxu0 0.0
    %102 = vmatpush1.msra.mxu0 0.0
    %103 = vmatprep.subr.mxu0 0.0
    %104 = vmatpush1.msra.mxu0 0.0
    %105 = vmatprep.subr.mxu0 0.0
    %106 = vmatpush1.msra.mxu0 0.0
    %107 = vmatprep.subr.mxu0 0.0
    %108 = vmatpush1.msra.mxu0 0.0
    %109 = vmatprep.subr.mxu0 0.0
    %110 = vmatpush1.msra.mxu0 0.0
    %111 = vmatprep.subr.mxu0 0.0
    %112 = vmatpush1.msra.mxu0 0.0
    %113 = vmatprep.subr.mxu0 0.0
    %114 = vmatpush1.msra.mxu0 0.0
    %115 = vmatprep.subr.mxu0 0.0
    %116 = vmatpush1.msra.mxu0 0.0
    %117 = vmatprep.subr.mxu0 0.0
    %118 = vmatpush1.msra.mxu0 0.0
    %119 = vmatprep.subr.mxu0 0.0
    %120 = vmatpush1.msra.mxu0 0.0
    %121 = vmatprep.subr.mxu0 0.0
    %122 = vmatpush1.msra.mxu0 0.0
    %123 = vmatprep.subr.mxu0 0.0
    %124 = vmatpush1.msra.mxu0 0.0
    %125 = vmatprep.subr.mxu0 0.0
    %126 = vmatpush1.msra.mxu0 0.0
    %127 = vmatprep.mubr.f32.mxu0 0.0
    %128 = vmatmul.mubr.f32.gmra.mrb[0].mxu0 %v61
    %v129 = vpop.f32.mrb[0].mxu0
    %v130 = vadd.f32 %v57, %v129
    %v131 = vpop.f32.mrb[0].mxu0
    %132 = vdwg.mxu0
    %v133 = vld [vmem:[%s4] sm:$0xff]
    %v134 = vld [vmem:[%s4 + $0x8] sm:$0xff]
    %v135 = vld [vmem:[%s4 + $0x10] sm:$0xff]
    %v136 = vld [vmem:[%s4 + $0x18] sm:$0xff]
    %v138 = vsel %vm59, %v44, 0
    %v141 = vsel %vm59, %v45, 0
    %143 = vmatprep.subr.mxu0 0.0
    %144 = vmatpush1.msra.mxu0 %v133
    %145 = vmatprep.subr.mxu0 0.0
    %146 = vmatpush1.msra.mxu0 %v134
    %147 = vmatprep.subr.mxu0 0.0
    %148 = vmatpush1.msra.mxu0 %v135
    %149 = vmatprep.subr.mxu0 0.0
    %150 = vmatpush1.msra.mxu0 %v136
    %151 = vmatprep.subr.mxu0 0.0
    %152 = vmatpush1.msra.mxu0 0.0
    %153 = vmatprep.subr.mxu0 0.0
    %154 = vmatpush1.msra.mxu0 0.0
    %155 = vmatprep.subr.mxu0 0.0
    %156 = vmatpush1.msra.mxu0 0.0
    %157 = vmatprep.subr.mxu0 0.0
    %158 = vmatpush1.msra.mxu0 0.0
    %159 = vmatprep.subr.mxu0 0.0
    %160 = vmatpush1.msra.mxu0 0.0
    %161 = vmatprep.subr.mxu0 0.0
    %162 = vmatpush1.msra.mxu0 0.0
    %163 = vmatprep.subr.mxu0 0.0
    %164 = vmatpush1.msra.mxu0 0.0
    %165 = vmatprep.subr.mxu0 0.0
    %166 = vmatpush1.msra.mxu0 0.0
    %167 = vmatprep.subr.mxu0 0.0
    %168 = vmatpush1.msra.mxu0 0.0
    %169 = vmatprep.subr.mxu0 0.0
    %170 = vmatpush1.msra.mxu0 0.0
    %171 = vmatprep.subr.mxu0 0.0
    %172 = vmatpush1.msra.mxu0 0.0
    %173 = vmatprep.subr.mxu0 0.0
    %174 = vmatpush1.msra.mxu0 0.0
    %175 = vmatprep.subr.mxu0 0.0
    %176 = vmatpush1.msra.mxu0 0.0
    %177 = vmatprep.subr.mxu0 0.0
    %178 = vmatpush1.msra.mxu0 0.0
    %179 = vmatprep.subr.mxu0 0.0
    %180 = vmatpush1.msra.mxu0 0.0
    %181 = vmatprep.subr.mxu0 0.0
    %182 = vmatpush1.msra.mxu0 0.0
    %183 = vmatprep.subr.mxu0 0.0
    %184 = vmatpush1.msra.mxu0 0.0
    %185 = vmatprep.subr.mxu0 0.0
    %186 = vmatpush1.msra.mxu0 0.0
    %187 = vmatprep.subr.mxu0 0.0
    %188 = vmatpush1.msra.mxu0 0.0
    %189 = vmatprep.subr.mxu0 0.0
    %190 = vmatpush1.msra.mxu0 0.0
    %191 = vmatprep.subr.mxu0 0.0
    %192 = vmatpush1.msra.mxu0 0.0
    %193 = vmatprep.subr.mxu0 0.0
    %194 = vmatpush1.msra.mxu0 0.0
    %195 = vmatprep.subr.mxu0 0.0
    %196 = vmatpush1.msra.mxu0 0.0
    %197 = vmatprep.subr.mxu0 0.0
    %198 = vmatpush1.msra.mxu0 0.0
    %199 = vmatprep.subr.mxu0 0.0
    %200 = vmatpush1.msra.mxu0 0.0
    %201 = vmatprep.subr.mxu0 0.0
    %202 = vmatpush1.msra.mxu0 0.0
    %203 = vmatprep.subr.mxu0 0.0
    %204 = vmatpush1.msra.mxu0 0.0
    %205 = vmatprep.subr.mxu0 0.0
    %206 = vmatpush1.msra.mxu0 0.0
    %207 = vmatprep.mubr.f32.mxu0 0.0
    %208 = vmatmul.mubr.f32.gmra.mrb[0].mxu0 %v138
    %v209 = vpop.f32.mrb[0].mxu0
    %v210 = vadd.f32 0.0, %v209
    %v211 = vpop.f32.mrb[0].mxu0
    %212 = vmatprep.mubr.f32.mxu0 0.0
    %213 = vmatmul.mubr.f32.gmra.mrb[0].mxu0 %v141
    %v214 = vpop.f32.mrb[0].mxu0
    %v215 = vadd.f32 0.0, %v214
    %v216 = vpop.f32.mrb[0].mxu0
    %217 = vdwg.mxu0
    %v220 = vunpack.c.l.s4 1966171168
    %v221 = vunpack.c.0.s8 %v220
    %v222 = vlaneseq
    %v223 = vshrl.u32 %v222, 7
    %v224 = vsub.s32 %v221, %v223
    %v225 = vrot.slane %v130, %v224
    %v226 = vcombine.high %v225, %v225
    %v228 = vunpack.c.l.s4 1966171168
    %v229 = vunpack.c.0.s8 %v228
    %v230 = vlaneseq
    %v231 = vshrl.u32 %v230, 7
    %v232 = vsub.s32 %v229, %v231
    %v233 = vrot.slane %v225, %v232
    %v235 = vunpack.c.l.s4 1966171168
    %v236 = vunpack.c.0.s8 %v235
    %v237 = vlaneseq
    %v238 = vshrl.u32 %v237, 7
    %v239 = vsub.s32 %v236, %v238
    %v240 = vrot.slane %v226, %v239
    %v241 = vlaneseq
    %v242 = vshrl.u32 %v241, 7
    %v243 = vsub.s32 0, %v242
    %v244 = vrot.slane %v233, %v243
    %v245 = vlaneseq
    %v246 = vshrl.u32 %v245, 7
    %v247 = vsub.s32 0, %v246
    %v248 = vrot.slane %v240, %v247
    %v251 = vadd.f32 %v210, %v244
    %v252 = vadd.f32 %v215, %v248
    %v253 = vtanh.pop %v251
    %v254 = vtanh.pop %v252
    %v255 = vld [vmem:[%s7] sm:$0x1]
    %v257 = vlaneseq
    %v258 = vshrl.u32 %v257, 7
    %v259 = vsub.s32 0, %v258
    %v260 = vrot.slane %v255, %v259
    %v262 = vmul.f32 %v253, %v260
    %v263 = vmul.f32 %v254, %v260
    %v264 = vsel %vm59, %v262, 0.0
    %265 = vadd.xlane.f32.xlu0 %v264
    %v266 = vpop.xlane.xlu0 %265
    %v267 = vsel %vm59, %v263, 0.0
    %268 = vadd.xlane.f32.xlu0 %v267
    %v269 = vpop.xlane.xlu0 %268
    %v270 = vld [vmem:[%s3] sm:$0xff]
    %v271 = vld [vmem:[%s3 + $0x8] sm:$0xff]
    %v272 = vadd.f32 %v266, %v270
    %v273 = vadd.f32 %v269, %v271
    %vm274 = vcmask 7168
    %v275 = vsel %vm274, %v272, -inf
    %v276 = vrot.slane %v275, 4
    %v277 = vmax.f32 %v275, %v276
    %v278 = vrot.slane %v277, 2
    %v279 = vmax.f32 %v277, %v278
    %v280 = vrot.slane %v279, 1
    %v281 = vmax.f32 %v279, %v280
    %v282 = vsel %vm274, %v273, -inf
    %v283 = vrot.slane %v282, 4
    %v284 = vmax.f32 %v282, %v283
    %v285 = vrot.slane %v284, 2
    %v286 = vmax.f32 %v284, %v285
    %v287 = vrot.slane %v286, 1
    %v288 = vmax.f32 %v286, %v287
    %v289 = vsub.f32 %v272, %v281
    %v290 = vsub.f32 %v273, %v288
    %v291 = vmul.f32 %v289, 1.442695
    %v292 = vpow.pop %v291
    %v293 = vmul.f32 %v290, 1.442695
    %v294 = vpow.pop %v293
    %v295 = vsel %vm274, %v292, 0.0
    %v296 = vrot.slane %v295, 4
    %v297 = vadd.f32 %v295, %v296
    %v298 = vrot.slane %v297, 2
    %v299 = vadd.f32 %v297, %v298
    %v300 = vrot.slane %v299, 1
    %v301 = vadd.f32 %v299, %v300
    %v302 = vsel %vm274, %v294, 0.0
    %v303 = vrot.slane %v302, 4
    %v304 = vadd.f32 %v302, %v303
    %v305 = vrot.slane %v304, 2
    %v306 = vadd.f32 %v304, %v305
    %v307 = vrot.slane %v306, 1
    %v308 = vadd.f32 %v306, %v307
    %v309 = vrcp.pop %v301
    %v310 = vmul.f32 %v292, %v309
    %v311 = vrcp.pop %v308
    %v312 = vmul.f32 %v294, %v311
    %314 = vset.pattern.permute.xlu0 0
    %315 = vperm.xlu0 %314, %v310
    %v316 = vpop.permute.xlu0 %315
    %319 = vset.pattern.permute.xlu0 0
    %320 = vperm.xlu0 %319, %v312
    %v321 = vpop.permute.xlu0 %320
    %v323 = vmul.f32 %v316, %v44
    %v324 = vmul.f32 %v321, %v45
    %v325 = vsel %vm59, %v323, 0.0
    %v326 = vrot.slane %v325, 4
    %v327 = vadd.f32 %v325, %v326
    %v328 = vrot.slane %v327, 2
    %v329 = vadd.f32 %v327, %v328
    %v330 = vrot.slane %v329, 1
    %v331 = vadd.f32 %v329, %v330
    %v332 = vsel %vm59, %v324, 0.0
    %v333 = vrot.slane %v332, 4
    %v334 = vadd.f32 %v332, %v333
    %v335 = vrot.slane %v334, 2
    %v336 = vadd.f32 %v334, %v335
    %v337 = vrot.slane %v336, 1
    %v338 = vadd.f32 %v336, %v337
    %vm341 = vcmask 1041409
    %v342 = vsel %vm341, %v338, %v331
    %vm344 = vcmask 254976
    %345 = vst.msk [vmem:[#allocation2] sm:$0x3] %vm344, %v342
    %v346 = vld [vmem:[%s8] sm:$0xff]
    %v347 = vld [vmem:[%s8 + $0x8] sm:$0xff]
    %v348 = vld [vmem:[%s8 + $0x10] sm:$0xff]
    %v349 = vld [vmem:[%s8 + $0x18] sm:$0xff]
    %v350 = vld [vmem:[%s8 + $0x20] sm:$0xff]
    %v351 = vld [vmem:[%s8 + $0x28] sm:$0xff]
    %v352 = vld [vmem:[%s8 + $0x30] sm:$0xff]
    %v353 = vld [vmem:[%s8 + $0x38] sm:$0xff]
    %v354 = vld [vmem:[%s8 + $0x40] sm:$0xff]
    %v355 = vld [vmem:[%s8 + $0x48] sm:$0xff]
    %v356 = vld [vmem:[%s8 + $0x50] sm:$0xff]
    %v357 = vld [vmem:[%s8 + $0x58] sm:$0xff]
    %v358 = vld [vmem:[%s8 + $0x60] sm:$0xff]
    %v359 = vld [vmem:[%s8 + $0x68] sm:$0xff]
    %v360 = vld [vmem:[%s8 + $0x70] sm:$0xff]
    %v361 = vld [vmem:[%s8 + $0x78] sm:$0xff]
    %v362 = vsel %vm59, %v342, 0
    %364 = vmatprep.subr.mxu0 0.0
    %365 = vmatpush1.msra.mxu0 %v354
    %366 = vmatprep.subr.mxu0 0.0
    %367 = vmatpush1.msra.mxu0 %v355
    %368 = vmatprep.subr.mxu0 0.0
    %369 = vmatpush1.msra.mxu0 %v356
    %370 = vmatprep.subr.mxu0 0.0
    %371 = vmatpush1.msra.mxu0 %v357
    %372 = vmatprep.subr.mxu0 0.0
    %373 = vmatpush1.msra.mxu0 0.0
    %374 = vmatprep.subr.mxu0 0.0
    %375 = vmatpush1.msra.mxu0 0.0
    %376 = vmatprep.subr.mxu0 0.0
    %377 = vmatpush1.msra.mxu0 0.0
    %378 = vmatprep.subr.mxu0 0.0
    %379 = vmatpush1.msra.mxu0 0.0
    %380 = vmatprep.subr.mxu0 0.0
    %381 = vmatpush1.msra.mxu0 0.0
    %382 = vmatprep.subr.mxu0 0.0
    %383 = vmatpush1.msra.mxu0 0.0
    %384 = vmatprep.subr.mxu0 0.0
    %385 = vmatpush1.msra.mxu0 0.0
    %386 = vmatprep.subr.mxu0 0.0
    %387 = vmatpush1.msra.mxu0 0.0
    %388 = vmatprep.subr.mxu0 0.0
    %389 = vmatpush1.msra.mxu0 0.0
    %390 = vmatprep.subr.mxu0 0.0
    %391 = vmatpush1.msra.mxu0 0.0
    %392 = vmatprep.subr.mxu0 0.0
    %393 = vmatpush1.msra.mxu0 0.0
    %394 = vmatprep.subr.mxu0 0.0
    %395 = vmatpush1.msra.mxu0 0.0
    %396 = vmatprep.subr.mxu0 0.0
    %397 = vmatpush1.msra.mxu0 0.0
    %398 = vmatprep.subr.mxu0 0.0
    %399 = vmatpush1.msra.mxu0 0.0
    %400 = vmatprep.subr.mxu0 0.0
    %401 = vmatpush1.msra.mxu0 0.0
    %402 = vmatprep.subr.mxu0 0.0
    %403 = vmatpush1.msra.mxu0 0.0
    %404 = vmatprep.subr.mxu0 0.0
    %405 = vmatpush1.msra.mxu0 0.0
    %406 = vmatprep.subr.mxu0 0.0
    %407 = vmatpush1.msra.mxu0 0.0
    %408 = vmatprep.subr.mxu0 0.0
    %409 = vmatpush1.msra.mxu0 0.0
    %410 = vmatprep.subr.mxu0 0.0
    %411 = vmatpush1.msra.mxu0 0.0
    %412 = vmatprep.subr.mxu0 0.0
    %413 = vmatpush1.msra.mxu0 0.0
    %414 = vmatprep.subr.mxu0 0.0
    %415 = vmatpush1.msra.mxu0 0.0
    %416 = vmatprep.subr.mxu0 0.0
    %417 = vmatpush1.msra.mxu0 0.0
    %418 = vmatprep.subr.mxu0 0.0
    %419 = vmatpush1.msra.mxu0 0.0
    %420 = vmatprep.subr.mxu0 0.0
    %421 = vmatpush1.msra.mxu0 0.0
    %422 = vmatprep.subr.mxu0 0.0
    %423 = vmatpush1.msra.mxu0 0.0
    %424 = vmatprep.subr.mxu0 0.0
    %425 = vmatpush1.msra.mxu0 0.0
    %426 = vmatprep.subr.mxu0 0.0
    %427 = vmatpush1.msra.mxu0 0.0
    %428 = vmatprep.mubr.f32.mxu0 0.0
    %429 = vmatmul.mubr.f32.gmra.mrb[0].mxu0 %v362
    %v430 = vpop.f32.mrb[0].mxu0
    %v431 = vadd.f32 0.0, %v430
    %v432 = vpop.f32.mrb[0].mxu0
    %433 = vdwg.mxu0
    %v435 = vsel %vm59, %v46, 0
    %437 = vmatprep.subr.mxu0 0.0
    %438 = vmatpush1.msra.mxu0 %v350
    %439 = vmatprep.subr.mxu0 0.0
    %440 = vmatpush1.msra.mxu0 %v351
    %441 = vmatprep.subr.mxu0 0.0
    %442 = vmatpush1.msra.mxu0 %v352
    %443 = vmatprep.subr.mxu0 0.0
    %444 = vmatpush1.msra.mxu0 %v353
    %445 = vmatprep.subr.mxu0 0.0
    %446 = vmatpush1.msra.mxu0 0.0
    %447 = vmatprep.subr.mxu0 0.0
    %448 = vmatpush1.msra.mxu0 0.0
    %449 = vmatprep.subr.mxu0 0.0
    %450 = vmatpush1.msra.mxu0 0.0
    %451 = vmatprep.subr.mxu0 0.0
    %452 = vmatpush1.msra.mxu0 0.0
    %453 = vmatprep.subr.mxu0 0.0
    %454 = vmatpush1.msra.mxu0 0.0
    %455 = vmatprep.subr.mxu0 0.0
    %456 = vmatpush1.msra.mxu0 0.0
    %457 = vmatprep.subr.mxu0 0.0
    %458 = vmatpush1.msra.mxu0 0.0
    %459 = vmatprep.subr.mxu0 0.0
    %460 = vmatpush1.msra.mxu0 0.0
    %461 = vmatprep.subr.mxu0 0.0
    %462 = vmatpush1.msra.mxu0 0.0
    %463 = vmatprep.subr.mxu0 0.0
    %464 = vmatpush1.msra.mxu0 0.0
    %465 = vmatprep.subr.mxu0 0.0
    %466 = vmatpush1.msra.mxu0 0.0
    %467 = vmatprep.subr.mxu0 0.0
    %468 = vmatpush1.msra.mxu0 0.0
    %469 = vmatprep.subr.mxu0 0.0
    %470 = vmatpush1.msra.mxu0 0.0
    %471 = vmatprep.subr.mxu0 0.0
    %472 = vmatpush1.msra.mxu0 0.0
    %473 = vmatprep.subr.mxu0 0.0
    %474 = vmatpush1.msra.mxu0 0.0
    %475 = vmatprep.subr.mxu0 0.0
    %476 = vmatpush1.msra.mxu0 0.0
    %477 = vmatprep.subr.mxu0 0.0
    %478 = vmatpush1.msra.mxu0 0.0
    %479 = vmatprep.subr.mxu0 0.0
    %480 = vmatpush1.msra.mxu0 0.0
    %481 = vmatprep.subr.mxu0 0.0
    %482 = vmatpush1.msra.mxu0 0.0
    %483 = vmatprep.subr.mxu0 0.0
    %484 = vmatpush1.msra.mxu0 0.0
    %485 = vmatprep.subr.mxu0 0.0
    %486 = vmatpush1.msra.mxu0 0.0
    %487 = vmatprep.subr.mxu0 0.0
    %488 = vmatpush1.msra.mxu0 0.0
    %489 = vmatprep.subr.mxu0 0.0
    %490 = vmatpush1.msra.mxu0 0.0
    %491 = vmatprep.subr.mxu0 0.0
    %492 = vmatpush1.msra.mxu0 0.0
    %493 = vmatprep.subr.mxu0 0.0
    %494 = vmatpush1.msra.mxu0 0.0
    %495 = vmatprep.subr.mxu0 0.0
    %496 = vmatpush1.msra.mxu0 0.0
    %497 = vmatprep.subr.mxu0 0.0
    %498 = vmatpush1.msra.mxu0 0.0
    %499 = vmatprep.subr.mxu0 0.0
    %500 = vmatpush1.msra.mxu0 0.0
    %501 = vmatprep.mubr.f32.mxu0 0.0
    %502 = vmatmul.mubr.f32.gmra.mrb[0].mxu0 %v435
    %v503 = vpop.f32.mrb[0].mxu0
    %v504 = vadd.f32 %v431, %v503
    %v505 = vpop.f32.mrb[0].mxu0
    %506 = vdwg.mxu0
    %507 = vmatprep.subr.mxu0 0.0
    %508 = vmatpush1.msra.mxu0 %v358
    %509 = vmatprep.subr.mxu0 0.0
    %510 = vmatpush1.msra.mxu0 %v359
    %511 = vmatprep.subr.mxu0 0.0
    %512 = vmatpush1.msra.mxu0 %v360
    %513 = vmatprep.subr.mxu0 0.0
    %514 = vmatpush1.msra.mxu0 %v361
    %515 = vmatprep.subr.mxu0 0.0
    %516 = vmatpush1.msra.mxu0 0.0
    %517 = vmatprep.subr.mxu0 0.0
    %518 = vmatpush1.msra.mxu0 0.0
    %519 = vmatprep.subr.mxu0 0.0
    %520 = vmatpush1.msra.mxu0 0.0
    %521 = vmatprep.subr.mxu0 0.0
    %522 = vmatpush1.msra.mxu0 0.0
    %523 = vmatprep.subr.mxu0 0.0
    %524 = vmatpush1.msra.mxu0 0.0
    %525 = vmatprep.subr.mxu0 0.0
    %526 = vmatpush1.msra.mxu0 0.0
    %527 = vmatprep.subr.mxu0 0.0
    %528 = vmatpush1.msra.mxu0 0.0
    %529 = vmatprep.subr.mxu0 0.0
    %530 = vmatpush1.msra.mxu0 0.0
    %531 = vmatprep.subr.mxu0 0.0
    %532 = vmatpush1.msra.mxu0 0.0
    %533 = vmatprep.subr.mxu0 0.0
    %534 = vmatpush1.msra.mxu0 0.0
    %535 = vmatprep.subr.mxu0 0.0
    %536 = vmatpush1.msra.mxu0 0.0
    %537 = vmatprep.subr.mxu0 0.0
    %538 = vmatpush1.msra.mxu0 0.0
    %539 = vmatprep.subr.mxu0 0.0
    %540 = vmatpush1.msra.mxu0 0.0
    %541 = vmatprep.subr.mxu0 0.0
    %542 = vmatpush1.msra.mxu0 0.0
    %543 = vmatprep.subr.mxu0 0.0
    %544 = vmatpush1.msra.mxu0 0.0
    %545 = vmatprep.subr.mxu0 0.0
    %546 = vmatpush1.msra.mxu0 0.0
    %547 = vmatprep.subr.mxu0 0.0
    %548 = vmatpush1.msra.mxu0 0.0
    %549 = vmatprep.subr.mxu0 0.0
    %550 = vmatpush1.msra.mxu0 0.0
    %551 = vmatprep.subr.mxu0 0.0
    %552 = vmatpush1.msra.mxu0 0.0
    %553 = vmatprep.subr.mxu0 0.0
    %554 = vmatpush1.msra.mxu0 0.0
    %555 = vmatprep.subr.mxu0 0.0
    %556 = vmatpush1.msra.mxu0 0.0
    %557 = vmatprep.subr.mxu0 0.0
    %558 = vmatpush1.msra.mxu0 0.0
    %559 = vmatprep.subr.mxu0 0.0
    %560 = vmatpush1.msra.mxu0 0.0
    %561 = vmatprep.subr.mxu0 0.0
    %562 = vmatpush1.msra.mxu0 0.0
    %563 = vmatprep.subr.mxu0 0.0
    %564 = vmatpush1.msra.mxu0 0.0
    %565 = vmatprep.subr.mxu0 0.0
    %566 = vmatpush1.msra.mxu0 0.0
    %567 = vmatprep.subr.mxu0 0.0
    %568 = vmatpush1.msra.mxu0 0.0
    %569 = vmatprep.subr.mxu0 0.0
    %570 = vmatpush1.msra.mxu0 0.0
    %571 = vmatprep.mubr.f32.mxu0 0.0
    %572 = vmatmul.mubr.f32.gmra.mrb[0].mxu0 %v61
    %v573 = vpop.f32.mrb[0].mxu0
    %v574 = vadd.f32 0.0, %v573
    %v575 = vpop.f32.mrb[0].mxu0
    %576 = vdwg.mxu0
    %v577 = vadd.f32 %v504, %v574
    %v578 = vld [vmem:[%s9] sm:$0x1]
    %v580 = vlaneseq
    %v581 = vshrl.u32 %v580, 7
    %v582 = vsub.s32 0, %v581
    %v583 = vrot.slane %v578, %v582
    %v585 = vadd.f32 %v577, %v583
    %586 = vmatprep.subr.mxu0 0.0
    %587 = vmatpush1.msra.mxu0 %v346
    %588 = vmatprep.subr.mxu0 0.0
    %589 = vmatpush1.msra.mxu0 %v347
    %590 = vmatprep.subr.mxu0 0.0
    %591 = vmatpush1.msra.mxu0 %v348
    %592 = vmatprep.subr.mxu0 0.0
    %593 = vmatpush1.msra.mxu0 %v349
    %594 = vmatprep.subr.mxu0 0.0
    %595 = vmatpush1.msra.mxu0 0.0
    %596 = vmatprep.subr.mxu0 0.0
    %597 = vmatpush1.msra.mxu0 0.0
    %598 = vmatprep.subr.mxu0 0.0
    %599 = vmatpush1.msra.mxu0 0.0
    %600 = vmatprep.subr.mxu0 0.0
    %601 = vmatpush1.msra.mxu0 0.0
    %602 = vmatprep.subr.mxu0 0.0
    %603 = vmatpush1.msra.mxu0 0.0
    %604 = vmatprep.subr.mxu0 0.0
    %605 = vmatpush1.msra.mxu0 0.0
    %606 = vmatprep.subr.mxu0 0.0
    %607 = vmatpush1.msra.mxu0 0.0
    %608 = vmatprep.subr.mxu0 0.0
    %609 = vmatpush1.msra.mxu0 0.0
    %610 = vmatprep.subr.mxu0 0.0
    %611 = vmatpush1.msra.mxu0 0.0
    %612 = vmatprep.subr.mxu0 0.0
    %613 = vmatpush1.msra.mxu0 0.0
    %614 = vmatprep.subr.mxu0 0.0
    %615 = vmatpush1.msra.mxu0 0.0
    %616 = vmatprep.subr.mxu0 0.0
    %617 = vmatpush1.msra.mxu0 0.0
    %618 = vmatprep.subr.mxu0 0.0
    %619 = vmatpush1.msra.mxu0 0.0
    %620 = vmatprep.subr.mxu0 0.0
    %621 = vmatpush1.msra.mxu0 0.0
    %622 = vmatprep.subr.mxu0 0.0
    %623 = vmatpush1.msra.mxu0 0.0
    %624 = vmatprep.subr.mxu0 0.0
    %625 = vmatpush1.msra.mxu0 0.0
    %626 = vmatprep.subr.mxu0 0.0
    %627 = vmatpush1.msra.mxu0 0.0
    %628 = vmatprep.subr.mxu0 0.0
    %629 = vmatpush1.msra.mxu0 0.0
    %630 = vmatprep.subr.mxu0 0.0
    %631 = vmatpush1.msra.mxu0 0.0
    %632 = vmatprep.subr.mxu0 0.0
    %633 = vmatpush1.msra.mxu0 0.0
    %634 = vmatprep.subr.mxu0 0.0
    %635 = vmatpush1.msra.mxu0 0.0
    %636 = vmatprep.subr.mxu0 0.0
    %637 = vmatpush1.msra.mxu0 0.0
    %638 = vmatprep.subr.mxu0 0.0
    %639 = vmatpush1.msra.mxu0 0.0
    %640 = vmatprep.subr.mxu0 0.0
    %641 = vmatpush1.msra.mxu0 0.0
    %642 = vmatprep.subr.mxu0 0.0
    %643 = vmatpush1.msra.mxu0 0.0
    %644 = vmatprep.subr.mxu0 0.0
    %645 = vmatpush1.msra.mxu0 0.0
    %646 = vmatprep.subr.mxu0 0.0
    %647 = vmatpush1.msra.mxu0 0.0
    %648 = vmatprep.subr.mxu0 0.0
    %649 = vmatpush1.msra.mxu0 0.0
    %650 = vmatprep.mubr.f32.mxu0 0.0
    %651 = vmatmul.mubr.f32.gmra.mrb[0].mxu0 %v138
    %v652 = vpop.f32.mrb[0].mxu0
    %v653 = vadd.f32 0.0, %v652
    %v654 = vpop.f32.mrb[0].mxu0
    %655 = vmatprep.mubr.f32.mxu0 0.0
    %656 = vmatmul.mubr.f32.gmra.mrb[0].mxu0 %v141
    %v657 = vpop.f32.mrb[0].mxu0
    %v658 = vadd.f32 0.0, %v657
    %v659 = vpop.f32.mrb[0].mxu0
    %660 = vdwg.mxu0
    %v663 = vunpack.c.l.s4 1966171168
    %v664 = vunpack.c.0.s8 %v663
    %v665 = vlaneseq
    %v666 = vshrl.u32 %v665, 7
    %v667 = vsub.s32 %v664, %v666
    %v668 = vrot.slane %v585, %v667
    %v669 = vcombine.high %v668, %v668
    %v671 = vunpack.c.l.s4 1966171168
    %v672 = vunpack.c.0.s8 %v671
    %v673 = vlaneseq
    %v674 = vshrl.u32 %v673, 7
    %v675 = vsub.s32 %v672, %v674
    %v676 = vrot.slane %v668, %v675
    %v678 = vunpack.c.l.s4 1966171168
    %v679 = vunpack.c.0.s8 %v678
    %v680 = vlaneseq
    %v681 = vshrl.u32 %v680, 7
    %v682 = vsub.s32 %v679, %v681
    %v683 = vrot.slane %v669, %v682
    %v684 = vlaneseq
    %v685 = vshrl.u32 %v684, 7
    %v686 = vsub.s32 0, %v685
    %v687 = vrot.slane %v676, %v686
    %v688 = vlaneseq
    %v689 = vshrl.u32 %v688, 7
    %v690 = vsub.s32 0, %v689
    %v691 = vrot.slane %v683, %v690
    %v694 = vadd.f32 %v653, %v687
    %v695 = vadd.f32 %v658, %v691
    %v696 = vtanh.pop %v694
    %v697 = vtanh.pop %v695
    %v698 = vld [vmem:[%s10] sm:$0xff]
    %v699 = vld [vmem:[%s10 + $0x8] sm:$0xff]
    %v700 = vld [vmem:[%s10 + $0x10] sm:$0xff]
    %v701 = vld [vmem:[%s10 + $0x18] sm:$0xff]
    %v702 = vld [vmem:[%s10 + $0x20] sm:$0xff]
    %v703 = vld [vmem:[%s10 + $0x28] sm:$0xff]
    %v704 = vld [vmem:[%s10 + $0x30] sm:$0xff]
    %v705 = vld [vmem:[%s10 + $0x38] sm:$0xff]
    %v706 = vld [vmem:[%s11] sm:$0x1]
    %v708 = vlaneseq
    %v709 = vshrl.u32 %v708, 7
    %v710 = vsub.s32 0, %v709
    %v711 = vrot.slane %v706, %v710
    %vm713 = vcmask 523264
    %v715 = vsel %vm713, %v696, 0
    %v718 = vsel %vm713, %v697, 0
    %720 = vmatprep.subr.mxu0 0.0
    %721 = vmatpush1.msra.mxu0 %v698
    %722 = vmatprep.subr.mxu0 0.0
    %723 = vmatpush1.msra.mxu0 %v699
    %724 = vmatprep.subr.mxu0 0.0
    %725 = vmatpush1.msra.mxu0 %v700
    %726 = vmatprep.subr.mxu0 0.0
    %727 = vmatpush1.msra.mxu0 %v701
    %728 = vmatprep.subr.mxu0 0.0
    %729 = vmatpush1.msra.mxu0 %v702
    %730 = vmatprep.subr.mxu0 0.0
    %731 = vmatpush1.msra.mxu0 %v703
    %732 = vmatprep.subr.mxu0 0.0
    %733 = vmatpush1.msra.mxu0 %v704
    %734 = vmatprep.subr.mxu0 0.0
    %735 = vmatpush1.msra.mxu0 %v705
    %736 = vmatprep.subr.mxu0 0.0
    %737 = vmatpush1.msra.mxu0 0.0
    %738 = vmatprep.subr.mxu0 0.0
    %739 = vmatpush1.msra.mxu0 0.0
    %740 = vmatprep.subr.mxu0 0.0
    %741 = vmatpush1.msra.mxu0 0.0
    %742 = vmatprep.subr.mxu0 0.0
    %743 = vmatpush1.msra.mxu0 0.0
    %744 = vmatprep.subr.mxu0 0.0
    %745 = vmatpush1.msra.mxu0 0.0
    %746 = vmatprep.subr.mxu0 0.0
    %747 = vmatpush1.msra.mxu0 0.0
    %748 = vmatprep.subr.mxu0 0.0
    %749 = vmatpush1.msra.mxu0 0.0
    %750 = vmatprep.subr.mxu0 0.0
    %751 = vmatpush1.msra.mxu0 0.0
    %752 = vmatprep.subr.mxu0 0.0
    %753 = vmatpush1.msra.mxu0 0.0
    %754 = vmatprep.subr.mxu0 0.0
    %755 = vmatpush1.msra.mxu0 0.0
    %756 = vmatprep.subr.mxu0 0.0
    %757 = vmatpush1.msra.mxu0 0.0
    %758 = vmatprep.subr.mxu0 0.0
    %759 = vmatpush1.msra.mxu0 0.0
    %760 = vmatprep.subr.mxu0 0.0
    %761 = vmatpush1.msra.mxu0 0.0
    %762 = vmatprep.subr.mxu0 0.0
    %763 = vmatpush1.msra.mxu0 0.0
    %764 = vmatprep.subr.mxu0 0.0
    %765 = vmatpush1.msra.mxu0 0.0
    %766 = vmatprep.subr.mxu0 0.0
    %767 = vmatpush1.msra.mxu0 0.0
    %768 = vmatprep.subr.mxu0 0.0
    %769 = vmatpush1.msra.mxu0 0.0
    %770 = vmatprep.subr.mxu0 0.0
    %771 = vmatpush1.msra.mxu0 0.0
    %772 = vmatprep.subr.mxu0 0.0
    %773 = vmatpush1.msra.mxu0 0.0
    %774 = vmatprep.subr.mxu0 0.0
    %775 = vmatpush1.msra.mxu0 0.0
    %776 = vmatprep.subr.mxu0 0.0
    %777 = vmatpush1.msra.mxu0 0.0
    %778 = vmatprep.subr.mxu0 0.0
    %779 = vmatpush1.msra.mxu0 0.0
    %780 = vmatprep.subr.mxu0 0.0
    %781 = vmatpush1.msra.mxu0 0.0
    %782 = vmatprep.subr.mxu0 0.0
    %783 = vmatpush1.msra.mxu0 0.0
    %784 = vmatprep.mubr.f32.mxu0 0.0
    %785 = vmatmul.mubr.f32.gmra.mrb[0].mxu0 %v715
    %v786 = vpop.f32.mrb[0].mxu0
    %v787 = vadd.f32 %v711, %v786
    %v788 = vpop.f32.mrb[0].mxu0
    %789 = vmatprep.mubr.f32.mxu0 0.0
    %790 = vmatmul.mubr.f32.gmra.mrb[0].mxu0 %v718
    %v791 = vpop.f32.mrb[0].mxu0
    %v792 = vadd.f32 %v711, %v791
    %v793 = vpop.f32.mrb[0].mxu0
    %794 = vdwg.mxu0
    %vm795 = vcmask 15360
    %796 = vst.msk [vmem:[%s13] sm:$0xff] %vm795, %v787
    %797 = vst.msk [vmem:[%s13 + $0x8] sm:$0xff] %vm795, %v792
    // Predicated region
    $region50: #{parallel_selector_forward.3} parent=1 // pred_check
      _
    $region51: #{parallel_selector_forward.3} parent=1 // pred_check_branch
      %799 = sbr.rel (0) target = $region53
    $region52: #{parallel_selector_forward.3} parent=1 // pred_region
      %s801 = ssub.s32 32, 32
      %802 = vsyncadd [#allocation3], %s801
      %s804 = sshll.u32 [#allocation2], 4
      %s805 = int_to_ptr.vmem [resolvable:$true] %s804
      %807 = dma.vmem_to_hbm [thread:$0]  %s805, 32, %s12, [#allocation3]
    $region53: #{parallel_selector_forward.3} parent=1 // pred_fallthru
      _
    // Predicated region
    $region54: #{parallel_selector_forward.3} parent=1 // pred_check
      _
    $region55: #{parallel_selector_forward.3} parent=1 // pred_check_branch
      %809 = sbr.rel (0) target = $region57
    $region56: #{parallel_selector_forward.3} parent=1 // pred_region
      _
    $region57: #{parallel_selector_forward.3} parent=1 // pred_fallthru
      _
    // Predicated region
    $region58: #{parallel_selector_forward.3} parent=1 // pred_check
      _
    $region59: #{parallel_selector_forward.3} parent=1 // pred_check_branch
      %811 = sbr.rel (0) target = $region61
    $region60: #{parallel_selector_forward.3} parent=1 // pred_region
      %812 = dma.done [#allocation3], 32
    $region61: #{parallel_selector_forward.3} parent=1 // pred_fallthru
      _
    // Predicated region
    $region62: #{parallel_selector_forward.3} parent=1 // pred_check
      _
    $region63: #{parallel_selector_forward.3} parent=1 // pred_check_branch
      %814 = sbr.rel (0) target = $region65
    $region64: #{parallel_selector_forward.3} parent=1 // pred_region
      _
    $region65: #{parallel_selector_forward.3} parent=1 // pred_fallthru
      _
    %815 = vsyncpa [#allocation3], 1

// kernel: parallel_selector_forward.2
$region0: #{parallel_selector_forward.2}
  #allocation0 [shape = 'u32[]', space=smem, size = 0x4, offset = 0x4, fixed_abs, tag = 'smem constant byte address 0x4 - core index']
  #allocation1 [shape = 'u32[144,128]{1,0:T(1,128)}', space=vmem, size = 0x12000, scoped, tag = 'internal scratch']
  #allocation2 [shape = 'f32[16,16]{1,0:T(8,128)}', space=vmem, size = 0x2000, scoped, tag = 'scratch operand']
  #allocation3 [shape = 'f32[16,16]{1,0:T(8,128)}', space=vmem, size = 0x2000, scoped, tag = 'scratch operand']
  %s0 = inlined_call_operand.vmem [shape: f32[16,96], index: 0, kind: input, shape index: {}]
  %s1 = inlined_call_operand.vmem [shape: s32[2,1], index: 1, kind: input, shape index: {}]
  %s2 = inlined_call_operand.vmem [shape: f32[96,96], index: 2, kind: input, shape index: {}]
  %s3 = inlined_call_operand.vmem [shape: f32[1,96], index: 3, kind: input, shape index: {}]
  %s4 = inlined_call_operand.vmem [shape: f32[16,48], index: 4, kind: input, shape index: {}]
  %s5 = inlined_call_operand.vmem [shape: f32[1,48], index: 5, kind: input, shape index: {}]
  %s6 = inlined_call_operand.vmem [shape: f32[16,48], index: 6, kind: input, shape index: {}]
  %s7 = inlined_call_operand.vmem [shape: f32[1,48], index: 7, kind: input, shape index: {}]
  %s8 = inlined_call_operand.vmem [shape: f32[3,32,32], index: 8, kind: input, shape index: {}]
  %s9 = inlined_call_operand.vmem [shape: f32[1,32], index: 9, kind: input, shape index: {}]
  %s10 = inlined_call_operand.vmem [shape: f32[3,32,32], index: 10, kind: input, shape index: {}]
  %s11 = inlined_call_operand.vmem [shape: f32[1,32], index: 11, kind: input, shape index: {}]
  %s12 = inlined_call_operand.vmem [shape: f32[3,32,64], index: 12, kind: input, shape index: {}]
  %s13 = inlined_call_operand.vmem [shape: f32[1,64], index: 13, kind: input, shape index: {}]
  %s14 = inlined_call_operand.vmem [shape: f32[3,64,64], index: 14, kind: input, shape index: {}]
  %s15 = inlined_call_operand.vmem [shape: f32[1,64], index: 15, kind: input, shape index: {}]
  %s16 = inlined_call_operand.vmem [shape: f32[32,64], index: 16, kind: input, shape index: {}]
  %s17 = inlined_call_operand.vmem [shape: f32[1,64], index: 17, kind: input, shape index: {}]
  %s18 = inlined_call_operand.vmem [shape: f32[32,32], index: 18, kind: input, shape index: {}]
  %s19 = inlined_call_operand.vmem [shape: f32[1,32], index: 19, kind: input, shape index: {}]
  %s20 = inlined_call_operand.vmem [shape: f32[16,64], index: 20, kind: output, shape index: {0}]
  %s21 = inlined_call_operand.vmem [shape: f32[2,32], index: 21, kind: output, shape index: {1}]
  %22 = xla_tuple %s20, %s21
  %s23 = sld [smem:[#allocation0]]
  $region98: #{parallel_selector_forward.2} parent=0
    _
  %s25 = ssub.s32 1, %s23
  %s26 = scalar_select 0, %s25, %s23
  // Predicated region
  $region2: #{parallel_selector_forward.2} parent=0 // pred_check
    _
  $region3: #{parallel_selector_forward.2} parent=0 // pred_check_branch
    %28 = sbr.rel (0) target = $region5
  $region4: #{parallel_selector_forward.2} parent=0 // pred_region
    _
  $region5: #{parallel_selector_forward.2} parent=0 // pred_fallthru
    _
  // Predicated region
  $region6: #{parallel_selector_forward.2} parent=0 // pred_check
    _
  $region7: #{parallel_selector_forward.2} parent=0 // pred_check_branch
    %30 = sbr.rel (0) target = $region9
  $region8: #{parallel_selector_forward.2} parent=0 // pred_region
    _
  $region9: #{parallel_selector_forward.2} parent=0 // pred_fallthru
    _
  // Predicated region
  $region10: #{parallel_selector_forward.2} parent=0 // pred_check
    _
  $region11: #{parallel_selector_forward.2} parent=0 // pred_check_branch
    %32 = sbr.rel (0) target = $region13
  $region12: #{parallel_selector_forward.2} parent=0 // pred_region
    _
  $region13: #{parallel_selector_forward.2} parent=0 // pred_fallthru
    _
  // Predicated region
  $region14: #{parallel_selector_forward.2} parent=0 // pred_check
    _
  $region15: #{parallel_selector_forward.2} parent=0 // pred_check_branch
    %34 = sbr.rel (0) target = $region17
  $region16: #{parallel_selector_forward.2} parent=0 // pred_region
    _
  $region17: #{parallel_selector_forward.2} parent=0 // pred_fallthru
    _
  // Predicated region
  $region18: #{parallel_selector_forward.2} parent=0 // pred_check
    _
  $region19: #{parallel_selector_forward.2} parent=0 // pred_check_branch
    %36 = sbr.rel (0) target = $region21
  $region20: #{parallel_selector_forward.2} parent=0 // pred_region
    _
  $region21: #{parallel_selector_forward.2} parent=0 // pred_fallthru
    _
  // Predicated region
  $region22: #{parallel_selector_forward.2} parent=0 // pred_check
    _
  $region23: #{parallel_selector_forward.2} parent=0 // pred_check_branch
    %38 = sbr.rel (0) target = $region25
  $region24: #{parallel_selector_forward.2} parent=0 // pred_region
    _
  $region25: #{parallel_selector_forward.2} parent=0 // pred_fallthru
    _
  // Predicated region
  $region26: #{parallel_selector_forward.2} parent=0 // pred_check
    _
  $region27: #{parallel_selector_forward.2} parent=0 // pred_check_branch
    %40 = sbr.rel (0) target = $region29
  $region28: #{parallel_selector_forward.2} parent=0 // pred_region
    _
  $region29: #{parallel_selector_forward.2} parent=0 // pred_fallthru
    _
  // Predicated region
  $region30: #{parallel_selector_forward.2} parent=0 // pred_check
    _
  $region31: #{parallel_selector_forward.2} parent=0 // pred_check_branch
    %42 = sbr.rel (0) target = $region33
  $region32: #{parallel_selector_forward.2} parent=0 // pred_region
    _
  $region33: #{parallel_selector_forward.2} parent=0 // pred_fallthru
    _
  // Predicated region
  $region34: #{parallel_selector_forward.2} parent=0 // pred_check
    _
  $region35: #{parallel_selector_forward.2} parent=0 // pred_check_branch
    %44 = sbr.rel (0) target = $region37
  $region36: #{parallel_selector_forward.2} parent=0 // pred_region
    _
  $region37: #{parallel_selector_forward.2} parent=0 // pred_fallthru
    _
  // Predicated region
  $region38: #{parallel_selector_forward.2} parent=0 // pred_check
    _
  $region39: #{parallel_selector_forward.2} parent=0 // pred_check_branch
    %46 = sbr.rel (0) target = $region41
  $region40: #{parallel_selector_forward.2} parent=0 // pred_region
    _
  $region41: #{parallel_selector_forward.2} parent=0 // pred_fallthru
    _
  // Predicated region
  $region42: #{parallel_selector_forward.2} parent=0 // pred_check
    _
  $region43: #{parallel_selector_forward.2} parent=0 // pred_check_branch
    %48 = sbr.rel (0) target = $region45
  $region44: #{parallel_selector_forward.2} parent=0 // pred_region
    _
  $region45: #{parallel_selector_forward.2} parent=0 // pred_fallthru
    _
  // Predicated region
  $region46: #{parallel_selector_forward.2} parent=0 // pred_check
    _
  $region47: #{parallel_selector_forward.2} parent=0 // pred_check_branch
    %50 = sbr.rel (0) target = $region49
  $region48: #{parallel_selector_forward.2} parent=0 // pred_region
    _
  $region49: #{parallel_selector_forward.2} parent=0 // pred_fallthru
    _
  // Predicated region
  $region50: #{parallel_selector_forward.2} parent=0 // pred_check
    _
  $region51: #{parallel_selector_forward.2} parent=0 // pred_check_branch
    %52 = sbr.rel (0) target = $region53
  $region52: #{parallel_selector_forward.2} parent=0 // pred_region
    _
  $region53: #{parallel_selector_forward.2} parent=0 // pred_fallthru
    _
  // Predicated region
  $region54: #{parallel_selector_forward.2} parent=0 // pred_check
    _
  $region55: #{parallel_selector_forward.2} parent=0 // pred_check_branch
    %54 = sbr.rel (0) target = $region57
  $region56: #{parallel_selector_forward.2} parent=0 // pred_region
    _
  $region57: #{parallel_selector_forward.2} parent=0 // pred_fallthru
    _
  // Predicated region
  $region58: #{parallel_selector_forward.2} parent=0 // pred_check
    _
  $region59: #{parallel_selector_forward.2} parent=0 // pred_check_branch
    %56 = sbr.rel (0) target = $region61
  $region60: #{parallel_selector_forward.2} parent=0 // pred_region
    _
  $region61: #{parallel_selector_forward.2} parent=0 // pred_fallthru
    _
  // Predicated region
  $region62: #{parallel_selector_forward.2} parent=0 // pred_check
    _
  $region63: #{parallel_selector_forward.2} parent=0 // pred_check_branch
    %58 = sbr.rel (0) target = $region65
  $region64: #{parallel_selector_forward.2} parent=0 // pred_region
    _
  $region65: #{parallel_selector_forward.2} parent=0 // pred_fallthru
    _
  // Predicated region
  $region66: #{parallel_selector_forward.2} parent=0 // pred_check
    _
  $region67: #{parallel_selector_forward.2} parent=0 // pred_check_branch
    %60 = sbr.rel (0) target = $region69
  $region68: #{parallel_selector_forward.2} parent=0 // pred_region
    _
  $region69: #{parallel_selector_forward.2} parent=0 // pred_fallthru
    _
  // Predicated region
  $region70: #{parallel_selector_forward.2} parent=0 // pred_check
    _
  $region71: #{parallel_selector_forward.2} parent=0 // pred_check_branch
    %62 = sbr.rel (0) target = $region73
  $region72: #{parallel_selector_forward.2} parent=0 // pred_region
    _
  $region73: #{parallel_selector_forward.2} parent=0 // pred_fallthru
    _
  // Predicated region
  $region74: #{parallel_selector_forward.2} parent=0 // pred_check
    _
  $region75: #{parallel_selector_forward.2} parent=0 // pred_check_branch
    %64 = sbr.rel (0) target = $region77
  $region76: #{parallel_selector_forward.2} parent=0 // pred_region
    _
  $region77: #{parallel_selector_forward.2} parent=0 // pred_fallthru
    _
  // Predicated region
  $region78: #{parallel_selector_forward.2} parent=0 // pred_check
    _
  $region79: #{parallel_selector_forward.2} parent=0 // pred_check_branch
    %66 = sbr.rel (0) target = $region81
  $region80: #{parallel_selector_forward.2} parent=0 // pred_region
    _
  $region81: #{parallel_selector_forward.2} parent=0 // pred_fallthru
    _
  %v67 = vld [vmem:[%s0] sm:$0xff]
  %v68 = vld [vmem:[%s0 + $0x8] sm:$0xff]
  %v69 = vld [vmem:[%s2] sm:$0xff]
  %v70 = vld [vmem:[%s2 + $0x8] sm:$0xff]
  %v71 = vld [vmem:[%s2 + $0x10] sm:$0xff]
  %v72 = vld [vmem:[%s2 + $0x18] sm:$0xff]
  %v73 = vld [vmem:[%s2 + $0x20] sm:$0xff]
  %v74 = vld [vmem:[%s2 + $0x28] sm:$0xff]
  %v75 = vld [vmem:[%s2 + $0x30] sm:$0xff]
  %v76 = vld [vmem:[%s2 + $0x38] sm:$0xff]
  %v77 = vld [vmem:[%s2 + $0x40] sm:$0xff]
  %v78 = vld [vmem:[%s2 + $0x48] sm:$0xff]
  %v79 = vld [vmem:[%s2 + $0x50] sm:$0xff]
  %v80 = vld [vmem:[%s2 + $0x58] sm:$0xff]
  %v81 = vld [vmem:[%s3] sm:$0x1]
  %v83 = vlaneseq
  %v84 = vshrl.u32 %v83, 7
  %v85 = vsub.s32 0, %v84
  %v86 = vrot.slane %v81, %v85
  %vm88 = vcmask 785408
  %v90 = vsel %vm88, %v67, 0
  %v93 = vsel %vm88, %v68, 0
  %95 = vmatprep.subr.mxu0 0.0
  %96 = vmatpush1.msra.mxu0 %v69
  %97 = vmatprep.subr.mxu0 0.0
  %98 = vmatpush1.msra.mxu0 %v70
  %99 = vmatprep.subr.mxu0 0.0
  %100 = vmatpush1.msra.mxu0 %v71
  %101 = vmatprep.subr.mxu0 0.0
  %102 = vmatpush1.msra.mxu0 %v72
  %103 = vmatprep.subr.mxu0 0.0
  %104 = vmatpush1.msra.mxu0 %v73
  %105 = vmatprep.subr.mxu0 0.0
  %106 = vmatpush1.msra.mxu0 %v74
  %107 = vmatprep.subr.mxu0 0.0
  %108 = vmatpush1.msra.mxu0 %v75
  %109 = vmatprep.subr.mxu0 0.0
  %110 = vmatpush1.msra.mxu0 %v76
  %111 = vmatprep.subr.mxu0 0.0
  %112 = vmatpush1.msra.mxu0 %v77
  %113 = vmatprep.subr.mxu0 0.0
  %114 = vmatpush1.msra.mxu0 %v78
  %115 = vmatprep.subr.mxu0 0.0
  %116 = vmatpush1.msra.mxu0 %v79
  %117 = vmatprep.subr.mxu0 0.0
  %118 = vmatpush1.msra.mxu0 %v80
  %119 = vmatprep.subr.mxu0 0.0
  %120 = vmatpush1.msra.mxu0 0.0
  %121 = vmatprep.subr.mxu0 0.0
  %122 = vmatpush1.msra.mxu0 0.0
  %123 = vmatprep.subr.mxu0 0.0
  %124 = vmatpush1.msra.mxu0 0.0
  %125 = vmatprep.subr.mxu0 0.0
  %126 = vmatpush1.msra.mxu0 0.0
  %127 = vmatprep.subr.mxu0 0.0
  %128 = vmatpush1.msra.mxu0 0.0
  %129 = vmatprep.subr.mxu0 0.0
  %130 = vmatpush1.msra.mxu0 0.0
  %131 = vmatprep.subr.mxu0 0.0
  %132 = vmatpush1.msra.mxu0 0.0
  %133 = vmatprep.subr.mxu0 0.0
  %134 = vmatpush1.msra.mxu0 0.0
  %135 = vmatprep.subr.mxu0 0.0
  %136 = vmatpush1.msra.mxu0 0.0
  %137 = vmatprep.subr.mxu0 0.0
  %138 = vmatpush1.msra.mxu0 0.0
  %139 = vmatprep.subr.mxu0 0.0
  %140 = vmatpush1.msra.mxu0 0.0
  %141 = vmatprep.subr.mxu0 0.0
  %142 = vmatpush1.msra.mxu0 0.0
  %143 = vmatprep.subr.mxu0 0.0
  %144 = vmatpush1.msra.mxu0 0.0
  %145 = vmatprep.subr.mxu0 0.0
  %146 = vmatpush1.msra.mxu0 0.0
  %147 = vmatprep.subr.mxu0 0.0
  %148 = vmatpush1.msra.mxu0 0.0
  %149 = vmatprep.subr.mxu0 0.0
  %150 = vmatpush1.msra.mxu0 0.0
  %151 = vmatprep.subr.mxu0 0.0
  %152 = vmatpush1.msra.mxu0 0.0
  %153 = vmatprep.subr.mxu0 0.0
  %154 = vmatpush1.msra.mxu0 0.0
  %155 = vmatprep.subr.mxu0 0.0
  %156 = vmatpush1.msra.mxu0 0.0
  %157 = vmatprep.subr.mxu0 0.0
  %158 = vmatpush1.msra.mxu0 0.0
  %159 = vmatprep.mubr.f32.mxu0 0.0
  %160 = vmatmul.mubr.f32.gmra.mrb[0].mxu0 %v90
  %v161 = vpop.f32.mrb[0].mxu0
  %v162 = vadd.f32 %v86, %v161
  %v163 = vpop.f32.mrb[0].mxu0
  %164 = vmatprep.mubr.f32.mxu0 0.0
  %165 = vmatmul.mubr.f32.gmra.mrb[0].mxu0 %v93
  %v166 = vpop.f32.mrb[0].mxu0
  %v167 = vadd.f32 %v86, %v166
  %v168 = vpop.f32.mrb[0].mxu0
  %169 = vdwg.mxu0
  %v170 = vld [vmem:[%s1] sm:$0x3]
  %v171 = vld [vmem:[%s4] sm:$0xff]
  %v172 = vld [vmem:[%s4 + $0x8] sm:$0xff]
  %v173 = vld [vmem:[%s5] sm:$0x1]
  %v174 = vld [vmem:[%s6] sm:$0xff]
  %v175 = vld [vmem:[%s6 + $0x8] sm:$0xff]
  %v176 = vld [vmem:[%s7] sm:$0x1]
  %vm177 = vcmp.gt.s32.totalorder %v170, 0
  %v179 = vlaneseq
  %v180 = vshrl.u32 %v179, 7
  %v181 = vsub.s32 0, %v180
  %v182 = vrot.slane %v173, %v181
  %vm184 = vcmask 130048
  %v186 = vsel %vm184, 0.0, 0
  %188 = vmatprep.subr.mxu0 0.0
  %189 = vmatpush1.msra.mxu0 %v171
  %190 = vmatprep.subr.mxu0 0.0
  %191 = vmatpush1.msra.mxu0 %v172
  %192 = vmatprep.subr.mxu0 0.0
  %193 = vmatpush1.msra.mxu0 0.0
  %194 = vmatprep.subr.mxu0 0.0
  %195 = vmatpush1.msra.mxu0 0.0
  %196 = vmatprep.subr.mxu0 0.0
  %197 = vmatpush1.msra.mxu0 0.0
  %198 = vmatprep.subr.mxu0 0.0
  %199 = vmatpush1.msra.mxu0 0.0
  %200 = vmatprep.subr.mxu0 0.0
  %201 = vmatpush1.msra.mxu0 0.0
  %202 = vmatprep.subr.mxu0 0.0
  %203 = vmatpush1.msra.mxu0 0.0
  %204 = vmatprep.subr.mxu0 0.0
  %205 = vmatpush1.msra.mxu0 0.0
  %206 = vmatprep.subr.mxu0 0.0
  %207 = vmatpush1.msra.mxu0 0.0
  %208 = vmatprep.subr.mxu0 0.0
  %209 = vmatpush1.msra.mxu0 0.0
  %210 = vmatprep.subr.mxu0 0.0
  %211 = vmatpush1.msra.mxu0 0.0
  %212 = vmatprep.subr.mxu0 0.0
  %213 = vmatpush1.msra.mxu0 0.0
  %214 = vmatprep.subr.mxu0 0.0
  %215 = vmatpush1.msra.mxu0 0.0
  %216 = vmatprep.subr.mxu0 0.0
  %217 = vmatpush1.msra.mxu0 0.0
  %218 = vmatprep.subr.mxu0 0.0
  %219 = vmatpush1.msra.mxu0 0.0
  %220 = vmatprep.subr.mxu0 0.0
  %221 = vmatpush1.msra.mxu0 0.0
  %222 = vmatprep.subr.mxu0 0.0
  %223 = vmatpush1.msra.mxu0 0.0
  %224 = vmatprep.subr.mxu0 0.0
  %225 = vmatpush1.msra.mxu0 0.0
  %226 = vmatprep.subr.mxu0 0.0
  %227 = vmatpush1.msra.mxu0 0.0
  %228 = vmatprep.subr.mxu0 0.0
  %229 = vmatpush1.msra.mxu0 0.0
  %230 = vmatprep.subr.mxu0 0.0
  %231 = vmatpush1.msra.mxu0 0.0
  %232 = vmatprep.subr.mxu0 0.0
  %233 = vmatpush1.msra.mxu0 0.0
  %234 = vmatprep.subr.mxu0 0.0
  %235 = vmatpush1.msra.mxu0 0.0
  %236 = vmatprep.subr.mxu0 0.0
  %237 = vmatpush1.msra.mxu0 0.0
  %238 = vmatprep.subr.mxu0 0.0
  %239 = vmatpush1.msra.mxu0 0.0
  %240 = vmatprep.subr.mxu0 0.0
  %241 = vmatpush1.msra.mxu0 0.0
  %242 = vmatprep.subr.mxu0 0.0
  %243 = vmatpush1.msra.mxu0 0.0
  %244 = vmatprep.subr.mxu0 0.0
  %245 = vmatpush1.msra.mxu0 0.0
  %246 = vmatprep.subr.mxu0 0.0
  %247 = vmatpush1.msra.mxu0 0.0
  %248 = vmatprep.subr.mxu0 0.0
  %249 = vmatpush1.msra.mxu0 0.0
  %250 = vmatprep.subr.mxu0 0.0
  %251 = vmatpush1.msra.mxu0 0.0
  %252 = vmatprep.mubr.f32.mxu0 0.0
  %253 = vmatmul.mubr.f32.gmra.mrb[0].mxu0 %v186
  %v254 = vpop.f32.mrb[0].mxu0
  %v255 = vadd.f32 %v182, %v254
  %v256 = vpop.f32.mrb[0].mxu0
  %257 = vdwg.mxu0
  %v258 = vadd.f32 %v162, %v255
  %v259 = vsub.f32 0.0, %v258
  %v260 = vmul.f32 %v259, 1.442695
  %v261 = vpow.pop %v260
  %v262 = vadd.f32 %v261, 1.0
  %v263 = vrcp.pop %v262
  %v264 = vmul.f32 1.0, %v263
  %266 = vrot.lane.b32.xlu0 %v255, 96
  %v267 = vpop.permute.xlu0 %266
  %v269 = vmul.f32 %v264, %v267
  %271 = vrot.lane.b32.xlu0 %v269, 32
  %v272 = vpop.permute.xlu0 %271
  %v274 = vadd.f32 %v162, %v272
  %v275 = vtanh.pop %v274
  %v276 = vsub.f32 1.0, %v264
  %278 = vrot.lane.b32.xlu0 %v275, 112
  %v279 = vpop.permute.xlu0 %278
  %v281 = vmul.f32 %v276, %v279
  %v282 = vmul.f32 %v264, 0.0
  %v283 = vadd.f32 %v281, %v282
  %v284 = vsel %vm177, 1, 0
  %285 = vset.pattern.permute.xlu0 0
  %286 = vperm.xlu0 %285, %v284
  %v287 = vpop.permute.xlu0 %286
  %vm288 = vcmp.eq.s32.totalorder %v287, 1
  %v289 = vsel %vm288, %v283, 0.0
  %291 = vrot.lane.b32.xlu0 %v289, 112
  %v292 = vpop.permute.xlu0 %291
  %vm294 = vcmask 123904
  %295 = vst.msk [vmem:[#allocation2] sm:$0x3] %vm294, %v292
  %vm296 = vcmp.gt.s32.totalorder %v170, 7
  %v298 = vlaneseq
  %v299 = vshrl.u32 %v298, 7
  %v300 = vsub.s32 0, %v299
  %v301 = vrot.slane %v176, %v300
  %303 = vmatprep.subr.mxu0 0.0
  %304 = vmatpush1.msra.mxu0 %v174
  %305 = vmatprep.subr.mxu0 0.0
  %306 = vmatpush1.msra.mxu0 %v175
  %307 = vmatprep.subr.mxu0 0.0
  %308 = vmatpush1.msra.mxu0 0.0
  %309 = vmatprep.subr.mxu0 0.0
  %310 = vmatpush1.msra.mxu0 0.0
  %311 = vmatprep.subr.mxu0 0.0
  %312 = vmatpush1.msra.mxu0 0.0
  %313 = vmatprep.subr.mxu0 0.0
  %314 = vmatpush1.msra.mxu0 0.0
  %315 = vmatprep.subr.mxu0 0.0
  %316 = vmatpush1.msra.mxu0 0.0
  %317 = vmatprep.subr.mxu0 0.0
  %318 = vmatpush1.msra.mxu0 0.0
  %319 = vmatprep.subr.mxu0 0.0
  %320 = vmatpush1.msra.mxu0 0.0
  %321 = vmatprep.subr.mxu0 0.0
  %322 = vmatpush1.msra.mxu0 0.0
  %323 = vmatprep.subr.mxu0 0.0
  %324 = vmatpush1.msra.mxu0 0.0
  %325 = vmatprep.subr.mxu0 0.0
  %326 = vmatpush1.msra.mxu0 0.0
  %327 = vmatprep.subr.mxu0 0.0
  %328 = vmatpush1.msra.mxu0 0.0
  %329 = vmatprep.subr.mxu0 0.0
  %330 = vmatpush1.msra.mxu0 0.0
  %331 = vmatprep.subr.mxu0 0.0
  %332 = vmatpush1.msra.mxu0 0.0
  %333 = vmatprep.subr.mxu0 0.0
  %334 = vmatpush1.msra.mxu0 0.0
  %335 = vmatprep.subr.mxu0 0.0
  %336 = vmatpush1.msra.mxu0 0.0
  %337 = vmatprep.subr.mxu0 0.0
  %338 = vmatpush1.msra.mxu0 0.0
  %339 = vmatprep.subr.mxu0 0.0
  %340 = vmatpush1.msra.mxu0 0.0
  %341 = vmatprep.subr.mxu0 0.0
  %342 = vmatpush1.msra.mxu0 0.0
  %343 = vmatprep.subr.mxu0 0.0
  %344 = vmatpush1.msra.mxu0 0.0
  %345 = vmatprep.subr.mxu0 0.0
  %346 = vmatpush1.msra.mxu0 0.0
  %347 = vmatprep.subr.mxu0 0.0
  %348 = vmatpush1.msra.mxu0 0.0
  %349 = vmatprep.subr.mxu0 0.0
  %350 = vmatpush1.msra.mxu0 0.0
  %351 = vmatprep.subr.mxu0 0.0
  %352 = vmatpush1.msra.mxu0 0.0
  %353 = vmatprep.subr.mxu0 0.0
  %354 = vmatpush1.msra.mxu0 0.0
  %355 = vmatprep.subr.mxu0 0.0
  %356 = vmatpush1.msra.mxu0 0.0
  %357 = vmatprep.subr.mxu0 0.0
  %358 = vmatpush1.msra.mxu0 0.0
  %359 = vmatprep.subr.mxu0 0.0
  %360 = vmatpush1.msra.mxu0 0.0
  %361 = vmatprep.subr.mxu0 0.0
  %362 = vmatpush1.msra.mxu0 0.0
  %363 = vmatprep.subr.mxu0 0.0
  %364 = vmatpush1.msra.mxu0 0.0
  %365 = vmatprep.subr.mxu0 0.0
  %366 = vmatpush1.msra.mxu0 0.0
  %367 = vmatprep.mubr.f32.mxu0 0.0
  %368 = vmatmul.mubr.f32.gmra.mrb[0].mxu0 %v186
  %v369 = vpop.f32.mrb[0].mxu0
  %v370 = vadd.f32 %v301, %v369
  %v371 = vpop.f32.mrb[0].mxu0
  %372 = vdwg.mxu0
  %v374 = vrot.slane %v370, 2
  %375 = vrot.lane.b32.xlu0 %v374, 48
  %v376 = vpop.permute.xlu0 %375
  %v378 = vadd.f32 %v167, %v376
  %v379 = vsub.f32 0.0, %v378
  %v380 = vmul.f32 %v379, 1.442695
  %v381 = vpow.pop %v380
  %v382 = vadd.f32 %v381, 1.0
  %v383 = vrcp.pop %v382
  %v384 = vmul.f32 1.0, %v383
  %385 = vrot.lane.b32.xlu0 %v374, 16
  %v386 = vpop.permute.xlu0 %385
  %v388 = vmul.f32 %v384, %v386
  %390 = vrot.lane.b32.xlu0 %v388, 32
  %v391 = vpop.permute.xlu0 %390
  %v393 = vadd.f32 %v167, %v391
  %v394 = vtanh.pop %v393
  %v395 = vsub.f32 1.0, %v384
  %397 = vrot.lane.b32.xlu0 %v394, 112
  %v398 = vpop.permute.xlu0 %397
  %v400 = vmul.f32 %v395, %v398
  %v401 = vmul.f32 %v384, 0.0
  %v402 = vadd.f32 %v400, %v401
  %v403 = vsel %vm296, 1, 0
  %404 = vset.pattern.permute.xlu0 0
  %405 = vperm.xlu0 %404, %v403
  %v406 = vpop.permute.xlu0 %405
  %vm407 = vcmp.eq.s32.totalorder %v406, 1
  %v409 = vrot.slane %v402, 6
  %410 = vrot.lane.b32.xlu0 %v409, 64
  %v411 = vpop.permute.xlu0 %410
  %v413 = vsel %vm407, %v411, 0.0
  %414 = vst.msk [vmem:[#allocation3 + $0xe] sm:$0x3] %vm294, %v413
  %vm415 = vcmp.gt.s32.totalorder %v170, 1
  %v416 = vsel %vm184, %v292, 0
  %418 = vmatprep.subr.mxu0 0.0
  %419 = vmatpush1.msra.mxu0 %v171
  %420 = vmatprep.subr.mxu0 0.0
  %421 = vmatpush1.msra.mxu0 %v172
  %422 = vmatprep.subr.mxu0 0.0
  %423 = vmatpush1.msra.mxu0 0.0
  %424 = vmatprep.subr.mxu0 0.0
  %425 = vmatpush1.msra.mxu0 0.0
  %426 = vmatprep.subr.mxu0 0.0
  %427 = vmatpush1.msra.mxu0 0.0
  %428 = vmatprep.subr.mxu0 0.0
  %429 = vmatpush1.msra.mxu0 0.0
  %430 = vmatprep.subr.mxu0 0.0
  %431 = vmatpush1.msra.mxu0 0.0
  %432 = vmatprep.subr.mxu0 0.0
  %433 = vmatpush1.msra.mxu0 0.0
  %434 = vmatprep.subr.mxu0 0.0
  %435 = vmatpush1.msra.mxu0 0.0
  %436 = vmatprep.subr.mxu0 0.0
  %437 = vmatpush1.msra.mxu0 0.0
  %438 = vmatprep.subr.mxu0 0.0
  %439 = vmatpush1.msra.mxu0 0.0
  %440 = vmatprep.subr.mxu0 0.0
  %441 = vmatpush1.msra.mxu0 0.0
  %442 = vmatprep.subr.mxu0 0.0
  %443 = vmatpush1.msra.mxu0 0.0
  %444 = vmatprep.subr.mxu0 0.0
  %445 = vmatpush1.msra.mxu0 0.0
  %446 = vmatprep.subr.mxu0 0.0
  %447 = vmatpush1.msra.mxu0 0.0
  %448 = vmatprep.subr.mxu0 0.0
  %449 = vmatpush1.msra.mxu0 0.0
  %450 = vmatprep.subr.mxu0 0.0
  %451 = vmatpush1.msra.mxu0 0.0
  %452 = vmatprep.subr.mxu0 0.0
  %453 = vmatpush1.msra.mxu0 0.0
  %454 = vmatprep.subr.mxu0 0.0
  %455 = vmatpush1.msra.mxu0 0.0
  %456 = vmatprep.subr.mxu0 0.0
  %457 = vmatpush1.msra.mxu0 0.0
  %458 = vmatprep.subr.mxu0 0.0
  %459 = vmatpush1.msra.mxu0 0.0
  %460 = vmatprep.subr.mxu0 0.0
  %461 = vmatpush1.msra.mxu0 0.0
  %462 = vmatprep.subr.mxu0 0.0
  %463 = vmatpush1.msra.mxu0 0.0
  %464 = vmatprep.subr.mxu0 0.0
  %465 = vmatpush1.msra.mxu0 0.0
  %466 = vmatprep.subr.mxu0 0.0
  %467 = vmatpush1.msra.mxu0 0.0
  %468 = vmatprep.subr.mxu0 0.0
  %469 = vmatpush1.msra.mxu0 0.0
  %470 = vmatprep.subr.mxu0 0.0
  %471 = vmatpush1.msra.mxu0 0.0
  %472 = vmatprep.subr.mxu0 0.0
  %473 = vmatpush1.msra.mxu0 0.0
  %474 = vmatprep.subr.mxu0 0.0
  %475 = vmatpush1.msra.mxu0 0.0
  %476 = vmatprep.subr.mxu0 0.0
  %477 = vmatpush1.msra.mxu0 0.0
  %478 = vmatprep.subr.mxu0 0.0
  %479 = vmatpush1.msra.mxu0 0.0
  %480 = vmatprep.subr.mxu0 0.0
  %481 = vmatpush1.msra.mxu0 0.0
  %482 = vmatprep.mubr.f32.mxu0 0.0
  %483 = vmatmul.mubr.f32.gmra.mrb[0].mxu0 %v416
  %v484 = vpop.f32.mrb[0].mxu0
  %v485 = vadd.f32 %v182, %v484
  %v486 = vpop.f32.mrb[0].mxu0
  %487 = vdwg.mxu0
  %v489 = vrot.slane %v485, 6
  %v491 = vadd.f32 %v162, %v489
  %v492 = vsub.f32 0.0, %v491
  %v493 = vmul.f32 %v492, 1.442695
  %v494 = vpow.pop %v493
  %v495 = vadd.f32 %v494, 1.0
  %v496 = vrcp.pop %v495
  %v497 = vmul.f32 1.0, %v496
  %498 = vrot.lane.b32.xlu0 %v489, 96
  %v499 = vpop.permute.xlu0 %498
  %v501 = vmul.f32 %v497, %v499
  %503 = vrot.lane.b32.xlu0 %v501, 32
  %v504 = vpop.permute.xlu0 %503
  %v506 = vadd.f32 %v162, %v504
  %v507 = vtanh.pop %v506
  %v508 = vsub.f32 1.0, %v497
  %510 = vrot.lane.b32.xlu0 %v507, 112
  %v511 = vpop.permute.xlu0 %510
  %v513 = vmul.f32 %v508, %v511
  %v514 = vrot.slane %v289, 6
  %v516 = vmul.f32 %v497, %v514
  %v517 = vadd.f32 %v513, %v516
  %v518 = vsel %vm415, 1, 0
  %519 = vset.pattern.permute.xlu0 0
  %520 = vperm.xlu0 %519, %v518
  %v521 = vpop.permute.xlu0 %520
  %vm522 = vcmp.eq.s32.totalorder %v521, 1
  %v524 = vrot.slane %v517, 2
  %525 = vrot.lane.b32.xlu0 %v524, 112
  %v526 = vpop.permute.xlu0 %525
  %v528 = vsel %vm522, %v526, %v292
  %v529 = vsel %vm522, %v526, 0.0
  %530 = vst.msk [vmem:[#allocation2 + $0x2] sm:$0x3] %vm294, %v529
  %vm531 = vcmp.gt.s32.totalorder %v170, 6
  %v533 = vsel %vm184, %v413, 0
  %535 = vmatprep.subr.mxu0 0.0
  %536 = vmatpush1.msra.mxu0 %v174
  %537 = vmatprep.subr.mxu0 0.0
  %538 = vmatpush1.msra.mxu0 %v175
  %539 = vmatprep.subr.mxu0 0.0
  %540 = vmatpush1.msra.mxu0 0.0
  %541 = vmatprep.subr.mxu0 0.0
  %542 = vmatpush1.msra.mxu0 0.0
  %543 = vmatprep.subr.mxu0 0.0
  %544 = vmatpush1.msra.mxu0 0.0
  %545 = vmatprep.subr.mxu0 0.0
  %546 = vmatpush1.msra.mxu0 0.0
  %547 = vmatprep.subr.mxu0 0.0
  %548 = vmatpush1.msra.mxu0 0.0
  %549 = vmatprep.subr.mxu0 0.0
  %550 = vmatpush1.msra.mxu0 0.0
  %551 = vmatprep.subr.mxu0 0.0
  %552 = vmatpush1.msra.mxu0 0.0
  %553 = vmatprep.subr.mxu0 0.0
  %554 = vmatpush1.msra.mxu0 0.0
  %555 = vmatprep.subr.mxu0 0.0
  %556 = vmatpush1.msra.mxu0 0.0
  %557 = vmatprep.subr.mxu0 0.0
  %558 = vmatpush1.msra.mxu0 0.0
  %559 = vmatprep.subr.mxu0 0.0
  %560 = vmatpush1.msra.mxu0 0.0
  %561 = vmatprep.subr.mxu0 0.0
  %562 = vmatpush1.msra.mxu0 0.0
  %563 = vmatprep.subr.mxu0 0.0
  %564 = vmatpush1.msra.mxu0 0.0
  %565 = vmatprep.subr.mxu0 0.0
  %566 = vmatpush1.msra.mxu0 0.0
  %567 = vmatprep.subr.mxu0 0.0
  %568 = vmatpush1.msra.mxu0 0.0
  %569 = vmatprep.subr.mxu0 0.0
  %570 = vmatpush1.msra.mxu0 0.0
  %571 = vmatprep.subr.mxu0 0.0
  %572 = vmatpush1.msra.mxu0 0.0
  %573 = vmatprep.subr.mxu0 0.0
  %574 = vmatpush1.msra.mxu0 0.0
  %575 = vmatprep.subr.mxu0 0.0
  %576 = vmatpush1.msra.mxu0 0.0
  %577 = vmatprep.subr.mxu0 0.0
  %578 = vmatpush1.msra.mxu0 0.0
  %579 = vmatprep.subr.mxu0 0.0
  %580 = vmatpush1.msra.mxu0 0.0
  %581 = vmatprep.subr.mxu0 0.0
  %582 = vmatpush1.msra.mxu0 0.0
  %583 = vmatprep.subr.mxu0 0.0
  %584 = vmatpush1.msra.mxu0 0.0
  %585 = vmatprep.subr.mxu0 0.0
  %586 = vmatpush1.msra.mxu0 0.0
  %587 = vmatprep.subr.mxu0 0.0
  %588 = vmatpush1.msra.mxu0 0.0
  %589 = vmatprep.subr.mxu0 0.0
  %590 = vmatpush1.msra.mxu0 0.0
  %591 = vmatprep.subr.mxu0 0.0
  %592 = vmatpush1.msra.mxu0 0.0
  %593 = vmatprep.subr.mxu0 0.0
  %594 = vmatpush1.msra.mxu0 0.0
  %595 = vmatprep.subr.mxu0 0.0
  %596 = vmatpush1.msra.mxu0 0.0
  %597 = vmatprep.subr.mxu0 0.0
  %598 = vmatpush1.msra.mxu0 0.0
  %599 = vmatprep.mubr.f32.mxu0 0.0
  %600 = vmatmul.mubr.f32.gmra.mrb[0].mxu0 %v533
  %v601 = vpop.f32.mrb[0].mxu0
  %v602 = vadd.f32 %v301, %v601
  %v603 = vpop.f32.mrb[0].mxu0
  %604 = vdwg.mxu0
  %v606 = vrot.slane %v602, 4
  %607 = vrot.lane.b32.xlu0 %v606, 48
  %v608 = vpop.permute.xlu0 %607
  %v610 = vadd.f32 %v167, %v608
  %v611 = vsub.f32 0.0, %v610
  %v612 = vmul.f32 %v611, 1.442695
  %v613 = vpow.pop %v612
  %v614 = vadd.f32 %v613, 1.0
  %v615 = vrcp.pop %v614
  %v616 = vmul.f32 1.0, %v615
  %617 = vrot.lane.b32.xlu0 %v606, 16
  %v618 = vpop.permute.xlu0 %617
  %v620 = vmul.f32 %v616, %v618
  %622 = vrot.lane.b32.xlu0 %v620, 32
  %v623 = vpop.permute.xlu0 %622
  %v625 = vadd.f32 %v167, %v623
  %v626 = vtanh.pop %v625
  %v627 = vsub.f32 1.0, %v616
  %629 = vrot.lane.b32.xlu0 %v626, 112
  %v630 = vpop.permute.xlu0 %629
  %v632 = vmul.f32 %v627, %v630
  %v633 = vrot.slane %v413, 4
  %634 = vrot.lane.b32.xlu0 %v633, 64
  %v635 = vpop.permute.xlu0 %634
  %v637 = vmul.f32 %v616, %v635
  %v638 = vadd.f32 %v632, %v637
  %v639 = vsel %vm531, 1, 0
  %640 = vset.pattern.permute.xlu0 0
  %641 = vperm.xlu0 %640, %v639
  %v642 = vpop.permute.xlu0 %641
  %vm643 = vcmp.eq.s32.totalorder %v642, 1
  %v645 = vrot.slane %v638, 4
  %646 = vrot.lane.b32.xlu0 %v645, 64
  %v647 = vpop.permute.xlu0 %646
  %v649 = vsel %vm643, %v647, %v413
  %v650 = vsel %vm643, %v647, 0.0
  %651 = vst.msk [vmem:[#allocation3 + $0xc] sm:$0x3] %vm294, %v650
  %vm652 = vcmp.gt.s32.totalorder %v170, 2
  %v654 = vsel %vm184, %v528, 0
  %656 = vmatprep.subr.mxu0 0.0
  %657 = vmatpush1.msra.mxu0 %v171
  %658 = vmatprep.subr.mxu0 0.0
  %659 = vmatpush1.msra.mxu0 %v172
  %660 = vmatprep.subr.mxu0 0.0
  %661 = vmatpush1.msra.mxu0 0.0
  %662 = vmatprep.subr.mxu0 0.0
  %663 = vmatpush1.msra.mxu0 0.0
  %664 = vmatprep.subr.mxu0 0.0
  %665 = vmatpush1.msra.mxu0 0.0
  %666 = vmatprep.subr.mxu0 0.0
  %667 = vmatpush1.msra.mxu0 0.0
  %668 = vmatprep.subr.mxu0 0.0
  %669 = vmatpush1.msra.mxu0 0.0
  %670 = vmatprep.subr.mxu0 0.0
  %671 = vmatpush1.msra.mxu0 0.0
  %672 = vmatprep.subr.mxu0 0.0
  %673 = vmatpush1.msra.mxu0 0.0
  %674 = vmatprep.subr.mxu0 0.0
  %675 = vmatpush1.msra.mxu0 0.0
  %676 = vmatprep.subr.mxu0 0.0
  %677 = vmatpush1.msra.mxu0 0.0
  %678 = vmatprep.subr.mxu0 0.0
  %679 = vmatpush1.msra.mxu0 0.0
  %680 = vmatprep.subr.mxu0 0.0
  %681 = vmatpush1.msra.mxu0 0.0
  %682 = vmatprep.subr.mxu0 0.0
  %683 = vmatpush1.msra.mxu0 0.0
  %684 = vmatprep.subr.mxu0 0.0
  %685 = vmatpush1.msra.mxu0 0.0
  %686 = vmatprep.subr.mxu0 0.0
  %687 = vmatpush1.msra.mxu0 0.0
  %688 = vmatprep.subr.mxu0 0.0
  %689 = vmatpush1.msra.mxu0 0.0
  %690 = vmatprep.subr.mxu0 0.0
  %691 = vmatpush1.msra.mxu0 0.0
  %692 = vmatprep.subr.mxu0 0.0
  %693 = vmatpush1.msra.mxu0 0.0
  %694 = vmatprep.subr.mxu0 0.0
  %695 = vmatpush1.msra.mxu0 0.0
  %696 = vmatprep.subr.mxu0 0.0
  %697 = vmatpush1.msra.mxu0 0.0
  %698 = vmatprep.subr.mxu0 0.0
  %699 = vmatpush1.msra.mxu0 0.0
  %700 = vmatprep.subr.mxu0 0.0
  %701 = vmatpush1.msra.mxu0 0.0
  %702 = vmatprep.subr.mxu0 0.0
  %703 = vmatpush1.msra.mxu0 0.0
  %704 = vmatprep.subr.mxu0 0.0
  %705 = vmatpush1.msra.mxu0 0.0
  %706 = vmatprep.subr.mxu0 0.0
  %707 = vmatpush1.msra.mxu0 0.0
  %708 = vmatprep.subr.mxu0 0.0
  %709 = vmatpush1.msra.mxu0 0.0
  %710 = vmatprep.subr.mxu0 0.0
  %711 = vmatpush1.msra.mxu0 0.0
  %712 = vmatprep.subr.mxu0 0.0
  %713 = vmatpush1.msra.mxu0 0.0
  %714 = vmatprep.subr.mxu0 0.0
  %715 = vmatpush1.msra.mxu0 0.0
  %716 = vmatprep.subr.mxu0 0.0
  %717 = vmatpush1.msra.mxu0 0.0
  %718 = vmatprep.subr.mxu0 0.0
  %719 = vmatpush1.msra.mxu0 0.0
  %720 = vmatprep.mubr.f32.mxu0 0.0
  %721 = vmatmul.mubr.f32.gmra.mrb[0].mxu0 %v654
  %v722 = vpop.f32.mrb[0].mxu0
  %v723 = vadd.f32 %v182, %v722
  %v724 = vpop.f32.mrb[0].mxu0
  %725 = vdwg.mxu0
  %v727 = vrot.slane %v723, 4
  %v729 = vadd.f32 %v162, %v727
  %v730 = vsub.f32 0.0, %v729
  %v731 = vmul.f32 %v730, 1.442695
  %v732 = vpow.pop %v731
  %v733 = vadd.f32 %v732, 1.0
  %v734 = vrcp.pop %v733
  %v735 = vmul.f32 1.0, %v734
  %736 = vrot.lane.b32.xlu0 %v727, 96
  %v737 = vpop.permute.xlu0 %736
  %v739 = vmul.f32 %v735, %v737
  %741 = vrot.lane.b32.xlu0 %v739, 32
  %v742 = vpop.permute.xlu0 %741
  %v744 = vadd.f32 %v162, %v742
  %v745 = vtanh.pop %v744
  %v746 = vsub.f32 1.0, %v735
  %748 = vrot.lane.b32.xlu0 %v745, 112
  %v749 = vpop.permute.xlu0 %748
  %v751 = vmul.f32 %v746, %v749
  %v752 = vrot.slane %v528, 4
  %753 = vrot.lane.b32.xlu0 %v752, 16
  %v754 = vpop.permute.xlu0 %753
  %v756 = vmul.f32 %v735, %v754
  %v757 = vadd.f32 %v751, %v756
  %v758 = vsel %vm652, 1, 0
  %759 = vset.pattern.permute.xlu0 0
  %760 = vperm.xlu0 %759, %v758
  %v761 = vpop.permute.xlu0 %760
  %vm762 = vcmp.eq.s32.totalorder %v761, 1
  %v764 = vrot.slane %v757, 4
  %765 = vrot.lane.b32.xlu0 %v764, 112
  %v766 = vpop.permute.xlu0 %765
  %v768 = vsel %vm762, %v766, %v528
  %v769 = vsel %vm762, %v766, 0.0
  %770 = vst.msk [vmem:[#allocation2 + $0x4] sm:$0x3] %vm294, %v769
  %vm771 = vcmp.gt.s32.totalorder %v170, 5
  %v773 = vsel %vm184, %v649, 0
  %775 = vmatprep.subr.mxu0 0.0
  %776 = vmatpush1.msra.mxu0 %v174
  %777 = vmatprep.subr.mxu0 0.0
  %778 = vmatpush1.msra.mxu0 %v175
  %779 = vmatprep.subr.mxu0 0.0
  %780 = vmatpush1.msra.mxu0 0.0
  %781 = vmatprep.subr.mxu0 0.0
  %782 = vmatpush1.msra.mxu0 0.0
  %783 = vmatprep.subr.mxu0 0.0
  %784 = vmatpush1.msra.mxu0 0.0
  %785 = vmatprep.subr.mxu0 0.0
  %786 = vmatpush1.msra.mxu0 0.0
  %787 = vmatprep.subr.mxu0 0.0
  %788 = vmatpush1.msra.mxu0 0.0
  %789 = vmatprep.subr.mxu0 0.0
  %790 = vmatpush1.msra.mxu0 0.0
  %791 = vmatprep.subr.mxu0 0.0
  %792 = vmatpush1.msra.mxu0 0.0
  %793 = vmatprep.subr.mxu0 0.0
  %794 = vmatpush1.msra.mxu0 0.0
  %795 = vmatprep.subr.mxu0 0.0
  %796 = vmatpush1.msra.mxu0 0.0
  %797 = vmatprep.subr.mxu0 0.0
  %798 = vmatpush1.msra.mxu0 0.0
  %799 = vmatprep.subr.mxu0 0.0
  %800 = vmatpush1.msra.mxu0 0.0
  %801 = vmatprep.subr.mxu0 0.0
  %802 = vmatpush1.msra.mxu0 0.0
  %803 = vmatprep.subr.mxu0 0.0
  %804 = vmatpush1.msra.mxu0 0.0
  %805 = vmatprep.subr.mxu0 0.0
  %806 = vmatpush1.msra.mxu0 0.0
  %807 = vmatprep.subr.mxu0 0.0
  %808 = vmatpush1.msra.mxu0 0.0
  %809 = vmatprep.subr.mxu0 0.0
  %810 = vmatpush1.msra.mxu0 0.0
  %811 = vmatprep.subr.mxu0 0.0
  %812 = vmatpush1.msra.mxu0 0.0
  %813 = vmatprep.subr.mxu0 0.0
  %814 = vmatpush1.msra.mxu0 0.0
  %815 = vmatprep.subr.mxu0 0.0
  %816 = vmatpush1.msra.mxu0 0.0
  %817 = vmatprep.subr.mxu0 0.0
  %818 = vmatpush1.msra.mxu0 0.0
  %819 = vmatprep.subr.mxu0 0.0
  %820 = vmatpush1.msra.mxu0 0.0
  %821 = vmatprep.subr.mxu0 0.0
  %822 = vmatpush1.msra.mxu0 0.0
  %823 = vmatprep.subr.mxu0 0.0
  %824 = vmatpush1.msra.mxu0 0.0
  %825 = vmatprep.subr.mxu0 0.0
  %826 = vmatpush1.msra.mxu0 0.0
  %827 = vmatprep.subr.mxu0 0.0
  %828 = vmatpush1.msra.mxu0 0.0
  %829 = vmatprep.subr.mxu0 0.0
  %830 = vmatpush1.msra.mxu0 0.0
  %831 = vmatprep.subr.mxu0 0.0
  %832 = vmatpush1.msra.mxu0 0.0
  %833 = vmatprep.subr.mxu0 0.0
  %834 = vmatpush1.msra.mxu0 0.0
  %835 = vmatprep.subr.mxu0 0.0
  %836 = vmatpush1.msra.mxu0 0.0
  %837 = vmatprep.subr.mxu0 0.0
  %838 = vmatpush1.msra.mxu0 0.0
  %839 = vmatprep.mubr.f32.mxu0 0.0
  %840 = vmatmul.mubr.f32.gmra.mrb[0].mxu0 %v773
  %v841 = vpop.f32.mrb[0].mxu0
  %v842 = vadd.f32 %v301, %v841
  %v843 = vpop.f32.mrb[0].mxu0
  %844 = vdwg.mxu0
  %v846 = vrot.slane %v842, 6
  %847 = vrot.lane.b32.xlu0 %v846, 48
  %v848 = vpop.permute.xlu0 %847
  %v850 = vadd.f32 %v167, %v848
  %v851 = vsub.f32 0.0, %v850
  %v852 = vmul.f32 %v851, 1.442695
  %v853 = vpow.pop %v852
  %v854 = vadd.f32 %v853, 1.0
  %v855 = vrcp.pop %v854
  %v856 = vmul.f32 1.0, %v855
  %857 = vrot.lane.b32.xlu0 %v846, 16
  %v858 = vpop.permute.xlu0 %857
  %v860 = vmul.f32 %v856, %v858
  %862 = vrot.lane.b32.xlu0 %v860, 32
  %v863 = vpop.permute.xlu0 %862
  %v865 = vadd.f32 %v167, %v863
  %v866 = vtanh.pop %v865
  %v867 = vsub.f32 1.0, %v856
  %869 = vrot.lane.b32.xlu0 %v866, 112
  %v870 = vpop.permute.xlu0 %869
  %v872 = vmul.f32 %v867, %v870
  %v873 = vrot.slane %v649, 6
  %874 = vrot.lane.b32.xlu0 %v873, 64
  %v875 = vpop.permute.xlu0 %874
  %v877 = vmul.f32 %v856, %v875
  %v878 = vadd.f32 %v872, %v877
  %v879 = vsel %vm771, 1, 0
  %880 = vset.pattern.permute.xlu0 0
  %881 = vperm.xlu0 %880, %v879
  %v882 = vpop.permute.xlu0 %881
  %vm883 = vcmp.eq.s32.totalorder %v882, 1
  %v885 = vrot.slane %v878, 2
  %886 = vrot.lane.b32.xlu0 %v885, 64
  %v887 = vpop.permute.xlu0 %886
  %v889 = vsel %vm883, %v887, %v649
  %v890 = vsel %vm883, %v887, 0.0
  %891 = vst.msk [vmem:[#allocation3 + $0xa] sm:$0x3] %vm294, %v890
  %vm892 = vcmp.gt.s32.totalorder %v170, 3
  %v894 = vsel %vm184, %v768, 0
  %896 = vmatprep.subr.mxu0 0.0
  %897 = vmatpush1.msra.mxu0 %v171
  %898 = vmatprep.subr.mxu0 0.0
  %899 = vmatpush1.msra.mxu0 %v172
  %900 = vmatprep.subr.mxu0 0.0
  %901 = vmatpush1.msra.mxu0 0.0
  %902 = vmatprep.subr.mxu0 0.0
  %903 = vmatpush1.msra.mxu0 0.0
  %904 = vmatprep.subr.mxu0 0.0
  %905 = vmatpush1.msra.mxu0 0.0
  %906 = vmatprep.subr.mxu0 0.0
  %907 = vmatpush1.msra.mxu0 0.0
  %908 = vmatprep.subr.mxu0 0.0
  %909 = vmatpush1.msra.mxu0 0.0
  %910 = vmatprep.subr.mxu0 0.0
  %911 = vmatpush1.msra.mxu0 0.0
  %912 = vmatprep.subr.mxu0 0.0
  %913 = vmatpush1.msra.mxu0 0.0
  %914 = vmatprep.subr.mxu0 0.0
  %915 = vmatpush1.msra.mxu0 0.0
  %916 = vmatprep.subr.mxu0 0.0
  %917 = vmatpush1.msra.mxu0 0.0
  %918 = vmatprep.subr.mxu0 0.0
  %919 = vmatpush1.msra.mxu0 0.0
  %920 = vmatprep.subr.mxu0 0.0
  %921 = vmatpush1.msra.mxu0 0.0
  %922 = vmatprep.subr.mxu0 0.0
  %923 = vmatpush1.msra.mxu0 0.0
  %924 = vmatprep.subr.mxu0 0.0
  %925 = vmatpush1.msra.mxu0 0.0
  %926 = vmatprep.subr.mxu0 0.0
  %927 = vmatpush1.msra.mxu0 0.0
  %928 = vmatprep.subr.mxu0 0.0
  %929 = vmatpush1.msra.mxu0 0.0
  %930 = vmatprep.subr.mxu0 0.0
  %931 = vmatpush1.msra.mxu0 0.0
  %932 = vmatprep.subr.mxu0 0.0
  %933 = vmatpush1.msra.mxu0 0.0
  %934 = vmatprep.subr.mxu0 0.0
  %935 = vmatpush1.msra.mxu0 0.0
  %936 = vmatprep.subr.mxu0 0.0
  %937 = vmatpush1.msra.mxu0 0.0
  %938 = vmatprep.subr.mxu0 0.0
  %939 = vmatpush1.msra.mxu0 0.0
  %940 = vmatprep.subr.mxu0 0.0
  %941 = vmatpush1.msra.mxu0 0.0
  %942 = vmatprep.subr.mxu0 0.0
  %943 = vmatpush1.msra.mxu0 0.0
  %944 = vmatprep.subr.mxu0 0.0
  %945 = vmatpush1.msra.mxu0 0.0
  %946 = vmatprep.subr.mxu0 0.0
  %947 = vmatpush1.msra.mxu0 0.0
  %948 = vmatprep.subr.mxu0 0.0
  %949 = vmatpush1.msra.mxu0 0.0
  %950 = vmatprep.subr.mxu0 0.0
  %951 = vmatpush1.msra.mxu0 0.0
  %952 = vmatprep.subr.mxu0 0.0
  %953 = vmatpush1.msra.mxu0 0.0
  %954 = vmatprep.subr.mxu0 0.0
  %955 = vmatpush1.msra.mxu0 0.0
  %956 = vmatprep.subr.mxu0 0.0
  %957 = vmatpush1.msra.mxu0 0.0
  %958 = vmatprep.subr.mxu0 0.0
  %959 = vmatpush1.msra.mxu0 0.0
  %960 = vmatprep.mubr.f32.mxu0 0.0
  %961 = vmatmul.mubr.f32.gmra.mrb[0].mxu0 %v894
  %v962 = vpop.f32.mrb[0].mxu0
  %v963 = vadd.f32 %v182, %v962
  %v964 = vpop.f32.mrb[0].mxu0
  %965 = vdwg.mxu0
  %v967 = vrot.slane %v963, 2
  %v969 = vadd.f32 %v162, %v967
  %v970 = vsub.f32 0.0, %v969
  %v971 = vmul.f32 %v970, 1.442695
  %v972 = vpow.pop %v971
  %v973 = vadd.f32 %v972, 1.0
  %v974 = vrcp.pop %v973
  %v975 = vmul.f32 1.0, %v974
  %976 = vrot.lane.b32.xlu0 %v967, 96
  %v977 = vpop.permute.xlu0 %976
  %v979 = vmul.f32 %v975, %v977
  %981 = vrot.lane.b32.xlu0 %v979, 32
  %v982 = vpop.permute.xlu0 %981
  %v984 = vadd.f32 %v162, %v982
  %v985 = vtanh.pop %v984
  %v986 = vsub.f32 1.0, %v975
  %988 = vrot.lane.b32.xlu0 %v985, 112
  %v989 = vpop.permute.xlu0 %988
  %v991 = vmul.f32 %v986, %v989
  %v992 = vrot.slane %v768, 2
  %993 = vrot.lane.b32.xlu0 %v992, 16
  %v994 = vpop.permute.xlu0 %993
  %v996 = vmul.f32 %v975, %v994
  %v997 = vadd.f32 %v991, %v996
  %v998 = vsel %vm892, 1, 0
  %999 = vset.pattern.permute.xlu0 0
  %1000 = vperm.xlu0 %999, %v998
  %v1001 = vpop.permute.xlu0 %1000
  %vm1002 = vcmp.eq.s32.totalorder %v1001, 1
  %v1004 = vrot.slane %v997, 6
  %1005 = vrot.lane.b32.xlu0 %v1004, 112
  %v1006 = vpop.permute.xlu0 %1005
  %v1008 = vsel %vm1002, %v1006, %v768
  %v1009 = vsel %vm1002, %v1006, 0.0
  %1010 = vst.msk [vmem:[#allocation2 + $0x6] sm:$0x3] %vm294, %v1009
  %vm1011 = vcmp.gt.s32.totalorder %v170, 4
  %v1013 = vsel %vm184, %v889, 0
  %1015 = vmatprep.subr.mxu0 0.0
  %1016 = vmatpush1.msra.mxu0 %v174
  %1017 = vmatprep.subr.mxu0 0.0
  %1018 = vmatpush1.msra.mxu0 %v175
  %1019 = vmatprep.subr.mxu0 0.0
  %1020 = vmatpush1.msra.mxu0 0.0
  %1021 = vmatprep.subr.mxu0 0.0
  %1022 = vmatpush1.msra.mxu0 0.0
  %1023 = vmatprep.subr.mxu0 0.0
  %1024 = vmatpush1.msra.mxu0 0.0
  %1025 = vmatprep.subr.mxu0 0.0
  %1026 = vmatpush1.msra.mxu0 0.0
  %1027 = vmatprep.subr.mxu0 0.0
  %1028 = vmatpush1.msra.mxu0 0.0
  %1029 = vmatprep.subr.mxu0 0.0
  %1030 = vmatpush1.msra.mxu0 0.0
  %1031 = vmatprep.subr.mxu0 0.0
  %1032 = vmatpush1.msra.mxu0 0.0
  %1033 = vmatprep.subr.mxu0 0.0
  %1034 = vmatpush1.msra.mxu0 0.0
  %1035 = vmatprep.subr.mxu0 0.0
  %1036 = vmatpush1.msra.mxu0 0.0
  %1037 = vmatprep.subr.mxu0 0.0
  %1038 = vmatpush1.msra.mxu0 0.0
  %1039 = vmatprep.subr.mxu0 0.0
  %1040 = vmatpush1.msra.mxu0 0.0
  %1041 = vmatprep.subr.mxu0 0.0
  %1042 = vmatpush1.msra.mxu0 0.0
  %1043 = vmatprep.subr.mxu0 0.0
  %1044 = vmatpush1.msra.mxu0 0.0
  %1045 = vmatprep.subr.mxu0 0.0
  %1046 = vmatpush1.msra.mxu0 0.0
  %1047 = vmatprep.subr.mxu0 0.0
  %1048 = vmatpush1.msra.mxu0 0.0
  %1049 = vmatprep.subr.mxu0 0.0
  %1050 = vmatpush1.msra.mxu0 0.0
  %1051 = vmatprep.subr.mxu0 0.0
  %1052 = vmatpush1.msra.mxu0 0.0
  %1053 = vmatprep.subr.mxu0 0.0
  %1054 = vmatpush1.msra.mxu0 0.0
  %1055 = vmatprep.subr.mxu0 0.0
  %1056 = vmatpush1.msra.mxu0 0.0
  %1057 = vmatprep.subr.mxu0 0.0
  %1058 = vmatpush1.msra.mxu0 0.0
  %1059 = vmatprep.subr.mxu0 0.0
  %1060 = vmatpush1.msra.mxu0 0.0
  %1061 = vmatprep.subr.mxu0 0.0
  %1062 = vmatpush1.msra.mxu0 0.0
  %1063 = vmatprep.subr.mxu0 0.0
  %1064 = vmatpush1.msra.mxu0 0.0
  %1065 = vmatprep.subr.mxu0 0.0
  %1066 = vmatpush1.msra.mxu0 0.0
  %1067 = vmatprep.subr.mxu0 0.0
  %1068 = vmatpush1.msra.mxu0 0.0
  %1069 = vmatprep.subr.mxu0 0.0
  %1070 = vmatpush1.msra.mxu0 0.0
  %1071 = vmatprep.subr.mxu0 0.0
  %1072 = vmatpush1.msra.mxu0 0.0
  %1073 = vmatprep.subr.mxu0 0.0
  %1074 = vmatpush1.msra.mxu0 0.0
  %1075 = vmatprep.subr.mxu0 0.0
  %1076 = vmatpush1.msra.mxu0 0.0
  %1077 = vmatprep.subr.mxu0 0.0
  %1078 = vmatpush1.msra.mxu0 0.0
  %1079 = vmatprep.mubr.f32.mxu0 0.0
  %1080 = vmatmul.mubr.f32.gmra.mrb[0].mxu0 %v1013
  %v1081 = vpop.f32.mrb[0].mxu0
  %v1082 = vadd.f32 %v301, %v1081
  %v1083 = vpop.f32.mrb[0].mxu0
  %1084 = vdwg.mxu0
  %1086 = vrot.lane.b32.xlu0 %v1082, 48
  %v1087 = vpop.permute.xlu0 %1086
  %v1089 = vadd.f32 %v167, %v1087
  %v1090 = vsub.f32 0.0, %v1089
  %v1091 = vmul.f32 %v1090, 1.442695
  %v1092 = vpow.pop %v1091
  %v1093 = vadd.f32 %v1092, 1.0
  %v1094 = vrcp.pop %v1093
  %v1095 = vmul.f32 1.0, %v1094
  %1096 = vrot.lane.b32.xlu0 %v1082, 16
  %v1097 = vpop.permute.xlu0 %1096
  %v1099 = vmul.f32 %v1095, %v1097
  %1101 = vrot.lane.b32.xlu0 %v1099, 32
  %v1102 = vpop.permute.xlu0 %1101
  %v1104 = vadd.f32 %v167, %v1102
  %v1105 = vtanh.pop %v1104
  %v1106 = vsub.f32 1.0, %v1095
  %1108 = vrot.lane.b32.xlu0 %v1105, 112
  %v1109 = vpop.permute.xlu0 %1108
  %v1111 = vmul.f32 %v1106, %v1109
  %1112 = vrot.lane.b32.xlu0 %v889, 64
  %v1113 = vpop.permute.xlu0 %1112
  %v1115 = vmul.f32 %v1095, %v1113
  %v1116 = vadd.f32 %v1111, %v1115
  %v1117 = vsel %vm1011, 1, 0
  %1118 = vset.pattern.permute.xlu0 0
  %1119 = vperm.xlu0 %1118, %v1117
  %v1120 = vpop.permute.xlu0 %1119
  %vm1121 = vcmp.eq.s32.totalorder %v1120, 1
  %v1122 = vsel %vm1121, %v1116, %v1113
  %v1123 = vsel %vm1121, %v1116, 0.0
  %1125 = vrot.lane.b32.xlu0 %v1123, 64
  %v1126 = vpop.permute.xlu0 %1125
  %1128 = vst.msk [vmem:[#allocation3 + $0x8] sm:$0x3] %vm294, %v1126
  %v1130 = vsel %vm184, %v1008, 0
  %1132 = vmatprep.subr.mxu0 0.0
  %1133 = vmatpush1.msra.mxu0 %v171
  %1134 = vmatprep.subr.mxu0 0.0
  %1135 = vmatpush1.msra.mxu0 %v172
  %1136 = vmatprep.subr.mxu0 0.0
  %1137 = vmatpush1.msra.mxu0 0.0
  %1138 = vmatprep.subr.mxu0 0.0
  %1139 = vmatpush1.msra.mxu0 0.0
  %1140 = vmatprep.subr.mxu0 0.0
  %1141 = vmatpush1.msra.mxu0 0.0
  %1142 = vmatprep.subr.mxu0 0.0
  %1143 = vmatpush1.msra.mxu0 0.0
  %1144 = vmatprep.subr.mxu0 0.0
  %1145 = vmatpush1.msra.mxu0 0.0
  %1146 = vmatprep.subr.mxu0 0.0
  %1147 = vmatpush1.msra.mxu0 0.0
  %1148 = vmatprep.subr.mxu0 0.0
  %1149 = vmatpush1.msra.mxu0 0.0
  %1150 = vmatprep.subr.mxu0 0.0
  %1151 = vmatpush1.msra.mxu0 0.0
  %1152 = vmatprep.subr.mxu0 0.0
  %1153 = vmatpush1.msra.mxu0 0.0
  %1154 = vmatprep.subr.mxu0 0.0
  %1155 = vmatpush1.msra.mxu0 0.0
  %1156 = vmatprep.subr.mxu0 0.0
  %1157 = vmatpush1.msra.mxu0 0.0
  %1158 = vmatprep.subr.mxu0 0.0
  %1159 = vmatpush1.msra.mxu0 0.0
  %1160 = vmatprep.subr.mxu0 0.0
  %1161 = vmatpush1.msra.mxu0 0.0
  %1162 = vmatprep.subr.mxu0 0.0
  %1163 = vmatpush1.msra.mxu0 0.0
  %1164 = vmatprep.subr.mxu0 0.0
  %1165 = vmatpush1.msra.mxu0 0.0
  %1166 = vmatprep.subr.mxu0 0.0
  %1167 = vmatpush1.msra.mxu0 0.0
  %1168 = vmatprep.subr.mxu0 0.0
  %1169 = vmatpush1.msra.mxu0 0.0
  %1170 = vmatprep.subr.mxu0 0.0
  %1171 = vmatpush1.msra.mxu0 0.0
  %1172 = vmatprep.subr.mxu0 0.0
  %1173 = vmatpush1.msra.mxu0 0.0
  %1174 = vmatprep.subr.mxu0 0.0
  %1175 = vmatpush1.msra.mxu0 0.0
  %1176 = vmatprep.subr.mxu0 0.0
  %1177 = vmatpush1.msra.mxu0 0.0
  %1178 = vmatprep.subr.mxu0 0.0
  %1179 = vmatpush1.msra.mxu0 0.0
  %1180 = vmatprep.subr.mxu0 0.0
  %1181 = vmatpush1.msra.mxu0 0.0
  %1182 = vmatprep.subr.mxu0 0.0
  %1183 = vmatpush1.msra.mxu0 0.0
  %1184 = vmatprep.subr.mxu0 0.0
  %1185 = vmatpush1.msra.mxu0 0.0
  %1186 = vmatprep.subr.mxu0 0.0
  %1187 = vmatpush1.msra.mxu0 0.0
  %1188 = vmatprep.subr.mxu0 0.0
  %1189 = vmatpush1.msra.mxu0 0.0
  %1190 = vmatprep.subr.mxu0 0.0
  %1191 = vmatpush1.msra.mxu0 0.0
  %1192 = vmatprep.subr.mxu0 0.0
  %1193 = vmatpush1.msra.mxu0 0.0
  %1194 = vmatprep.subr.mxu0 0.0
  %1195 = vmatpush1.msra.mxu0 0.0
  %1196 = vmatprep.mubr.f32.mxu0 0.0
  %1197 = vmatmul.mubr.f32.gmra.mrb[0].mxu0 %v1130
  %v1198 = vpop.f32.mrb[0].mxu0
  %v1199 = vadd.f32 %v182, %v1198
  %v1200 = vpop.f32.mrb[0].mxu0
  %1201 = vdwg.mxu0
  %v1202 = vadd.f32 %v167, %v1199
  %v1203 = vsub.f32 0.0, %v1202
  %v1204 = vmul.f32 %v1203, 1.442695
  %v1205 = vpow.pop %v1204
  %v1206 = vadd.f32 %v1205, 1.0
  %v1207 = vrcp.pop %v1206
  %v1208 = vmul.f32 1.0, %v1207
  %1210 = vrot.lane.b32.xlu0 %v1199, 96
  %v1211 = vpop.permute.xlu0 %1210
  %v1213 = vmul.f32 %v1208, %v1211
  %1215 = vrot.lane.b32.xlu0 %v1213, 32
  %v1216 = vpop.permute.xlu0 %1215
  %v1218 = vadd.f32 %v167, %v1216
  %v1219 = vtanh.pop %v1218
  %v1220 = vsub.f32 1.0, %v1208
  %1222 = vrot.lane.b32.xlu0 %v1219, 112
  %v1223 = vpop.permute.xlu0 %1222
  %v1225 = vmul.f32 %v1220, %v1223
  %1226 = vrot.lane.b32.xlu0 %v1008, 16
  %v1227 = vpop.permute.xlu0 %1226
  %v1229 = vmul.f32 %v1208, %v1227
  %v1230 = vadd.f32 %v1225, %v1229
  %v1231 = vsel %vm1121, %v1230, %v1227
  %v1232 = vsel %vm1121, %v1230, 0.0
  %1234 = vrot.lane.b32.xlu0 %v1232, 112
  %v1235 = vpop.permute.xlu0 %1234
  %1237 = vst.msk [vmem:[#allocation2 + $0x8] sm:$0x3] %vm294, %v1235
  %1239 = vrot.lane.b32.xlu0 %v1122, 64
  %v1240 = vpop.permute.xlu0 %1239
  %v1241 = vsel %vm184, %v1240, 0
  %1243 = vmatprep.subr.mxu0 0.0
  %1244 = vmatpush1.msra.mxu0 %v174
  %1245 = vmatprep.subr.mxu0 0.0
  %1246 = vmatpush1.msra.mxu0 %v175
  %1247 = vmatprep.subr.mxu0 0.0
  %1248 = vmatpush1.msra.mxu0 0.0
  %1249 = vmatprep.subr.mxu0 0.0
  %1250 = vmatpush1.msra.mxu0 0.0
  %1251 = vmatprep.subr.mxu0 0.0
  %1252 = vmatpush1.msra.mxu0 0.0
  %1253 = vmatprep.subr.mxu0 0.0
  %1254 = vmatpush1.msra.mxu0 0.0
  %1255 = vmatprep.subr.mxu0 0.0
  %1256 = vmatpush1.msra.mxu0 0.0
  %1257 = vmatprep.subr.mxu0 0.0
  %1258 = vmatpush1.msra.mxu0 0.0
  %1259 = vmatprep.subr.mxu0 0.0
  %1260 = vmatpush1.msra.mxu0 0.0
  %1261 = vmatprep.subr.mxu0 0.0
  %1262 = vmatpush1.msra.mxu0 0.0
  %1263 = vmatprep.subr.mxu0 0.0
  %1264 = vmatpush1.msra.mxu0 0.0
  %1265 = vmatprep.subr.mxu0 0.0
  %1266 = vmatpush1.msra.mxu0 0.0
  %1267 = vmatprep.subr.mxu0 0.0
  %1268 = vmatpush1.msra.mxu0 0.0
  %1269 = vmatprep.subr.mxu0 0.0
  %1270 = vmatpush1.msra.mxu0 0.0
  %1271 = vmatprep.subr.mxu0 0.0
  %1272 = vmatpush1.msra.mxu0 0.0
  %1273 = vmatprep.subr.mxu0 0.0
  %1274 = vmatpush1.msra.mxu0 0.0
  %1275 = vmatprep.subr.mxu0 0.0
  %1276 = vmatpush1.msra.mxu0 0.0
  %1277 = vmatprep.subr.mxu0 0.0
  %1278 = vmatpush1.msra.mxu0 0.0
  %1279 = vmatprep.subr.mxu0 0.0
  %1280 = vmatpush1.msra.mxu0 0.0
  %1281 = vmatprep.subr.mxu0 0.0
  %1282 = vmatpush1.msra.mxu0 0.0
  %1283 = vmatprep.subr.mxu0 0.0
  %1284 = vmatpush1.msra.mxu0 0.0
  %1285 = vmatprep.subr.mxu0 0.0
  %1286 = vmatpush1.msra.mxu0 0.0
  %1287 = vmatprep.subr.mxu0 0.0
  %1288 = vmatpush1.msra.mxu0 0.0
  %1289 = vmatprep.subr.mxu0 0.0
  %1290 = vmatpush1.msra.mxu0 0.0
  %1291 = vmatprep.subr.mxu0 0.0
  %1292 = vmatpush1.msra.mxu0 0.0
  %1293 = vmatprep.subr.mxu0 0.0
  %1294 = vmatpush1.msra.mxu0 0.0
  %1295 = vmatprep.subr.mxu0 0.0
  %1296 = vmatpush1.msra.mxu0 0.0
  %1297 = vmatprep.subr.mxu0 0.0
  %1298 = vmatpush1.msra.mxu0 0.0
  %1299 = vmatprep.subr.mxu0 0.0
  %1300 = vmatpush1.msra.mxu0 0.0
  %1301 = vmatprep.subr.mxu0 0.0
  %1302 = vmatpush1.msra.mxu0 0.0
  %1303 = vmatprep.subr.mxu0 0.0
  %1304 = vmatpush1.msra.mxu0 0.0
  %1305 = vmatprep.subr.mxu0 0.0
  %1306 = vmatpush1.msra.mxu0 0.0
  %1307 = vmatprep.mubr.f32.mxu0 0.0
  %1308 = vmatmul.mubr.f32.gmra.mrb[0].mxu0 %v1241
  %v1309 = vpop.f32.mrb[0].mxu0
  %v1310 = vadd.f32 %v301, %v1309
  %v1311 = vpop.f32.mrb[0].mxu0
  %1312 = vdwg.mxu0
  %v1314 = vrot.slane %v1310, 2
  %1315 = vrot.lane.b32.xlu0 %v1314, 48
  %v1316 = vpop.permute.xlu0 %1315
  %v1318 = vadd.f32 %v162, %v1316
  %v1319 = vsub.f32 0.0, %v1318
  %v1320 = vmul.f32 %v1319, 1.442695
  %v1321 = vpow.pop %v1320
  %v1322 = vadd.f32 %v1321, 1.0
  %v1323 = vrcp.pop %v1322
  %v1324 = vmul.f32 1.0, %v1323
  %1325 = vrot.lane.b32.xlu0 %v1314, 16
  %v1326 = vpop.permute.xlu0 %1325
  %v1328 = vmul.f32 %v1324, %v1326
  %1330 = vrot.lane.b32.xlu0 %v1328, 32
  %v1331 = vpop.permute.xlu0 %1330
  %v1333 = vadd.f32 %v162, %v1331
  %v1334 = vtanh.pop %v1333
  %v1335 = vsub.f32 1.0, %v1324
  %1337 = vrot.lane.b32.xlu0 %v1334, 112
  %v1338 = vpop.permute.xlu0 %1337
  %v1340 = vmul.f32 %v1335, %v1338
  %v1341 = vrot.slane %v1122, 2
  %v1343 = vmul.f32 %v1324, %v1341
  %v1344 = vadd.f32 %v1340, %v1343
  %v1346 = vrot.slane %v1344, 6
  %1347 = vrot.lane.b32.xlu0 %v1346, 64
  %v1348 = vpop.permute.xlu0 %1347
  %v1351 = vsel %vm1002, %v1348, %v1240
  %v1352 = vsel %vm1002, %v1348, 0.0
  %1353 = vst.msk [vmem:[#allocation3 + $0x6] sm:$0x3] %vm294, %v1352
  %1355 = vrot.lane.b32.xlu0 %v1231, 112
  %v1356 = vpop.permute.xlu0 %1355
  %v1357 = vsel %vm184, %v1356, 0
  %1359 = vmatprep.subr.mxu0 0.0
  %1360 = vmatpush1.msra.mxu0 %v171
  %1361 = vmatprep.subr.mxu0 0.0
  %1362 = vmatpush1.msra.mxu0 %v172
  %1363 = vmatprep.subr.mxu0 0.0
  %1364 = vmatpush1.msra.mxu0 0.0
  %1365 = vmatprep.subr.mxu0 0.0
  %1366 = vmatpush1.msra.mxu0 0.0
  %1367 = vmatprep.subr.mxu0 0.0
  %1368 = vmatpush1.msra.mxu0 0.0
  %1369 = vmatprep.subr.mxu0 0.0
  %1370 = vmatpush1.msra.mxu0 0.0
  %1371 = vmatprep.subr.mxu0 0.0
  %1372 = vmatpush1.msra.mxu0 0.0
  %1373 = vmatprep.subr.mxu0 0.0
  %1374 = vmatpush1.msra.mxu0 0.0
  %1375 = vmatprep.subr.mxu0 0.0
  %1376 = vmatpush1.msra.mxu0 0.0
  %1377 = vmatprep.subr.mxu0 0.0
  %1378 = vmatpush1.msra.mxu0 0.0
  %1379 = vmatprep.subr.mxu0 0.0
  %1380 = vmatpush1.msra.mxu0 0.0
  %1381 = vmatprep.subr.mxu0 0.0
  %1382 = vmatpush1.msra.mxu0 0.0
  %1383 = vmatprep.subr.mxu0 0.0
  %1384 = vmatpush1.msra.mxu0 0.0
  %1385 = vmatprep.subr.mxu0 0.0
  %1386 = vmatpush1.msra.mxu0 0.0
  %1387 = vmatprep.subr.mxu0 0.0
  %1388 = vmatpush1.msra.mxu0 0.0
  %1389 = vmatprep.subr.mxu0 0.0
  %1390 = vmatpush1.msra.mxu0 0.0
  %1391 = vmatprep.subr.mxu0 0.0
  %1392 = vmatpush1.msra.mxu0 0.0
  %1393 = vmatprep.subr.mxu0 0.0
  %1394 = vmatpush1.msra.mxu0 0.0
  %1395 = vmatprep.subr.mxu0 0.0
  %1396 = vmatpush1.msra.mxu0 0.0
  %1397 = vmatprep.subr.mxu0 0.0
  %1398 = vmatpush1.msra.mxu0 0.0
  %1399 = vmatprep.subr.mxu0 0.0
  %1400 = vmatpush1.msra.mxu0 0.0
  %1401 = vmatprep.subr.mxu0 0.0
  %1402 = vmatpush1.msra.mxu0 0.0
  %1403 = vmatprep.subr.mxu0 0.0
  %1404 = vmatpush1.msra.mxu0 0.0
  %1405 = vmatprep.subr.mxu0 0.0
  %1406 = vmatpush1.msra.mxu0 0.0
  %1407 = vmatprep.subr.mxu0 0.0
  %1408 = vmatpush1.msra.mxu0 0.0
  %1409 = vmatprep.subr.mxu0 0.0
  %1410 = vmatpush1.msra.mxu0 0.0
  %1411 = vmatprep.subr.mxu0 0.0
  %1412 = vmatpush1.msra.mxu0 0.0
  %1413 = vmatprep.subr.mxu0 0.0
  %1414 = vmatpush1.msra.mxu0 0.0
  %1415 = vmatprep.subr.mxu0 0.0
  %1416 = vmatpush1.msra.mxu0 0.0
  %1417 = vmatprep.subr.mxu0 0.0
  %1418 = vmatpush1.msra.mxu0 0.0
  %1419 = vmatprep.subr.mxu0 0.0
  %1420 = vmatpush1.msra.mxu0 0.0
  %1421 = vmatprep.subr.mxu0 0.0
  %1422 = vmatpush1.msra.mxu0 0.0
  %1423 = vmatprep.mubr.f32.mxu0 0.0
  %1424 = vmatmul.mubr.f32.gmra.mrb[0].mxu0 %v1357
  %v1425 = vpop.f32.mrb[0].mxu0
  %v1426 = vadd.f32 %v182, %v1425
  %v1427 = vpop.f32.mrb[0].mxu0
  %1428 = vdwg.mxu0
  %v1430 = vrot.slane %v1426, 6
  %v1432 = vadd.f32 %v167, %v1430
  %v1433 = vsub.f32 0.0, %v1432
  %v1434 = vmul.f32 %v1433, 1.442695
  %v1435 = vpow.pop %v1434
  %v1436 = vadd.f32 %v1435, 1.0
  %v1437 = vrcp.pop %v1436
  %v1438 = vmul.f32 1.0, %v1437
  %1439 = vrot.lane.b32.xlu0 %v1430, 96
  %v1440 = vpop.permute.xlu0 %1439
  %v1442 = vmul.f32 %v1438, %v1440
  %1444 = vrot.lane.b32.xlu0 %v1442, 32
  %v1445 = vpop.permute.xlu0 %1444
  %v1447 = vadd.f32 %v167, %v1445
  %v1448 = vtanh.pop %v1447
  %v1449 = vsub.f32 1.0, %v1438
  %1451 = vrot.lane.b32.xlu0 %v1448, 112
  %v1452 = vpop.permute.xlu0 %1451
  %v1454 = vmul.f32 %v1449, %v1452
  %v1455 = vrot.slane %v1231, 6
  %v1457 = vmul.f32 %v1438, %v1455
  %v1458 = vadd.f32 %v1454, %v1457
  %v1460 = vrot.slane %v1458, 2
  %1461 = vrot.lane.b32.xlu0 %v1460, 112
  %v1462 = vpop.permute.xlu0 %1461
  %v1465 = vsel %vm883, %v1462, %v1356
  %v1466 = vsel %vm883, %v1462, 0.0
  %1467 = vst.msk [vmem:[#allocation2 + $0xa] sm:$0x3] %vm294, %v1466
  %v1469 = vsel %vm184, %v1351, 0
  %1471 = vmatprep.subr.mxu0 0.0
  %1472 = vmatpush1.msra.mxu0 %v174
  %1473 = vmatprep.subr.mxu0 0.0
  %1474 = vmatpush1.msra.mxu0 %v175
  %1475 = vmatprep.subr.mxu0 0.0
  %1476 = vmatpush1.msra.mxu0 0.0
  %1477 = vmatprep.subr.mxu0 0.0
  %1478 = vmatpush1.msra.mxu0 0.0
  %1479 = vmatprep.subr.mxu0 0.0
  %1480 = vmatpush1.msra.mxu0 0.0
  %1481 = vmatprep.subr.mxu0 0.0
  %1482 = vmatpush1.msra.mxu0 0.0
  %1483 = vmatprep.subr.mxu0 0.0
  %1484 = vmatpush1.msra.mxu0 0.0
  %1485 = vmatprep.subr.mxu0 0.0
  %1486 = vmatpush1.msra.mxu0 0.0
  %1487 = vmatprep.subr.mxu0 0.0
  %1488 = vmatpush1.msra.mxu0 0.0
  %1489 = vmatprep.subr.mxu0 0.0
  %1490 = vmatpush1.msra.mxu0 0.0
  %1491 = vmatprep.subr.mxu0 0.0
  %1492 = vmatpush1.msra.mxu0 0.0
  %1493 = vmatprep.subr.mxu0 0.0
  %1494 = vmatpush1.msra.mxu0 0.0
  %1495 = vmatprep.subr.mxu0 0.0
  %1496 = vmatpush1.msra.mxu0 0.0
  %1497 = vmatprep.subr.mxu0 0.0
  %1498 = vmatpush1.msra.mxu0 0.0
  %1499 = vmatprep.subr.mxu0 0.0
  %1500 = vmatpush1.msra.mxu0 0.0
  %1501 = vmatprep.subr.mxu0 0.0
  %1502 = vmatpush1.msra.mxu0 0.0
  %1503 = vmatprep.subr.mxu0 0.0
  %1504 = vmatpush1.msra.mxu0 0.0
  %1505 = vmatprep.subr.mxu0 0.0
  %1506 = vmatpush1.msra.mxu0 0.0
  %1507 = vmatprep.subr.mxu0 0.0
  %1508 = vmatpush1.msra.mxu0 0.0
  %1509 = vmatprep.subr.mxu0 0.0
  %1510 = vmatpush1.msra.mxu0 0.0
  %1511 = vmatprep.subr.mxu0 0.0
  %1512 = vmatpush1.msra.mxu0 0.0
  %1513 = vmatprep.subr.mxu0 0.0
  %1514 = vmatpush1.msra.mxu0 0.0
  %1515 = vmatprep.subr.mxu0 0.0
  %1516 = vmatpush1.msra.mxu0 0.0
  %1517 = vmatprep.subr.mxu0 0.0
  %1518 = vmatpush1.msra.mxu0 0.0
  %1519 = vmatprep.subr.mxu0 0.0
  %1520 = vmatpush1.msra.mxu0 0.0
  %1521 = vmatprep.subr.mxu0 0.0
  %1522 = vmatpush1.msra.mxu0 0.0
  %1523 = vmatprep.subr.mxu0 0.0
  %1524 = vmatpush1.msra.mxu0 0.0
  %1525 = vmatprep.subr.mxu0 0.0
  %1526 = vmatpush1.msra.mxu0 0.0
  %1527 = vmatprep.subr.mxu0 0.0
  %1528 = vmatpush1.msra.mxu0 0.0
  %1529 = vmatprep.subr.mxu0 0.0
  %1530 = vmatpush1.msra.mxu0 0.0
  %1531 = vmatprep.subr.mxu0 0.0
  %1532 = vmatpush1.msra.mxu0 0.0
  %1533 = vmatprep.subr.mxu0 0.0
  %1534 = vmatpush1.msra.mxu0 0.0
  %1535 = vmatprep.mubr.f32.mxu0 0.0
  %1536 = vmatmul.mubr.f32.gmra.mrb[0].mxu0 %v1469
  %v1537 = vpop.f32.mrb[0].mxu0
  %v1538 = vadd.f32 %v301, %v1537
  %v1539 = vpop.f32.mrb[0].mxu0
  %1540 = vdwg.mxu0
  %v1542 = vrot.slane %v1538, 4
  %1543 = vrot.lane.b32.xlu0 %v1542, 48
  %v1544 = vpop.permute.xlu0 %1543
  %v1546 = vadd.f32 %v162, %v1544
  %v1547 = vsub.f32 0.0, %v1546
  %v1548 = vmul.f32 %v1547, 1.442695
  %v1549 = vpow.pop %v1548
  %v1550 = vadd.f32 %v1549, 1.0
  %v1551 = vrcp.pop %v1550
  %v1552 = vmul.f32 1.0, %v1551
  %1553 = vrot.lane.b32.xlu0 %v1542, 16
  %v1554 = vpop.permute.xlu0 %1553
  %v1556 = vmul.f32 %v1552, %v1554
  %1558 = vrot.lane.b32.xlu0 %v1556, 32
  %v1559 = vpop.permute.xlu0 %1558
  %v1561 = vadd.f32 %v162, %v1559
  %v1562 = vtanh.pop %v1561
  %v1563 = vsub.f32 1.0, %v1552
  %1565 = vrot.lane.b32.xlu0 %v1562, 112
  %v1566 = vpop.permute.xlu0 %1565
  %v1568 = vmul.f32 %v1563, %v1566
  %v1569 = vrot.slane %v1351, 4
  %1570 = vrot.lane.b32.xlu0 %v1569, 64
  %v1571 = vpop.permute.xlu0 %1570
  %v1573 = vmul.f32 %v1552, %v1571
  %v1574 = vadd.f32 %v1568, %v1573
  %v1576 = vrot.slane %v1574, 4
  %1577 = vrot.lane.b32.xlu0 %v1576, 64
  %v1578 = vpop.permute.xlu0 %1577
  %v1580 = vsel %vm762, %v1578, %v1351
  %v1581 = vsel %vm762, %v1578, 0.0
  %1582 = vst.msk [vmem:[#allocation3 + $0x4] sm:$0x3] %vm294, %v1581
  %v1584 = vsel %vm184, %v1465, 0
  %1586 = vmatprep.subr.mxu0 0.0
  %1587 = vmatpush1.msra.mxu0 %v171
  %1588 = vmatprep.subr.mxu0 0.0
  %1589 = vmatpush1.msra.mxu0 %v172
  %1590 = vmatprep.subr.mxu0 0.0
  %1591 = vmatpush1.msra.mxu0 0.0
  %1592 = vmatprep.subr.mxu0 0.0
  %1593 = vmatpush1.msra.mxu0 0.0
  %1594 = vmatprep.subr.mxu0 0.0
  %1595 = vmatpush1.msra.mxu0 0.0
  %1596 = vmatprep.subr.mxu0 0.0
  %1597 = vmatpush1.msra.mxu0 0.0
  %1598 = vmatprep.subr.mxu0 0.0
  %1599 = vmatpush1.msra.mxu0 0.0
  %1600 = vmatprep.subr.mxu0 0.0
  %1601 = vmatpush1.msra.mxu0 0.0
  %1602 = vmatprep.subr.mxu0 0.0
  %1603 = vmatpush1.msra.mxu0 0.0
  %1604 = vmatprep.subr.mxu0 0.0
  %1605 = vmatpush1.msra.mxu0 0.0
  %1606 = vmatprep.subr.mxu0 0.0
  %1607 = vmatpush1.msra.mxu0 0.0
  %1608 = vmatprep.subr.mxu0 0.0
  %1609 = vmatpush1.msra.mxu0 0.0
  %1610 = vmatprep.subr.mxu0 0.0
  %1611 = vmatpush1.msra.mxu0 0.0
  %1612 = vmatprep.subr.mxu0 0.0
  %1613 = vmatpush1.msra.mxu0 0.0
  %1614 = vmatprep.subr.mxu0 0.0
  %1615 = vmatpush1.msra.mxu0 0.0
  %1616 = vmatprep.subr.mxu0 0.0
  %1617 = vmatpush1.msra.mxu0 0.0
  %1618 = vmatprep.subr.mxu0 0.0
  %1619 = vmatpush1.msra.mxu0 0.0
  %1620 = vmatprep.subr.mxu0 0.0
  %1621 = vmatpush1.msra.mxu0 0.0
  %1622 = vmatprep.subr.mxu0 0.0
  %1623 = vmatpush1.msra.mxu0 0.0
  %1624 = vmatprep.subr.mxu0 0.0
  %1625 = vmatpush1.msra.mxu0 0.0
  %1626 = vmatprep.subr.mxu0 0.0
  %1627 = vmatpush1.msra.mxu0 0.0
  %1628 = vmatprep.subr.mxu0 0.0
  %1629 = vmatpush1.msra.mxu0 0.0
  %1630 = vmatprep.subr.mxu0 0.0
  %1631 = vmatpush1.msra.mxu0 0.0
  %1632 = vmatprep.subr.mxu0 0.0
  %1633 = vmatpush1.msra.mxu0 0.0
  %1634 = vmatprep.subr.mxu0 0.0
  %1635 = vmatpush1.msra.mxu0 0.0
  %1636 = vmatprep.subr.mxu0 0.0
  %1637 = vmatpush1.msra.mxu0 0.0
  %1638 = vmatprep.subr.mxu0 0.0
  %1639 = vmatpush1.msra.mxu0 0.0
  %1640 = vmatprep.subr.mxu0 0.0
  %1641 = vmatpush1.msra.mxu0 0.0
  %1642 = vmatprep.subr.mxu0 0.0
  %1643 = vmatpush1.msra.mxu0 0.0
  %1644 = vmatprep.subr.mxu0 0.0
  %1645 = vmatpush1.msra.mxu0 0.0
  %1646 = vmatprep.subr.mxu0 0.0
  %1647 = vmatpush1.msra.mxu0 0.0
  %1648 = vmatprep.subr.mxu0 0.0
  %1649 = vmatpush1.msra.mxu0 0.0
  %1650 = vmatprep.mubr.f32.mxu0 0.0
  %1651 = vmatmul.mubr.f32.gmra.mrb[0].mxu0 %v1584
  %v1652 = vpop.f32.mrb[0].mxu0
  %v1653 = vadd.f32 %v182, %v1652
  %v1654 = vpop.f32.mrb[0].mxu0
  %1655 = vdwg.mxu0
  %v1657 = vrot.slane %v1653, 4
  %v1659 = vadd.f32 %v167, %v1657
  %v1660 = vsub.f32 0.0, %v1659
  %v1661 = vmul.f32 %v1660, 1.442695
  %v1662 = vpow.pop %v1661
  %v1663 = vadd.f32 %v1662, 1.0
  %v1664 = vrcp.pop %v1663
  %v1665 = vmul.f32 1.0, %v1664
  %1666 = vrot.lane.b32.xlu0 %v1657, 96
  %v1667 = vpop.permute.xlu0 %1666
  %v1669 = vmul.f32 %v1665, %v1667
  %1671 = vrot.lane.b32.xlu0 %v1669, 32
  %v1672 = vpop.permute.xlu0 %1671
  %v1674 = vadd.f32 %v167, %v1672
  %v1675 = vtanh.pop %v1674
  %v1676 = vsub.f32 1.0, %v1665
  %1678 = vrot.lane.b32.xlu0 %v1675, 112
  %v1679 = vpop.permute.xlu0 %1678
  %v1681 = vmul.f32 %v1676, %v1679
  %v1682 = vrot.slane %v1465, 4
  %1683 = vrot.lane.b32.xlu0 %v1682, 16
  %v1684 = vpop.permute.xlu0 %1683
  %v1686 = vmul.f32 %v1665, %v1684
  %v1687 = vadd.f32 %v1681, %v1686
  %v1689 = vrot.slane %v1687, 4
  %1690 = vrot.lane.b32.xlu0 %v1689, 112
  %v1691 = vpop.permute.xlu0 %1690
  %v1693 = vsel %vm643, %v1691, %v1465
  %v1694 = vsel %vm643, %v1691, 0.0
  %1695 = vst.msk [vmem:[#allocation2 + $0xc] sm:$0x3] %vm294, %v1694
  %v1697 = vsel %vm184, %v1580, 0
  %1699 = vmatprep.subr.mxu0 0.0
  %1700 = vmatpush1.msra.mxu0 %v174
  %1701 = vmatprep.subr.mxu0 0.0
  %1702 = vmatpush1.msra.mxu0 %v175
  %1703 = vmatprep.subr.mxu0 0.0
  %1704 = vmatpush1.msra.mxu0 0.0
  %1705 = vmatprep.subr.mxu0 0.0
  %1706 = vmatpush1.msra.mxu0 0.0
  %1707 = vmatprep.subr.mxu0 0.0
  %1708 = vmatpush1.msra.mxu0 0.0
  %1709 = vmatprep.subr.mxu0 0.0
  %1710 = vmatpush1.msra.mxu0 0.0
  %1711 = vmatprep.subr.mxu0 0.0
  %1712 = vmatpush1.msra.mxu0 0.0
  %1713 = vmatprep.subr.mxu0 0.0
  %1714 = vmatpush1.msra.mxu0 0.0
  %1715 = vmatprep.subr.mxu0 0.0
  %1716 = vmatpush1.msra.mxu0 0.0
  %1717 = vmatprep.subr.mxu0 0.0
  %1718 = vmatpush1.msra.mxu0 0.0
  %1719 = vmatprep.subr.mxu0 0.0
  %1720 = vmatpush1.msra.mxu0 0.0
  %1721 = vmatprep.subr.mxu0 0.0
  %1722 = vmatpush1.msra.mxu0 0.0
  %1723 = vmatprep.subr.mxu0 0.0
  %1724 = vmatpush1.msra.mxu0 0.0
  %1725 = vmatprep.subr.mxu0 0.0
  %1726 = vmatpush1.msra.mxu0 0.0
  %1727 = vmatprep.subr.mxu0 0.0
  %1728 = vmatpush1.msra.mxu0 0.0
  %1729 = vmatprep.subr.mxu0 0.0
  %1730 = vmatpush1.msra.mxu0 0.0
  %1731 = vmatprep.subr.mxu0 0.0
  %1732 = vmatpush1.msra.mxu0 0.0
  %1733 = vmatprep.subr.mxu0 0.0
  %1734 = vmatpush1.msra.mxu0 0.0
  %1735 = vmatprep.subr.mxu0 0.0
  %1736 = vmatpush1.msra.mxu0 0.0
  %1737 = vmatprep.subr.mxu0 0.0
  %1738 = vmatpush1.msra.mxu0 0.0
  %1739 = vmatprep.subr.mxu0 0.0
  %1740 = vmatpush1.msra.mxu0 0.0
  %1741 = vmatprep.subr.mxu0 0.0
  %1742 = vmatpush1.msra.mxu0 0.0
  %1743 = vmatprep.subr.mxu0 0.0
  %1744 = vmatpush1.msra.mxu0 0.0
  %1745 = vmatprep.subr.mxu0 0.0
  %1746 = vmatpush1.msra.mxu0 0.0
  %1747 = vmatprep.subr.mxu0 0.0
  %1748 = vmatpush1.msra.mxu0 0.0
  %1749 = vmatprep.subr.mxu0 0.0
  %1750 = vmatpush1.msra.mxu0 0.0
  %1751 = vmatprep.subr.mxu0 0.0
  %1752 = vmatpush1.msra.mxu0 0.0
  %1753 = vmatprep.subr.mxu0 0.0
  %1754 = vmatpush1.msra.mxu0 0.0
  %1755 = vmatprep.subr.mxu0 0.0
  %1756 = vmatpush1.msra.mxu0 0.0
  %1757 = vmatprep.subr.mxu0 0.0
  %1758 = vmatpush1.msra.mxu0 0.0
  %1759 = vmatprep.subr.mxu0 0.0
  %1760 = vmatpush1.msra.mxu0 0.0
  %1761 = vmatprep.subr.mxu0 0.0
  %1762 = vmatpush1.msra.mxu0 0.0
  %1763 = vmatprep.mubr.f32.mxu0 0.0
  %1764 = vmatmul.mubr.f32.gmra.mrb[0].mxu0 %v1697
  %v1765 = vpop.f32.mrb[0].mxu0
  %v1766 = vadd.f32 %v301, %v1765
  %v1767 = vpop.f32.mrb[0].mxu0
  %1768 = vdwg.mxu0
  %v1770 = vrot.slane %v1766, 6
  %1771 = vrot.lane.b32.xlu0 %v1770, 48
  %v1772 = vpop.permute.xlu0 %1771
  %v1774 = vadd.f32 %v162, %v1772
  %v1775 = vsub.f32 0.0, %v1774
  %v1776 = vmul.f32 %v1775, 1.442695
  %v1777 = vpow.pop %v1776
  %v1778 = vadd.f32 %v1777, 1.0
  %v1779 = vrcp.pop %v1778
  %v1780 = vmul.f32 1.0, %v1779
  %1781 = vrot.lane.b32.xlu0 %v1770, 16
  %v1782 = vpop.permute.xlu0 %1781
  %v1784 = vmul.f32 %v1780, %v1782
  %1786 = vrot.lane.b32.xlu0 %v1784, 32
  %v1787 = vpop.permute.xlu0 %1786
  %v1789 = vadd.f32 %v162, %v1787
  %v1790 = vtanh.pop %v1789
  %v1791 = vsub.f32 1.0, %v1780
  %1793 = vrot.lane.b32.xlu0 %v1790, 112
  %v1794 = vpop.permute.xlu0 %1793
  %v1796 = vmul.f32 %v1791, %v1794
  %v1797 = vrot.slane %v1580, 6
  %1798 = vrot.lane.b32.xlu0 %v1797, 64
  %v1799 = vpop.permute.xlu0 %1798
  %v1801 = vmul.f32 %v1780, %v1799
  %v1802 = vadd.f32 %v1796, %v1801
  %v1804 = vrot.slane %v1802, 2
  %1805 = vrot.lane.b32.xlu0 %v1804, 64
  %v1806 = vpop.permute.xlu0 %1805
  %v1808 = vsel %vm522, %v1806, %v1580
  %v1809 = vsel %vm522, %v1806, 0.0
  %1810 = vst.msk [vmem:[#allocation3 + $0x2] sm:$0x3] %vm294, %v1809
  %v1812 = vsel %vm184, %v1693, 0
  %1814 = vmatprep.subr.mxu0 0.0
  %1815 = vmatpush1.msra.mxu0 %v171
  %1816 = vmatprep.subr.mxu0 0.0
  %1817 = vmatpush1.msra.mxu0 %v172
  %1818 = vmatprep.subr.mxu0 0.0
  %1819 = vmatpush1.msra.mxu0 0.0
  %1820 = vmatprep.subr.mxu0 0.0
  %1821 = vmatpush1.msra.mxu0 0.0
  %1822 = vmatprep.subr.mxu0 0.0
  %1823 = vmatpush1.msra.mxu0 0.0
  %1824 = vmatprep.subr.mxu0 0.0
  %1825 = vmatpush1.msra.mxu0 0.0
  %1826 = vmatprep.subr.mxu0 0.0
  %1827 = vmatpush1.msra.mxu0 0.0
  %1828 = vmatprep.subr.mxu0 0.0
  %1829 = vmatpush1.msra.mxu0 0.0
  %1830 = vmatprep.subr.mxu0 0.0
  %1831 = vmatpush1.msra.mxu0 0.0
  %1832 = vmatprep.subr.mxu0 0.0
  %1833 = vmatpush1.msra.mxu0 0.0
  %1834 = vmatprep.subr.mxu0 0.0
  %1835 = vmatpush1.msra.mxu0 0.0
  %1836 = vmatprep.subr.mxu0 0.0
  %1837 = vmatpush1.msra.mxu0 0.0
  %1838 = vmatprep.subr.mxu0 0.0
  %1839 = vmatpush1.msra.mxu0 0.0
  %1840 = vmatprep.subr.mxu0 0.0
  %1841 = vmatpush1.msra.mxu0 0.0
  %1842 = vmatprep.subr.mxu0 0.0
  %1843 = vmatpush1.msra.mxu0 0.0
  %1844 = vmatprep.subr.mxu0 0.0
  %1845 = vmatpush1.msra.mxu0 0.0
  %1846 = vmatprep.subr.mxu0 0.0
  %1847 = vmatpush1.msra.mxu0 0.0
  %1848 = vmatprep.subr.mxu0 0.0
  %1849 = vmatpush1.msra.mxu0 0.0
  %1850 = vmatprep.subr.mxu0 0.0
  %1851 = vmatpush1.msra.mxu0 0.0
  %1852 = vmatprep.subr.mxu0 0.0
  %1853 = vmatpush1.msra.mxu0 0.0
  %1854 = vmatprep.subr.mxu0 0.0
  %1855 = vmatpush1.msra.mxu0 0.0
  %1856 = vmatprep.subr.mxu0 0.0
  %1857 = vmatpush1.msra.mxu0 0.0
  %1858 = vmatprep.subr.mxu0 0.0
  %1859 = vmatpush1.msra.mxu0 0.0
  %1860 = vmatprep.subr.mxu0 0.0
  %1861 = vmatpush1.msra.mxu0 0.0
  %1862 = vmatprep.subr.mxu0 0.0
  %1863 = vmatpush1.msra.mxu0 0.0
  %1864 = vmatprep.subr.mxu0 0.0
  %1865 = vmatpush1.msra.mxu0 0.0
  %1866 = vmatprep.subr.mxu0 0.0
  %1867 = vmatpush1.msra.mxu0 0.0
  %1868 = vmatprep.subr.mxu0 0.0
  %1869 = vmatpush1.msra.mxu0 0.0
  %1870 = vmatprep.subr.mxu0 0.0
  %1871 = vmatpush1.msra.mxu0 0.0
  %1872 = vmatprep.subr.mxu0 0.0
  %1873 = vmatpush1.msra.mxu0 0.0
  %1874 = vmatprep.subr.mxu0 0.0
  %1875 = vmatpush1.msra.mxu0 0.0
  %1876 = vmatprep.subr.mxu0 0.0
  %1877 = vmatpush1.msra.mxu0 0.0
  %1878 = vmatprep.mubr.f32.mxu0 0.0
  %1879 = vmatmul.mubr.f32.gmra.mrb[0].mxu0 %v1812
  %v1880 = vpop.f32.mrb[0].mxu0
  %v1881 = vadd.f32 %v182, %v1880
  %v1882 = vpop.f32.mrb[0].mxu0
  %1883 = vdwg.mxu0
  %v1885 = vrot.slane %v1881, 2
  %v1887 = vadd.f32 %v167, %v1885
  %v1888 = vsub.f32 0.0, %v1887
  %v1889 = vmul.f32 %v1888, 1.442695
  %v1890 = vpow.pop %v1889
  %v1891 = vadd.f32 %v1890, 1.0
  %v1892 = vrcp.pop %v1891
  %v1893 = vmul.f32 1.0, %v1892
  %1894 = vrot.lane.b32.xlu0 %v1885, 96
  %v1895 = vpop.permute.xlu0 %1894
  %v1897 = vmul.f32 %v1893, %v1895
  %1899 = vrot.lane.b32.xlu0 %v1897, 32
  %v1900 = vpop.permute.xlu0 %1899
  %v1902 = vadd.f32 %v167, %v1900
  %v1903 = vtanh.pop %v1902
  %v1904 = vsub.f32 1.0, %v1893
  %1906 = vrot.lane.b32.xlu0 %v1903, 112
  %v1907 = vpop.permute.xlu0 %1906
  %v1909 = vmul.f32 %v1904, %v1907
  %v1910 = vrot.slane %v1693, 2
  %1911 = vrot.lane.b32.xlu0 %v1910, 16
  %v1912 = vpop.permute.xlu0 %1911
  %v1914 = vmul.f32 %v1893, %v1912
  %v1915 = vadd.f32 %v1909, %v1914
  %v1917 = vrot.slane %v1915, 6
  %1918 = vrot.lane.b32.xlu0 %v1917, 112
  %v1919 = vpop.permute.xlu0 %1918
  %v1921 = vsel %vm407, %v1919, %v1693
  %v1922 = vsel %vm407, %v1919, 0.0
  %1923 = vst.msk [vmem:[#allocation2 + $0xe] sm:$0x3] %vm294, %v1922
  %v1925 = vsel %vm184, %v1808, 0
  %1927 = vmatprep.subr.mxu0 0.0
  %1928 = vmatpush1.msra.mxu0 %v174
  %1929 = vmatprep.subr.mxu0 0.0
  %1930 = vmatpush1.msra.mxu0 %v175
  %1931 = vmatprep.subr.mxu0 0.0
  %1932 = vmatpush1.msra.mxu0 0.0
  %1933 = vmatprep.subr.mxu0 0.0
  %1934 = vmatpush1.msra.mxu0 0.0
  %1935 = vmatprep.subr.mxu0 0.0
  %1936 = vmatpush1.msra.mxu0 0.0
  %1937 = vmatprep.subr.mxu0 0.0
  %1938 = vmatpush1.msra.mxu0 0.0
  %1939 = vmatprep.subr.mxu0 0.0
  %1940 = vmatpush1.msra.mxu0 0.0
  %1941 = vmatprep.subr.mxu0 0.0
  %1942 = vmatpush1.msra.mxu0 0.0
  %1943 = vmatprep.subr.mxu0 0.0
  %1944 = vmatpush1.msra.mxu0 0.0
  %1945 = vmatprep.subr.mxu0 0.0
  %1946 = vmatpush1.msra.mxu0 0.0
  %1947 = vmatprep.subr.mxu0 0.0
  %1948 = vmatpush1.msra.mxu0 0.0
  %1949 = vmatprep.subr.mxu0 0.0
  %1950 = vmatpush1.msra.mxu0 0.0
  %1951 = vmatprep.subr.mxu0 0.0
  %1952 = vmatpush1.msra.mxu0 0.0
  %1953 = vmatprep.subr.mxu0 0.0
  %1954 = vmatpush1.msra.mxu0 0.0
  %1955 = vmatprep.subr.mxu0 0.0
  %1956 = vmatpush1.msra.mxu0 0.0
  %1957 = vmatprep.subr.mxu0 0.0
  %1958 = vmatpush1.msra.mxu0 0.0
  %1959 = vmatprep.subr.mxu0 0.0
  %1960 = vmatpush1.msra.mxu0 0.0
  %1961 = vmatprep.subr.mxu0 0.0
  %1962 = vmatpush1.msra.mxu0 0.0
  %1963 = vmatprep.subr.mxu0 0.0
  %1964 = vmatpush1.msra.mxu0 0.0
  %1965 = vmatprep.subr.mxu0 0.0
  %1966 = vmatpush1.msra.mxu0 0.0
  %1967 = vmatprep.subr.mxu0 0.0
  %1968 = vmatpush1.msra.mxu0 0.0
  %1969 = vmatprep.subr.mxu0 0.0
  %1970 = vmatpush1.msra.mxu0 0.0
  %1971 = vmatprep.subr.mxu0 0.0
  %1972 = vmatpush1.msra.mxu0 0.0
  %1973 = vmatprep.subr.mxu0 0.0
  %1974 = vmatpush1.msra.mxu0 0.0
  %1975 = vmatprep.subr.mxu0 0.0
  %1976 = vmatpush1.msra.mxu0 0.0
  %1977 = vmatprep.subr.mxu0 0.0
  %1978 = vmatpush1.msra.mxu0 0.0
  %1979 = vmatprep.subr.mxu0 0.0
  %1980 = vmatpush1.msra.mxu0 0.0
  %1981 = vmatprep.subr.mxu0 0.0
  %1982 = vmatpush1.msra.mxu0 0.0
  %1983 = vmatprep.subr.mxu0 0.0
  %1984 = vmatpush1.msra.mxu0 0.0
  %1985 = vmatprep.subr.mxu0 0.0
  %1986 = vmatpush1.msra.mxu0 0.0
  %1987 = vmatprep.subr.mxu0 0.0
  %1988 = vmatpush1.msra.mxu0 0.0
  %1989 = vmatprep.subr.mxu0 0.0
  %1990 = vmatpush1.msra.mxu0 0.0
  %1991 = vmatprep.mubr.f32.mxu0 0.0
  %1992 = vmatmul.mubr.f32.gmra.mrb[0].mxu0 %v1925
  %v1993 = vpop.f32.mrb[0].mxu0
  %v1994 = vadd.f32 %v301, %v1993
  %v1995 = vpop.f32.mrb[0].mxu0
  %1996 = vdwg.mxu0
  %1998 = vrot.lane.b32.xlu0 %v1994, 48
  %v1999 = vpop.permute.xlu0 %1998
  %v2001 = vadd.f32 %v162, %v1999
  %v2002 = vsub.f32 0.0, %v2001
  %v2003 = vmul.f32 %v2002, 1.442695
  %v2004 = vpow.pop %v2003
  %v2005 = vadd.f32 %v2004, 1.0
  %v2006 = vrcp.pop %v2005
  %v2007 = vmul.f32 1.0, %v2006
  %2008 = vrot.lane.b32.xlu0 %v1994, 16
  %v2009 = vpop.permute.xlu0 %2008
  %v2011 = vmul.f32 %v2007, %v2009
  %2013 = vrot.lane.b32.xlu0 %v2011, 32
  %v2014 = vpop.permute.xlu0 %2013
  %v2016 = vadd.f32 %v162, %v2014
  %v2017 = vtanh.pop %v2016
  %v2018 = vsub.f32 1.0, %v2007
  %2020 = vrot.lane.b32.xlu0 %v2017, 112
  %v2021 = vpop.permute.xlu0 %2020
  %v2023 = vmul.f32 %v2018, %v2021
  %2024 = vrot.lane.b32.xlu0 %v1808, 64
  %v2025 = vpop.permute.xlu0 %2024
  %v2027 = vmul.f32 %v2007, %v2025
  %v2028 = vadd.f32 %v2023, %v2027
  %v2029 = vsel %vm288, %v2028, %v2025
  %v2030 = vsel %vm288, %v2028, 0.0
  %2032 = vrot.lane.b32.xlu0 %v2030, 64
  %v2033 = vpop.permute.xlu0 %2032
  %2035 = vst.msk [vmem:[#allocation3] sm:$0x3] %vm294, %v2033
  %v2036 = vld [vmem:[#allocation2] sm:$0xff]
  %v2037 = vld [vmem:[#allocation2 + $0x8] sm:$0xff]
  %v2038 = vld [vmem:[#allocation3] sm:$0xff]
  %v2039 = vld [vmem:[#allocation3 + $0x8] sm:$0xff]
  %2042 = vrot.lane.b32.xlu0 %v2038, 16
  %v2043 = vpop.permute.xlu0 %2042
  %2044 = vrot.lane.b32.xlu0 %v2039, 16
  %v2045 = vpop.permute.xlu0 %2044
  %v2048 = vsel %vm184, %v2036, %v2043
  %v2049 = vsel %vm184, %v2037, %v2045
  %v2050 = vld [vmem:[%s8] sm:$0xff]
  %v2051 = vld [vmem:[%s8 + $0x8] sm:$0xff]
  %v2052 = vld [vmem:[%s8 + $0x10] sm:$0xff]
  %v2053 = vld [vmem:[%s8 + $0x18] sm:$0xff]
  %v2054 = vld [vmem:[%s9] sm:$0x1]
  %v2056 = vlaneseq
  %v2057 = vshrl.u32 %v2056, 7
  %v2058 = vsub.s32 0, %v2057
  %v2059 = vrot.slane %v2054, %v2058
  %vm2061 = vcmask 261120
  %v2063 = vsel %vm2061, %v2048, 0
  %v2066 = vsel %vm2061, %v2049, 0
  %2068 = vmatprep.subr.mxu0 0.0
  %2069 = vmatpush1.msra.mxu0 %v2050
  %2070 = vmatprep.subr.mxu0 0.0
  %2071 = vmatpush1.msra.mxu0 %v2051
  %2072 = vmatprep.subr.mxu0 0.0
  %2073 = vmatpush1.msra.mxu0 %v2052
  %2074 = vmatprep.subr.mxu0 0.0
  %2075 = vmatpush1.msra.mxu0 %v2053
  %2076 = vmatprep.subr.mxu0 0.0
  %2077 = vmatpush1.msra.mxu0 0.0
  %2078 = vmatprep.subr.mxu0 0.0
  %2079 = vmatpush1.msra.mxu0 0.0
  %2080 = vmatprep.subr.mxu0 0.0
  %2081 = vmatpush1.msra.mxu0 0.0
  %2082 = vmatprep.subr.mxu0 0.0
  %2083 = vmatpush1.msra.mxu0 0.0
  %2084 = vmatprep.subr.mxu0 0.0
  %2085 = vmatpush1.msra.mxu0 0.0
  %2086 = vmatprep.subr.mxu0 0.0
  %2087 = vmatpush1.msra.mxu0 0.0
  %2088 = vmatprep.subr.mxu0 0.0
  %2089 = vmatpush1.msra.mxu0 0.0
  %2090 = vmatprep.subr.mxu0 0.0
  %2091 = vmatpush1.msra.mxu0 0.0
  %2092 = vmatprep.subr.mxu0 0.0
  %2093 = vmatpush1.msra.mxu0 0.0
  %2094 = vmatprep.subr.mxu0 0.0
  %2095 = vmatpush1.msra.mxu0 0.0
  %2096 = vmatprep.subr.mxu0 0.0
  %2097 = vmatpush1.msra.mxu0 0.0
  %2098 = vmatprep.subr.mxu0 0.0
  %2099 = vmatpush1.msra.mxu0 0.0
  %2100 = vmatprep.subr.mxu0 0.0
  %2101 = vmatpush1.msra.mxu0 0.0
  %2102 = vmatprep.subr.mxu0 0.0
  %2103 = vmatpush1.msra.mxu0 0.0
  %2104 = vmatprep.subr.mxu0 0.0
  %2105 = vmatpush1.msra.mxu0 0.0
  %2106 = vmatprep.subr.mxu0 0.0
  %2107 = vmatpush1.msra.mxu0 0.0
  %2108 = vmatprep.subr.mxu0 0.0
  %2109 = vmatpush1.msra.mxu0 0.0
  %2110 = vmatprep.subr.mxu0 0.0
  %2111 = vmatpush1.msra.mxu0 0.0
  %2112 = vmatprep.subr.mxu0 0.0
  %2113 = vmatpush1.msra.mxu0 0.0
  %2114 = vmatprep.subr.mxu0 0.0
  %2115 = vmatpush1.msra.mxu0 0.0
  %2116 = vmatprep.subr.mxu0 0.0
  %2117 = vmatpush1.msra.mxu0 0.0
  %2118 = vmatprep.subr.mxu0 0.0
  %2119 = vmatpush1.msra.mxu0 0.0
  %2120 = vmatprep.subr.mxu0 0.0
  %2121 = vmatpush1.msra.mxu0 0.0
  %2122 = vmatprep.subr.mxu0 0.0
  %2123 = vmatpush1.msra.mxu0 0.0
  %2124 = vmatprep.subr.mxu0 0.0
  %2125 = vmatpush1.msra.mxu0 0.0
  %2126 = vmatprep.subr.mxu0 0.0
  %2127 = vmatpush1.msra.mxu0 0.0
  %2128 = vmatprep.subr.mxu0 0.0
  %2129 = vmatpush1.msra.mxu0 0.0
  %2130 = vmatprep.subr.mxu0 0.0
  %2131 = vmatpush1.msra.mxu0 0.0
  %2132 = vmatprep.mubr.f32.mxu0 0.0
  %2133 = vmatmul.mubr.f32.gmra.mrb[0].mxu0 %v2063
  %v2134 = vpop.f32.mrb[0].mxu0
  %v2135 = vadd.f32 %v2059, %v2134
  %v2136 = vpop.f32.mrb[0].mxu0
  %2137 = vmatprep.mubr.f32.mxu0 0.0
  %2138 = vmatmul.mubr.f32.gmra.mrb[0].mxu0 %v2066
  %v2139 = vpop.f32.mrb[0].mxu0
  %v2140 = vadd.f32 %v2059, %v2139
  %v2141 = vpop.f32.mrb[0].mxu0
  %2142 = vdwg.mxu0
  %s2143 = scalar_lea.vmem %s8, 32
  %v2144 = vld [vmem:[%s2143] sm:$0xff]
  %v2145 = vld [vmem:[%s2143 + $0x8] sm:$0xff]
  %v2146 = vld [vmem:[%s2143 + $0x10] sm:$0xff]
  %v2147 = vld [vmem:[%s2143 + $0x18] sm:$0xff]
  %2148 = vmatprep.subr.mxu0 0.0
  %2149 = vmatpush1.msra.mxu0 %v2144
  %2150 = vmatprep.subr.mxu0 0.0
  %2151 = vmatpush1.msra.mxu0 %v2145
  %2152 = vmatprep.subr.mxu0 0.0
  %2153 = vmatpush1.msra.mxu0 %v2146
  %2154 = vmatprep.subr.mxu0 0.0
  %2155 = vmatpush1.msra.mxu0 %v2147
  %2156 = vmatprep.subr.mxu0 0.0
  %2157 = vmatpush1.msra.mxu0 0.0
  %2158 = vmatprep.subr.mxu0 0.0
  %2159 = vmatpush1.msra.mxu0 0.0
  %2160 = vmatprep.subr.mxu0 0.0
  %2161 = vmatpush1.msra.mxu0 0.0
  %2162 = vmatprep.subr.mxu0 0.0
  %2163 = vmatpush1.msra.mxu0 0.0
  %2164 = vmatprep.subr.mxu0 0.0
  %2165 = vmatpush1.msra.mxu0 0.0
  %2166 = vmatprep.subr.mxu0 0.0
  %2167 = vmatpush1.msra.mxu0 0.0
  %2168 = vmatprep.subr.mxu0 0.0
  %2169 = vmatpush1.msra.mxu0 0.0
  %2170 = vmatprep.subr.mxu0 0.0
  %2171 = vmatpush1.msra.mxu0 0.0
  %2172 = vmatprep.subr.mxu0 0.0
  %2173 = vmatpush1.msra.mxu0 0.0
  %2174 = vmatprep.subr.mxu0 0.0
  %2175 = vmatpush1.msra.mxu0 0.0
  %2176 = vmatprep.subr.mxu0 0.0
  %2177 = vmatpush1.msra.mxu0 0.0
  %2178 = vmatprep.subr.mxu0 0.0
  %2179 = vmatpush1.msra.mxu0 0.0
  %2180 = vmatprep.subr.mxu0 0.0
  %2181 = vmatpush1.msra.mxu0 0.0
  %2182 = vmatprep.subr.mxu0 0.0
  %2183 = vmatpush1.msra.mxu0 0.0
  %2184 = vmatprep.subr.mxu0 0.0
  %2185 = vmatpush1.msra.mxu0 0.0
  %2186 = vmatprep.subr.mxu0 0.0
  %2187 = vmatpush1.msra.mxu0 0.0
  %2188 = vmatprep.subr.mxu0 0.0
  %2189 = vmatpush1.msra.mxu0 0.0
  %2190 = vmatprep.subr.mxu0 0.0
  %2191 = vmatpush1.msra.mxu0 0.0
  %2192 = vmatprep.subr.mxu0 0.0
  %2193 = vmatpush1.msra.mxu0 0.0
  %2194 = vmatprep.subr.mxu0 0.0
  %2195 = vmatpush1.msra.mxu0 0.0
  %2196 = vmatprep.subr.mxu0 0.0
  %2197 = vmatpush1.msra.mxu0 0.0
  %2198 = vmatprep.subr.mxu0 0.0
  %2199 = vmatpush1.msra.mxu0 0.0
  %2200 = vmatprep.subr.mxu0 0.0
  %2201 = vmatpush1.msra.mxu0 0.0
  %2202 = vmatprep.subr.mxu0 0.0
  %2203 = vmatpush1.msra.mxu0 0.0
  %2204 = vmatprep.subr.mxu0 0.0
  %2205 = vmatpush1.msra.mxu0 0.0
  %2206 = vmatprep.subr.mxu0 0.0
  %2207 = vmatpush1.msra.mxu0 0.0
  %2208 = vmatprep.subr.mxu0 0.0
  %2209 = vmatpush1.msra.mxu0 0.0
  %2210 = vmatprep.subr.mxu0 0.0
  %2211 = vmatpush1.msra.mxu0 0.0
  %2212 = vmatprep.mubr.f32.mxu0 0.0
  %2213 = vmatmul.mubr.f32.gmra.mrb[0].mxu0 %v2063
  %v2214 = vpop.f32.mrb[0].mxu0
  %v2215 = vadd.f32 0.0, %v2214
  %v2216 = vpop.f32.mrb[0].mxu0
  %2217 = vmatprep.mubr.f32.mxu0 0.0
  %2218 = vmatmul.mubr.f32.gmra.mrb[0].mxu0 %v2066
  %v2219 = vpop.f32.mrb[0].mxu0
  %v2220 = vadd.f32 0.0, %v2219
  %v2221 = vpop.f32.mrb[0].mxu0
  %2222 = vdwg.mxu0
  %vm2225 = vcmask 1041408
  %v2226 = vrot.slane %v2215, 6
  %v2227 = vrot.slane %v2220, 6
  %v2228 = vsel %vm2225, %v2226, %v2227
  %v2231 = vsel %vm2225, 0.0, %v2226
  %v2232 = vadd.f32 %v2135, %v2231
  %v2233 = vadd.f32 %v2140, %v2228
  %s2234 = scalar_lea.vmem %s8, 64
  %v2235 = vld [vmem:[%s2234] sm:$0xff]
  %v2236 = vld [vmem:[%s2234 + $0x8] sm:$0xff]
  %v2237 = vld [vmem:[%s2234 + $0x10] sm:$0xff]
  %v2238 = vld [vmem:[%s2234 + $0x18] sm:$0xff]
  %2239 = vmatprep.subr.mxu0 0.0
  %2240 = vmatpush1.msra.mxu0 %v2235
  %2241 = vmatprep.subr.mxu0 0.0
  %2242 = vmatpush1.msra.mxu0 %v2236
  %2243 = vmatprep.subr.mxu0 0.0
  %2244 = vmatpush1.msra.mxu0 %v2237
  %2245 = vmatprep.subr.mxu0 0.0
  %2246 = vmatpush1.msra.mxu0 %v2238
  %2247 = vmatprep.subr.mxu0 0.0
  %2248 = vmatpush1.msra.mxu0 0.0
  %2249 = vmatprep.subr.mxu0 0.0
  %2250 = vmatpush1.msra.mxu0 0.0
  %2251 = vmatprep.subr.mxu0 0.0
  %2252 = vmatpush1.msra.mxu0 0.0
  %2253 = vmatprep.subr.mxu0 0.0
  %2254 = vmatpush1.msra.mxu0 0.0
  %2255 = vmatprep.subr.mxu0 0.0
  %2256 = vmatpush1.msra.mxu0 0.0
  %2257 = vmatprep.subr.mxu0 0.0
  %2258 = vmatpush1.msra.mxu0 0.0
  %2259 = vmatprep.subr.mxu0 0.0
  %2260 = vmatpush1.msra.mxu0 0.0
  %2261 = vmatprep.subr.mxu0 0.0
  %2262 = vmatpush1.msra.mxu0 0.0
  %2263 = vmatprep.subr.mxu0 0.0
  %2264 = vmatpush1.msra.mxu0 0.0
  %2265 = vmatprep.subr.mxu0 0.0
  %2266 = vmatpush1.msra.mxu0 0.0
  %2267 = vmatprep.subr.mxu0 0.0
  %2268 = vmatpush1.msra.mxu0 0.0
  %2269 = vmatprep.subr.mxu0 0.0
  %2270 = vmatpush1.msra.mxu0 0.0
  %2271 = vmatprep.subr.mxu0 0.0
  %2272 = vmatpush1.msra.mxu0 0.0
  %2273 = vmatprep.subr.mxu0 0.0
  %2274 = vmatpush1.msra.mxu0 0.0
  %2275 = vmatprep.subr.mxu0 0.0
  %2276 = vmatpush1.msra.mxu0 0.0
  %2277 = vmatprep.subr.mxu0 0.0
  %2278 = vmatpush1.msra.mxu0 0.0
  %2279 = vmatprep.subr.mxu0 0.0
  %2280 = vmatpush1.msra.mxu0 0.0
  %2281 = vmatprep.subr.mxu0 0.0
  %2282 = vmatpush1.msra.mxu0 0.0
  %2283 = vmatprep.subr.mxu0 0.0
  %2284 = vmatpush1.msra.mxu0 0.0
  %2285 = vmatprep.subr.mxu0 0.0
  %2286 = vmatpush1.msra.mxu0 0.0
  %2287 = vmatprep.subr.mxu0 0.0
  %2288 = vmatpush1.msra.mxu0 0.0
  %2289 = vmatprep.subr.mxu0 0.0
  %2290 = vmatpush1.msra.mxu0 0.0
  %2291 = vmatprep.subr.mxu0 0.0
  %2292 = vmatpush1.msra.mxu0 0.0
  %2293 = vmatprep.subr.mxu0 0.0
  %2294 = vmatpush1.msra.mxu0 0.0
  %2295 = vmatprep.subr.mxu0 0.0
  %2296 = vmatpush1.msra.mxu0 0.0
  %2297 = vmatprep.subr.mxu0 0.0
  %2298 = vmatpush1.msra.mxu0 0.0
  %2299 = vmatprep.subr.mxu0 0.0
  %2300 = vmatpush1.msra.mxu0 0.0
  %2301 = vmatprep.subr.mxu0 0.0
  %2302 = vmatpush1.msra.mxu0 0.0
  %2303 = vmatprep.mubr.f32.mxu0 0.0
  %2304 = vmatmul.mubr.f32.gmra.mrb[0].mxu0 %v2063
  %v2305 = vpop.f32.mrb[0].mxu0
  %v2306 = vadd.f32 0.0, %v2305
  %v2307 = vpop.f32.mrb[0].mxu0
  %2308 = vmatprep.mubr.f32.mxu0 0.0
  %2309 = vmatmul.mubr.f32.gmra.mrb[0].mxu0 %v2066
  %v2310 = vpop.f32.mrb[0].mxu0
  %v2311 = vadd.f32 0.0, %v2310
  %v2312 = vpop.f32.mrb[0].mxu0
  %2313 = vdwg.mxu0
  %vm2316 = vcmask 1043456
  %v2317 = vrot.slane %v2306, 4
  %v2318 = vrot.slane %v2311, 4
  %v2319 = vsel %vm2316, %v2317, %v2318
  %v2322 = vsel %vm2316, 0.0, %v2317
  %v2323 = vadd.f32 %v2232, %v2322
  %v2324 = vadd.f32 %v2233, %v2319
  %v2325 = vmax.f32 %v2323, 0.0
  %v2326 = vmax.f32 %v2324, 0.0
  %v2327 = vld [vmem:[%s10] sm:$0xff]
  %v2328 = vld [vmem:[%s10 + $0x8] sm:$0xff]
  %v2329 = vld [vmem:[%s10 + $0x10] sm:$0xff]
  %v2330 = vld [vmem:[%s10 + $0x18] sm:$0xff]
  %v2331 = vld [vmem:[%s11] sm:$0x1]
  %v2333 = vlaneseq
  %v2334 = vshrl.u32 %v2333, 7
  %v2335 = vsub.s32 0, %v2334
  %v2336 = vrot.slane %v2331, %v2335
  %v2339 = vsel %vm2061, %v2325, 0
  %v2342 = vsel %vm2061, %v2326, 0
  %2344 = vmatprep.subr.mxu0 0.0
  %2345 = vmatpush1.msra.mxu0 %v2327
  %2346 = vmatprep.subr.mxu0 0.0
  %2347 = vmatpush1.msra.mxu0 %v2328
  %2348 = vmatprep.subr.mxu0 0.0
  %2349 = vmatpush1.msra.mxu0 %v2329
  %2350 = vmatprep.subr.mxu0 0.0
  %2351 = vmatpush1.msra.mxu0 %v2330
  %2352 = vmatprep.subr.mxu0 0.0
  %2353 = vmatpush1.msra.mxu0 0.0
  %2354 = vmatprep.subr.mxu0 0.0
  %2355 = vmatpush1.msra.mxu0 0.0
  %2356 = vmatprep.subr.mxu0 0.0
  %2357 = vmatpush1.msra.mxu0 0.0
  %2358 = vmatprep.subr.mxu0 0.0
  %2359 = vmatpush1.msra.mxu0 0.0
  %2360 = vmatprep.subr.mxu0 0.0
  %2361 = vmatpush1.msra.mxu0 0.0
  %2362 = vmatprep.subr.mxu0 0.0
  %2363 = vmatpush1.msra.mxu0 0.0
  %2364 = vmatprep.subr.mxu0 0.0
  %2365 = vmatpush1.msra.mxu0 0.0
  %2366 = vmatprep.subr.mxu0 0.0
  %2367 = vmatpush1.msra.mxu0 0.0
  %2368 = vmatprep.subr.mxu0 0.0
  %2369 = vmatpush1.msra.mxu0 0.0
  %2370 = vmatprep.subr.mxu0 0.0
  %2371 = vmatpush1.msra.mxu0 0.0
  %2372 = vmatprep.subr.mxu0 0.0
  %2373 = vmatpush1.msra.mxu0 0.0
  %2374 = vmatprep.subr.mxu0 0.0
  %2375 = vmatpush1.msra.mxu0 0.0
  %2376 = vmatprep.subr.mxu0 0.0
  %2377 = vmatpush1.msra.mxu0 0.0
  %2378 = vmatprep.subr.mxu0 0.0
  %2379 = vmatpush1.msra.mxu0 0.0
  %2380 = vmatprep.subr.mxu0 0.0
  %2381 = vmatpush1.msra.mxu0 0.0
  %2382 = vmatprep.subr.mxu0 0.0
  %2383 = vmatpush1.msra.mxu0 0.0
  %2384 = vmatprep.subr.mxu0 0.0
  %2385 = vmatpush1.msra.mxu0 0.0
  %2386 = vmatprep.subr.mxu0 0.0
  %2387 = vmatpush1.msra.mxu0 0.0
  %2388 = vmatprep.subr.mxu0 0.0
  %2389 = vmatpush1.msra.mxu0 0.0
  %2390 = vmatprep.subr.mxu0 0.0
  %2391 = vmatpush1.msra.mxu0 0.0
  %2392 = vmatprep.subr.mxu0 0.0
  %2393 = vmatpush1.msra.mxu0 0.0
  %2394 = vmatprep.subr.mxu0 0.0
  %2395 = vmatpush1.msra.mxu0 0.0
  %2396 = vmatprep.subr.mxu0 0.0
  %2397 = vmatpush1.msra.mxu0 0.0
  %2398 = vmatprep.subr.mxu0 0.0
  %2399 = vmatpush1.msra.mxu0 0.0
  %2400 = vmatprep.subr.mxu0 0.0
  %2401 = vmatpush1.msra.mxu0 0.0
  %2402 = vmatprep.subr.mxu0 0.0
  %2403 = vmatpush1.msra.mxu0 0.0
  %2404 = vmatprep.subr.mxu0 0.0
  %2405 = vmatpush1.msra.mxu0 0.0
  %2406 = vmatprep.subr.mxu0 0.0
  %2407 = vmatpush1.msra.mxu0 0.0
  %2408 = vmatprep.mubr.f32.mxu0 0.0
  %2409 = vmatmul.mubr.f32.gmra.mrb[0].mxu0 %v2339
  %v2410 = vpop.f32.mrb[0].mxu0
  %v2411 = vadd.f32 %v2336, %v2410
  %v2412 = vpop.f32.mrb[0].mxu0
  %2413 = vmatprep.mubr.f32.mxu0 0.0
  %2414 = vmatmul.mubr.f32.gmra.mrb[0].mxu0 %v2342
  %v2415 = vpop.f32.mrb[0].mxu0
  %v2416 = vadd.f32 %v2336, %v2415
  %v2417 = vpop.f32.mrb[0].mxu0
  %2418 = vdwg.mxu0
  %s2419 = scalar_lea.vmem %s10, 32
  %v2420 = vld [vmem:[%s2419] sm:$0xff]
  %v2421 = vld [vmem:[%s2419 + $0x8] sm:$0xff]
  %v2422 = vld [vmem:[%s2419 + $0x10] sm:$0xff]
  %v2423 = vld [vmem:[%s2419 + $0x18] sm:$0xff]
  %2424 = vmatprep.subr.mxu0 0.0
  %2425 = vmatpush1.msra.mxu0 %v2420
  %2426 = vmatprep.subr.mxu0 0.0
  %2427 = vmatpush1.msra.mxu0 %v2421
  %2428 = vmatprep.subr.mxu0 0.0
  %2429 = vmatpush1.msra.mxu0 %v2422
  %2430 = vmatprep.subr.mxu0 0.0
  %2431 = vmatpush1.msra.mxu0 %v2423
  %2432 = vmatprep.subr.mxu0 0.0
  %2433 = vmatpush1.msra.mxu0 0.0
  %2434 = vmatprep.subr.mxu0 0.0
  %2435 = vmatpush1.msra.mxu0 0.0
  %2436 = vmatprep.subr.mxu0 0.0
  %2437 = vmatpush1.msra.mxu0 0.0
  %2438 = vmatprep.subr.mxu0 0.0
  %2439 = vmatpush1.msra.mxu0 0.0
  %2440 = vmatprep.subr.mxu0 0.0
  %2441 = vmatpush1.msra.mxu0 0.0
  %2442 = vmatprep.subr.mxu0 0.0
  %2443 = vmatpush1.msra.mxu0 0.0
  %2444 = vmatprep.subr.mxu0 0.0
  %2445 = vmatpush1.msra.mxu0 0.0
  %2446 = vmatprep.subr.mxu0 0.0
  %2447 = vmatpush1.msra.mxu0 0.0
  %2448 = vmatprep.subr.mxu0 0.0
  %2449 = vmatpush1.msra.mxu0 0.0
  %2450 = vmatprep.subr.mxu0 0.0
  %2451 = vmatpush1.msra.mxu0 0.0
  %2452 = vmatprep.subr.mxu0 0.0
  %2453 = vmatpush1.msra.mxu0 0.0
  %2454 = vmatprep.subr.mxu0 0.0
  %2455 = vmatpush1.msra.mxu0 0.0
  %2456 = vmatprep.subr.mxu0 0.0
  %2457 = vmatpush1.msra.mxu0 0.0
  %2458 = vmatprep.subr.mxu0 0.0
  %2459 = vmatpush1.msra.mxu0 0.0
  %2460 = vmatprep.subr.mxu0 0.0
  %2461 = vmatpush1.msra.mxu0 0.0
  %2462 = vmatprep.subr.mxu0 0.0
  %2463 = vmatpush1.msra.mxu0 0.0
  %2464 = vmatprep.subr.mxu0 0.0
  %2465 = vmatpush1.msra.mxu0 0.0
  %2466 = vmatprep.subr.mxu0 0.0
  %2467 = vmatpush1.msra.mxu0 0.0
  %2468 = vmatprep.subr.mxu0 0.0
  %2469 = vmatpush1.msra.mxu0 0.0
  %2470 = vmatprep.subr.mxu0 0.0
  %2471 = vmatpush1.msra.mxu0 0.0
  %2472 = vmatprep.subr.mxu0 0.0
  %2473 = vmatpush1.msra.mxu0 0.0
  %2474 = vmatprep.subr.mxu0 0.0
  %2475 = vmatpush1.msra.mxu0 0.0
  %2476 = vmatprep.subr.mxu0 0.0
  %2477 = vmatpush1.msra.mxu0 0.0
  %2478 = vmatprep.subr.mxu0 0.0
  %2479 = vmatpush1.msra.mxu0 0.0
  %2480 = vmatprep.subr.mxu0 0.0
  %2481 = vmatpush1.msra.mxu0 0.0
  %2482 = vmatprep.subr.mxu0 0.0
  %2483 = vmatpush1.msra.mxu0 0.0
  %2484 = vmatprep.subr.mxu0 0.0
  %2485 = vmatpush1.msra.mxu0 0.0
  %2486 = vmatprep.subr.mxu0 0.0
  %2487 = vmatpush1.msra.mxu0 0.0
  %2488 = vmatprep.mubr.f32.mxu0 0.0
  %2489 = vmatmul.mubr.f32.gmra.mrb[0].mxu0 %v2339
  %v2490 = vpop.f32.mrb[0].mxu0
  %v2491 = vadd.f32 0.0, %v2490
  %v2492 = vpop.f32.mrb[0].mxu0
  %2493 = vmatprep.mubr.f32.mxu0 0.0
  %2494 = vmatmul.mubr.f32.gmra.mrb[0].mxu0 %v2342
  %v2495 = vpop.f32.mrb[0].mxu0
  %v2496 = vadd.f32 0.0, %v2495
  %v2497 = vpop.f32.mrb[0].mxu0
  %2498 = vdwg.mxu0
  %v2501 = vrot.slane %v2491, 6
  %v2502 = vrot.slane %v2496, 6
  %v2503 = vsel %vm2225, %v2501, %v2502
  %v2506 = vsel %vm2225, 0.0, %v2501
  %v2507 = vadd.f32 %v2411, %v2506
  %v2508 = vadd.f32 %v2416, %v2503
  %s2509 = scalar_lea.vmem %s10, 64
  %v2510 = vld [vmem:[%s2509] sm:$0xff]
  %v2511 = vld [vmem:[%s2509 + $0x8] sm:$0xff]
  %v2512 = vld [vmem:[%s2509 + $0x10] sm:$0xff]
  %v2513 = vld [vmem:[%s2509 + $0x18] sm:$0xff]
  %2514 = vmatprep.subr.mxu0 0.0
  %2515 = vmatpush1.msra.mxu0 %v2510
  %2516 = vmatprep.subr.mxu0 0.0
  %2517 = vmatpush1.msra.mxu0 %v2511
  %2518 = vmatprep.subr.mxu0 0.0
  %2519 = vmatpush1.msra.mxu0 %v2512
  %2520 = vmatprep.subr.mxu0 0.0
  %2521 = vmatpush1.msra.mxu0 %v2513
  %2522 = vmatprep.subr.mxu0 0.0
  %2523 = vmatpush1.msra.mxu0 0.0
  %2524 = vmatprep.subr.mxu0 0.0
  %2525 = vmatpush1.msra.mxu0 0.0
  %2526 = vmatprep.subr.mxu0 0.0
  %2527 = vmatpush1.msra.mxu0 0.0
  %2528 = vmatprep.subr.mxu0 0.0
  %2529 = vmatpush1.msra.mxu0 0.0
  %2530 = vmatprep.subr.mxu0 0.0
  %2531 = vmatpush1.msra.mxu0 0.0
  %2532 = vmatprep.subr.mxu0 0.0
  %2533 = vmatpush1.msra.mxu0 0.0
  %2534 = vmatprep.subr.mxu0 0.0
  %2535 = vmatpush1.msra.mxu0 0.0
  %2536 = vmatprep.subr.mxu0 0.0
  %2537 = vmatpush1.msra.mxu0 0.0
  %2538 = vmatprep.subr.mxu0 0.0
  %2539 = vmatpush1.msra.mxu0 0.0
  %2540 = vmatprep.subr.mxu0 0.0
  %2541 = vmatpush1.msra.mxu0 0.0
  %2542 = vmatprep.subr.mxu0 0.0
  %2543 = vmatpush1.msra.mxu0 0.0
  %2544 = vmatprep.subr.mxu0 0.0
  %2545 = vmatpush1.msra.mxu0 0.0
  %2546 = vmatprep.subr.mxu0 0.0
  %2547 = vmatpush1.msra.mxu0 0.0
  %2548 = vmatprep.subr.mxu0 0.0
  %2549 = vmatpush1.msra.mxu0 0.0
  %2550 = vmatprep.subr.mxu0 0.0
  %2551 = vmatpush1.msra.mxu0 0.0
  %2552 = vmatprep.subr.mxu0 0.0
  %2553 = vmatpush1.msra.mxu0 0.0
  %2554 = vmatprep.subr.mxu0 0.0
  %2555 = vmatpush1.msra.mxu0 0.0
  %2556 = vmatprep.subr.mxu0 0.0
  %2557 = vmatpush1.msra.mxu0 0.0
  %2558 = vmatprep.subr.mxu0 0.0
  %2559 = vmatpush1.msra.mxu0 0.0
  %2560 = vmatprep.subr.mxu0 0.0
  %2561 = vmatpush1.msra.mxu0 0.0
  %2562 = vmatprep.subr.mxu0 0.0
  %2563 = vmatpush1.msra.mxu0 0.0
  %2564 = vmatprep.subr.mxu0 0.0
  %2565 = vmatpush1.msra.mxu0 0.0
  %2566 = vmatprep.subr.mxu0 0.0
  %2567 = vmatpush1.msra.mxu0 0.0
  %2568 = vmatprep.subr.mxu0 0.0
  %2569 = vmatpush1.msra.mxu0 0.0
  %2570 = vmatprep.subr.mxu0 0.0
  %2571 = vmatpush1.msra.mxu0 0.0
  %2572 = vmatprep.subr.mxu0 0.0
  %2573 = vmatpush1.msra.mxu0 0.0
  %2574 = vmatprep.subr.mxu0 0.0
  %2575 = vmatpush1.msra.mxu0 0.0
  %2576 = vmatprep.subr.mxu0 0.0
  %2577 = vmatpush1.msra.mxu0 0.0
  %2578 = vmatprep.mubr.f32.mxu0 0.0
  %2579 = vmatmul.mubr.f32.gmra.mrb[0].mxu0 %v2339
  %v2580 = vpop.f32.mrb[0].mxu0
  %v2581 = vadd.f32 0.0, %v2580
  %v2582 = vpop.f32.mrb[0].mxu0
  %2583 = vmatprep.mubr.f32.mxu0 0.0
  %2584 = vmatmul.mubr.f32.gmra.mrb[0].mxu0 %v2342
  %v2585 = vpop.f32.mrb[0].mxu0
  %v2586 = vadd.f32 0.0, %v2585
  %v2587 = vpop.f32.mrb[0].mxu0
  %2588 = vdwg.mxu0
  %v2591 = vrot.slane %v2581, 4
  %v2592 = vrot.slane %v2586, 4
  %v2593 = vsel %vm2316, %v2591, %v2592
  %v2596 = vsel %vm2316, 0.0, %v2591
  %v2597 = vadd.f32 %v2507, %v2596
  %v2598 = vadd.f32 %v2508, %v2593
  %v2599 = vmax.f32 %v2597, 0.0
  %v2600 = vmax.f32 %v2598, 0.0
  %v2601 = vadd.f32 %v2599, %v2048
  %v2602 = vadd.f32 %v2600, %v2049
  %v2603 = vmax.f32 %v2601, 0.0
  %v2604 = vmax.f32 %v2602, 0.0
  %v2605 = vld [vmem:[%s12] sm:$0xff]
  %v2606 = vld [vmem:[%s12 + $0x8] sm:$0xff]
  %v2607 = vld [vmem:[%s12 + $0x10] sm:$0xff]
  %v2608 = vld [vmem:[%s12 + $0x18] sm:$0xff]
  %v2609 = vld [vmem:[%s13] sm:$0x1]
  %v2611 = vlaneseq
  %v2612 = vshrl.u32 %v2611, 7
  %v2613 = vsub.s32 0, %v2612
  %v2614 = vrot.slane %v2609, %v2613
  %v2617 = vsel %vm2061, %v2603, 0
  %v2620 = vsel %vm2061, %v2604, 0
  %2622 = vmatprep.subr.mxu0 0.0
  %2623 = vmatpush1.msra.mxu0 %v2605
  %2624 = vmatprep.subr.mxu0 0.0
  %2625 = vmatpush1.msra.mxu0 %v2606
  %2626 = vmatprep.subr.mxu0 0.0
  %2627 = vmatpush1.msra.mxu0 %v2607
  %2628 = vmatprep.subr.mxu0 0.0
  %2629 = vmatpush1.msra.mxu0 %v2608
  %2630 = vmatprep.subr.mxu0 0.0
  %2631 = vmatpush1.msra.mxu0 0.0
  %2632 = vmatprep.subr.mxu0 0.0
  %2633 = vmatpush1.msra.mxu0 0.0
  %2634 = vmatprep.subr.mxu0 0.0
  %2635 = vmatpush1.msra.mxu0 0.0
  %2636 = vmatprep.subr.mxu0 0.0
  %2637 = vmatpush1.msra.mxu0 0.0
  %2638 = vmatprep.subr.mxu0 0.0
  %2639 = vmatpush1.msra.mxu0 0.0
  %2640 = vmatprep.subr.mxu0 0.0
  %2641 = vmatpush1.msra.mxu0 0.0
  %2642 = vmatprep.subr.mxu0 0.0
  %2643 = vmatpush1.msra.mxu0 0.0
  %2644 = vmatprep.subr.mxu0 0.0
  %2645 = vmatpush1.msra.mxu0 0.0
  %2646 = vmatprep.subr.mxu0 0.0
  %2647 = vmatpush1.msra.mxu0 0.0
  %2648 = vmatprep.subr.mxu0 0.0
  %2649 = vmatpush1.msra.mxu0 0.0
  %2650 = vmatprep.subr.mxu0 0.0
  %2651 = vmatpush1.msra.mxu0 0.0
  %2652 = vmatprep.subr.mxu0 0.0
  %2653 = vmatpush1.msra.mxu0 0.0
  %2654 = vmatprep.subr.mxu0 0.0
  %2655 = vmatpush1.msra.mxu0 0.0
  %2656 = vmatprep.subr.mxu0 0.0
  %2657 = vmatpush1.msra.mxu0 0.0
  %2658 = vmatprep.subr.mxu0 0.0
  %2659 = vmatpush1.msra.mxu0 0.0
  %2660 = vmatprep.subr.mxu0 0.0
  %2661 = vmatpush1.msra.mxu0 0.0
  %2662 = vmatprep.subr.mxu0 0.0
  %2663 = vmatpush1.msra.mxu0 0.0
  %2664 = vmatprep.subr.mxu0 0.0
  %2665 = vmatpush1.msra.mxu0 0.0
  %2666 = vmatprep.subr.mxu0 0.0
  %2667 = vmatpush1.msra.mxu0 0.0
  %2668 = vmatprep.subr.mxu0 0.0
  %2669 = vmatpush1.msra.mxu0 0.0
  %2670 = vmatprep.subr.mxu0 0.0
  %2671 = vmatpush1.msra.mxu0 0.0
  %2672 = vmatprep.subr.mxu0 0.0
  %2673 = vmatpush1.msra.mxu0 0.0
  %2674 = vmatprep.subr.mxu0 0.0
  %2675 = vmatpush1.msra.mxu0 0.0
  %2676 = vmatprep.subr.mxu0 0.0
  %2677 = vmatpush1.msra.mxu0 0.0
  %2678 = vmatprep.subr.mxu0 0.0
  %2679 = vmatpush1.msra.mxu0 0.0
  %2680 = vmatprep.subr.mxu0 0.0
  %2681 = vmatpush1.msra.mxu0 0.0
  %2682 = vmatprep.subr.mxu0 0.0
  %2683 = vmatpush1.msra.mxu0 0.0
  %2684 = vmatprep.subr.mxu0 0.0
  %2685 = vmatpush1.msra.mxu0 0.0
  %2686 = vmatprep.mubr.f32.mxu0 0.0
  %2687 = vmatmul.mubr.f32.gmra.mrb[0].mxu0 %v2617
  %v2688 = vpop.f32.mrb[0].mxu0
  %v2689 = vadd.f32 %v2614, %v2688
  %v2690 = vpop.f32.mrb[0].mxu0
  %2691 = vmatprep.mubr.f32.mxu0 0.0
  %2692 = vmatmul.mubr.f32.gmra.mrb[0].mxu0 %v2620
  %v2693 = vpop.f32.mrb[0].mxu0
  %v2694 = vadd.f32 %v2614, %v2693
  %v2695 = vpop.f32.mrb[0].mxu0
  %2696 = vdwg.mxu0
  %s2697 = scalar_lea.vmem %s12, 32
  %v2698 = vld [vmem:[%s2697] sm:$0xff]
  %v2699 = vld [vmem:[%s2697 + $0x8] sm:$0xff]
  %v2700 = vld [vmem:[%s2697 + $0x10] sm:$0xff]
  %v2701 = vld [vmem:[%s2697 + $0x18] sm:$0xff]
  %2702 = vmatprep.subr.mxu0 0.0
  %2703 = vmatpush1.msra.mxu0 %v2698
  %2704 = vmatprep.subr.mxu0 0.0
  %2705 = vmatpush1.msra.mxu0 %v2699
  %2706 = vmatprep.subr.mxu0 0.0
  %2707 = vmatpush1.msra.mxu0 %v2700
  %2708 = vmatprep.subr.mxu0 0.0
  %2709 = vmatpush1.msra.mxu0 %v2701
  %2710 = vmatprep.subr.mxu0 0.0
  %2711 = vmatpush1.msra.mxu0 0.0
  %2712 = vmatprep.subr.mxu0 0.0
  %2713 = vmatpush1.msra.mxu0 0.0
  %2714 = vmatprep.subr.mxu0 0.0
  %2715 = vmatpush1.msra.mxu0 0.0
  %2716 = vmatprep.subr.mxu0 0.0
  %2717 = vmatpush1.msra.mxu0 0.0
  %2718 = vmatprep.subr.mxu0 0.0
  %2719 = vmatpush1.msra.mxu0 0.0
  %2720 = vmatprep.subr.mxu0 0.0
  %2721 = vmatpush1.msra.mxu0 0.0
  %2722 = vmatprep.subr.mxu0 0.0
  %2723 = vmatpush1.msra.mxu0 0.0
  %2724 = vmatprep.subr.mxu0 0.0
  %2725 = vmatpush1.msra.mxu0 0.0
  %2726 = vmatprep.subr.mxu0 0.0
  %2727 = vmatpush1.msra.mxu0 0.0
  %2728 = vmatprep.subr.mxu0 0.0
  %2729 = vmatpush1.msra.mxu0 0.0
  %2730 = vmatprep.subr.mxu0 0.0
  %2731 = vmatpush1.msra.mxu0 0.0
  %2732 = vmatprep.subr.mxu0 0.0
  %2733 = vmatpush1.msra.mxu0 0.0
  %2734 = vmatprep.subr.mxu0 0.0
  %2735 = vmatpush1.msra.mxu0 0.0
  %2736 = vmatprep.subr.mxu0 0.0
  %2737 = vmatpush1.msra.mxu0 0.0
  %2738 = vmatprep.subr.mxu0 0.0
  %2739 = vmatpush1.msra.mxu0 0.0
  %2740 = vmatprep.subr.mxu0 0.0
  %2741 = vmatpush1.msra.mxu0 0.0
  %2742 = vmatprep.subr.mxu0 0.0
  %2743 = vmatpush1.msra.mxu0 0.0
  %2744 = vmatprep.subr.mxu0 0.0
  %2745 = vmatpush1.msra.mxu0 0.0
  %2746 = vmatprep.subr.mxu0 0.0
  %2747 = vmatpush1.msra.mxu0 0.0
  %2748 = vmatprep.subr.mxu0 0.0
  %2749 = vmatpush1.msra.mxu0 0.0
  %2750 = vmatprep.subr.mxu0 0.0
  %2751 = vmatpush1.msra.mxu0 0.0
  %2752 = vmatprep.subr.mxu0 0.0
  %2753 = vmatpush1.msra.mxu0 0.0
  %2754 = vmatprep.subr.mxu0 0.0
  %2755 = vmatpush1.msra.mxu0 0.0
  %2756 = vmatprep.subr.mxu0 0.0
  %2757 = vmatpush1.msra.mxu0 0.0
  %2758 = vmatprep.subr.mxu0 0.0
  %2759 = vmatpush1.msra.mxu0 0.0
  %2760 = vmatprep.subr.mxu0 0.0
  %2761 = vmatpush1.msra.mxu0 0.0
  %2762 = vmatprep.subr.mxu0 0.0
  %2763 = vmatpush1.msra.mxu0 0.0
  %2764 = vmatprep.subr.mxu0 0.0
  %2765 = vmatpush1.msra.mxu0 0.0
  %2766 = vmatprep.mubr.f32.mxu0 0.0
  %2767 = vmatmul.mubr.f32.gmra.mrb[0].mxu0 %v2617
  %v2768 = vpop.f32.mrb[0].mxu0
  %v2769 = vadd.f32 0.0, %v2768
  %v2770 = vpop.f32.mrb[0].mxu0
  %2771 = vmatprep.mubr.f32.mxu0 0.0
  %2772 = vmatmul.mubr.f32.gmra.mrb[0].mxu0 %v2620
  %v2773 = vpop.f32.mrb[0].mxu0
  %v2774 = vadd.f32 0.0, %v2773
  %v2775 = vpop.f32.mrb[0].mxu0
  %2776 = vdwg.mxu0
  %v2779 = vrot.slane %v2769, 4
  %v2780 = vrot.slane %v2774, 4
  %v2781 = vsel %vm2316, %v2779, %v2780
  %v2784 = vsel %vm2316, 0.0, %v2779
  %v2785 = vadd.f32 %v2689, %v2784
  %v2786 = vadd.f32 %v2694, %v2781
  %s2787 = scalar_lea.vmem %s12, 64
  %v2788 = vld [vmem:[%s2787] sm:$0xff]
  %v2789 = vld [vmem:[%s2787 + $0x8] sm:$0xff]
  %v2790 = vld [vmem:[%s2787 + $0x10] sm:$0xff]
  %v2791 = vld [vmem:[%s2787 + $0x18] sm:$0xff]
  %2792 = vmatprep.subr.mxu0 0.0
  %2793 = vmatpush1.msra.mxu0 %v2788
  %2794 = vmatprep.subr.mxu0 0.0
  %2795 = vmatpush1.msra.mxu0 %v2789
  %2796 = vmatprep.subr.mxu0 0.0
  %2797 = vmatpush1.msra.mxu0 %v2790
  %2798 = vmatprep.subr.mxu0 0.0
  %2799 = vmatpush1.msra.mxu0 %v2791
  %2800 = vmatprep.subr.mxu0 0.0
  %2801 = vmatpush1.msra.mxu0 0.0
  %2802 = vmatprep.subr.mxu0 0.0
  %2803 = vmatpush1.msra.mxu0 0.0
  %2804 = vmatprep.subr.mxu0 0.0
  %2805 = vmatpush1.msra.mxu0 0.0
  %2806 = vmatprep.subr.mxu0 0.0
  %2807 = vmatpush1.msra.mxu0 0.0
  %2808 = vmatprep.subr.mxu0 0.0
  %2809 = vmatpush1.msra.mxu0 0.0
  %2810 = vmatprep.subr.mxu0 0.0
  %2811 = vmatpush1.msra.mxu0 0.0
  %2812 = vmatprep.subr.mxu0 0.0
  %2813 = vmatpush1.msra.mxu0 0.0
  %2814 = vmatprep.subr.mxu0 0.0
  %2815 = vmatpush1.msra.mxu0 0.0
  %2816 = vmatprep.subr.mxu0 0.0
  %2817 = vmatpush1.msra.mxu0 0.0
  %2818 = vmatprep.subr.mxu0 0.0
  %2819 = vmatpush1.msra.mxu0 0.0
  %2820 = vmatprep.subr.mxu0 0.0
  %2821 = vmatpush1.msra.mxu0 0.0
  %2822 = vmatprep.subr.mxu0 0.0
  %2823 = vmatpush1.msra.mxu0 0.0
  %2824 = vmatprep.subr.mxu0 0.0
  %2825 = vmatpush1.msra.mxu0 0.0
  %2826 = vmatprep.subr.mxu0 0.0
  %2827 = vmatpush1.msra.mxu0 0.0
  %2828 = vmatprep.subr.mxu0 0.0
  %2829 = vmatpush1.msra.mxu0 0.0
  %2830 = vmatprep.subr.mxu0 0.0
  %2831 = vmatpush1.msra.mxu0 0.0
  %2832 = vmatprep.subr.mxu0 0.0
  %2833 = vmatpush1.msra.mxu0 0.0
  %2834 = vmatprep.subr.mxu0 0.0
  %2835 = vmatpush1.msra.mxu0 0.0
  %2836 = vmatprep.subr.mxu0 0.0
  %2837 = vmatpush1.msra.mxu0 0.0
  %2838 = vmatprep.subr.mxu0 0.0
  %2839 = vmatpush1.msra.mxu0 0.0
  %2840 = vmatprep.subr.mxu0 0.0
  %2841 = vmatpush1.msra.mxu0 0.0
  %2842 = vmatprep.subr.mxu0 0.0
  %2843 = vmatpush1.msra.mxu0 0.0
  %2844 = vmatprep.subr.mxu0 0.0
  %2845 = vmatpush1.msra.mxu0 0.0
  %2846 = vmatprep.subr.mxu0 0.0
  %2847 = vmatpush1.msra.mxu0 0.0
  %2848 = vmatprep.subr.mxu0 0.0
  %2849 = vmatpush1.msra.mxu0 0.0
  %2850 = vmatprep.subr.mxu0 0.0
  %2851 = vmatpush1.msra.mxu0 0.0
  %2852 = vmatprep.subr.mxu0 0.0
  %2853 = vmatpush1.msra.mxu0 0.0
  %2854 = vmatprep.subr.mxu0 0.0
  %2855 = vmatpush1.msra.mxu0 0.0
  %2856 = vmatprep.mubr.f32.mxu0 0.0
  %2857 = vmatmul.mubr.f32.gmra.mrb[0].mxu0 %v2617
  %v2858 = vpop.f32.mrb[0].mxu0
  %v2859 = vadd.f32 0.0, %v2858
  %v2860 = vpop.f32.mrb[0].mxu0
  %2861 = vdwg.mxu0
  %v2862 = vadd.f32 %v2785, 0.0
  %v2863 = vadd.f32 %v2786, %v2859
  %v2864 = vmax.f32 %v2862, 0.0
  %v2865 = vmax.f32 %v2863, 0.0
  %v2866 = vld [vmem:[%s14] sm:$0xff]
  %v2867 = vld [vmem:[%s14 + $0x8] sm:$0xff]
  %v2868 = vld [vmem:[%s14 + $0x10] sm:$0xff]
  %v2869 = vld [vmem:[%s14 + $0x18] sm:$0xff]
  %v2870 = vld [vmem:[%s14 + $0x20] sm:$0xff]
  %v2871 = vld [vmem:[%s14 + $0x28] sm:$0xff]
  %v2872 = vld [vmem:[%s14 + $0x30] sm:$0xff]
  %v2873 = vld [vmem:[%s14 + $0x38] sm:$0xff]
  %v2874 = vld [vmem:[%s15] sm:$0x1]
  %v2876 = vlaneseq
  %v2877 = vshrl.u32 %v2876, 7
  %v2878 = vsub.s32 0, %v2877
  %v2879 = vrot.slane %v2874, %v2878
  %vm2881 = vcmask 523264
  %v2883 = vsel %vm2881, %v2864, 0
  %v2886 = vsel %vm2881, %v2865, 0
  %2888 = vmatprep.subr.mxu0 0.0
  %2889 = vmatpush1.msra.mxu0 %v2866
  %2890 = vmatprep.subr.mxu0 0.0
  %2891 = vmatpush1.msra.mxu0 %v2867
  %2892 = vmatprep.subr.mxu0 0.0
  %2893 = vmatpush1.msra.mxu0 %v2868
  %2894 = vmatprep.subr.mxu0 0.0
  %2895 = vmatpush1.msra.mxu0 %v2869
  %2896 = vmatprep.subr.mxu0 0.0
  %2897 = vmatpush1.msra.mxu0 %v2870
  %2898 = vmatprep.subr.mxu0 0.0
  %2899 = vmatpush1.msra.mxu0 %v2871
  %2900 = vmatprep.subr.mxu0 0.0
  %2901 = vmatpush1.msra.mxu0 %v2872
  %2902 = vmatprep.subr.mxu0 0.0
  %2903 = vmatpush1.msra.mxu0 %v2873
  %2904 = vmatprep.subr.mxu0 0.0
  %2905 = vmatpush1.msra.mxu0 0.0
  %2906 = vmatprep.subr.mxu0 0.0
  %2907 = vmatpush1.msra.mxu0 0.0
  %2908 = vmatprep.subr.mxu0 0.0
  %2909 = vmatpush1.msra.mxu0 0.0
  %2910 = vmatprep.subr.mxu0 0.0
  %2911 = vmatpush1.msra.mxu0 0.0
  %2912 = vmatprep.subr.mxu0 0.0
  %2913 = vmatpush1.msra.mxu0 0.0
  %2914 = vmatprep.subr.mxu0 0.0
  %2915 = vmatpush1.msra.mxu0 0.0
  %2916 = vmatprep.subr.mxu0 0.0
  %2917 = vmatpush1.msra.mxu0 0.0
  %2918 = vmatprep.subr.mxu0 0.0
  %2919 = vmatpush1.msra.mxu0 0.0
  %2920 = vmatprep.subr.mxu0 0.0
  %2921 = vmatpush1.msra.mxu0 0.0
  %2922 = vmatprep.subr.mxu0 0.0
  %2923 = vmatpush1.msra.mxu0 0.0
  %2924 = vmatprep.subr.mxu0 0.0
  %2925 = vmatpush1.msra.mxu0 0.0
  %2926 = vmatprep.subr.mxu0 0.0
  %2927 = vmatpush1.msra.mxu0 0.0
  %2928 = vmatprep.subr.mxu0 0.0
  %2929 = vmatpush1.msra.mxu0 0.0
  %2930 = vmatprep.subr.mxu0 0.0
  %2931 = vmatpush1.msra.mxu0 0.0
  %2932 = vmatprep.subr.mxu0 0.0
  %2933 = vmatpush1.msra.mxu0 0.0
  %2934 = vmatprep.subr.mxu0 0.0
  %2935 = vmatpush1.msra.mxu0 0.0
  %2936 = vmatprep.subr.mxu0 0.0
  %2937 = vmatpush1.msra.mxu0 0.0
  %2938 = vmatprep.subr.mxu0 0.0
  %2939 = vmatpush1.msra.mxu0 0.0
  %2940 = vmatprep.subr.mxu0 0.0
  %2941 = vmatpush1.msra.mxu0 0.0
  %2942 = vmatprep.subr.mxu0 0.0
  %2943 = vmatpush1.msra.mxu0 0.0
  %2944 = vmatprep.subr.mxu0 0.0
  %2945 = vmatpush1.msra.mxu0 0.0
  %2946 = vmatprep.subr.mxu0 0.0
  %2947 = vmatpush1.msra.mxu0 0.0
  %2948 = vmatprep.subr.mxu0 0.0
  %2949 = vmatpush1.msra.mxu0 0.0
  %2950 = vmatprep.subr.mxu0 0.0
  %2951 = vmatpush1.msra.mxu0 0.0
  %2952 = vmatprep.mubr.f32.mxu0 0.0
  %2953 = vmatmul.mubr.f32.gmra.mrb[0].mxu0 %v2883
  %v2954 = vpop.f32.mrb[0].mxu0
  %v2955 = vadd.f32 %v2879, %v2954
  %v2956 = vpop.f32.mrb[0].mxu0
  %2957 = vmatprep.mubr.f32.mxu0 0.0
  %2958 = vmatmul.mubr.f32.gmra.mrb[0].mxu0 %v2886
  %v2959 = vpop.f32.mrb[0].mxu0
  %v2960 = vadd.f32 %v2879, %v2959
  %v2961 = vpop.f32.mrb[0].mxu0
  %2962 = vdwg.mxu0
  %s2963 = scalar_lea.vmem %s14, 64
  %v2964 = vld [vmem:[%s2963] sm:$0xff]
  %v2965 = vld [vmem:[%s2963 + $0x8] sm:$0xff]
  %v2966 = vld [vmem:[%s2963 + $0x10] sm:$0xff]
  %v2967 = vld [vmem:[%s2963 + $0x18] sm:$0xff]
  %v2968 = vld [vmem:[%s2963 + $0x20] sm:$0xff]
  %v2969 = vld [vmem:[%s2963 + $0x28] sm:$0xff]
  %v2970 = vld [vmem:[%s2963 + $0x30] sm:$0xff]
  %v2971 = vld [vmem:[%s2963 + $0x38] sm:$0xff]
  %2972 = vmatprep.subr.mxu0 0.0
  %2973 = vmatpush1.msra.mxu0 %v2964
  %2974 = vmatprep.subr.mxu0 0.0
  %2975 = vmatpush1.msra.mxu0 %v2965
  %2976 = vmatprep.subr.mxu0 0.0
  %2977 = vmatpush1.msra.mxu0 %v2966
  %2978 = vmatprep.subr.mxu0 0.0
  %2979 = vmatpush1.msra.mxu0 %v2967
  %2980 = vmatprep.subr.mxu0 0.0
  %2981 = vmatpush1.msra.mxu0 %v2968
  %2982 = vmatprep.subr.mxu0 0.0
  %2983 = vmatpush1.msra.mxu0 %v2969
  %2984 = vmatprep.subr.mxu0 0.0
  %2985 = vmatpush1.msra.mxu0 %v2970
  %2986 = vmatprep.subr.mxu0 0.0
  %2987 = vmatpush1.msra.mxu0 %v2971
  %2988 = vmatprep.subr.mxu0 0.0
  %2989 = vmatpush1.msra.mxu0 0.0
  %2990 = vmatprep.subr.mxu0 0.0
  %2991 = vmatpush1.msra.mxu0 0.0
  %2992 = vmatprep.subr.mxu0 0.0
  %2993 = vmatpush1.msra.mxu0 0.0
  %2994 = vmatprep.subr.mxu0 0.0
  %2995 = vmatpush1.msra.mxu0 0.0
  %2996 = vmatprep.subr.mxu0 0.0
  %2997 = vmatpush1.msra.mxu0 0.0
  %2998 = vmatprep.subr.mxu0 0.0
  %2999 = vmatpush1.msra.mxu0 0.0
  %3000 = vmatprep.subr.mxu0 0.0
  %3001 = vmatpush1.msra.mxu0 0.0
  %3002 = vmatprep.subr.mxu0 0.0
  %3003 = vmatpush1.msra.mxu0 0.0
  %3004 = vmatprep.subr.mxu0 0.0
  %3005 = vmatpush1.msra.mxu0 0.0
  %3006 = vmatprep.subr.mxu0 0.0
  %3007 = vmatpush1.msra.mxu0 0.0
  %3008 = vmatprep.subr.mxu0 0.0
  %3009 = vmatpush1.msra.mxu0 0.0
  %3010 = vmatprep.subr.mxu0 0.0
  %3011 = vmatpush1.msra.mxu0 0.0
  %3012 = vmatprep.subr.mxu0 0.0
  %3013 = vmatpush1.msra.mxu0 0.0
  %3014 = vmatprep.subr.mxu0 0.0
  %3015 = vmatpush1.msra.mxu0 0.0
  %3016 = vmatprep.subr.mxu0 0.0
  %3017 = vmatpush1.msra.mxu0 0.0
  %3018 = vmatprep.subr.mxu0 0.0
  %3019 = vmatpush1.msra.mxu0 0.0
  %3020 = vmatprep.subr.mxu0 0.0
  %3021 = vmatpush1.msra.mxu0 0.0
  %3022 = vmatprep.subr.mxu0 0.0
  %3023 = vmatpush1.msra.mxu0 0.0
  %3024 = vmatprep.subr.mxu0 0.0
  %3025 = vmatpush1.msra.mxu0 0.0
  %3026 = vmatprep.subr.mxu0 0.0
  %3027 = vmatpush1.msra.mxu0 0.0
  %3028 = vmatprep.subr.mxu0 0.0
  %3029 = vmatpush1.msra.mxu0 0.0
  %3030 = vmatprep.subr.mxu0 0.0
  %3031 = vmatpush1.msra.mxu0 0.0
  %3032 = vmatprep.subr.mxu0 0.0
  %3033 = vmatpush1.msra.mxu0 0.0
  %3034 = vmatprep.subr.mxu0 0.0
  %3035 = vmatpush1.msra.mxu0 0.0
  %3036 = vmatprep.mubr.f32.mxu0 0.0
  %3037 = vmatmul.mubr.f32.gmra.mrb[0].mxu0 %v2883
  %v3038 = vpop.f32.mrb[0].mxu0
  %v3039 = vadd.f32 0.0, %v3038
  %v3040 = vpop.f32.mrb[0].mxu0
  %3041 = vmatprep.mubr.f32.mxu0 0.0
  %3042 = vmatmul.mubr.f32.gmra.mrb[0].mxu0 %v2886
  %v3043 = vpop.f32.mrb[0].mxu0
  %v3044 = vadd.f32 0.0, %v3043
  %v3045 = vpop.f32.mrb[0].mxu0
  %3046 = vdwg.mxu0
  %v3049 = vrot.slane %v3039, 4
  %v3050 = vrot.slane %v3044, 4
  %v3051 = vsel %vm2316, %v3049, %v3050
  %v3054 = vsel %vm2316, 0.0, %v3049
  %v3055 = vadd.f32 %v2955, %v3054
  %v3056 = vadd.f32 %v2960, %v3051
  %s3057 = scalar_lea.vmem %s14, 128
  %v3058 = vld [vmem:[%s3057] sm:$0xff]
  %v3059 = vld [vmem:[%s3057 + $0x8] sm:$0xff]
  %v3060 = vld [vmem:[%s3057 + $0x10] sm:$0xff]
  %v3061 = vld [vmem:[%s3057 + $0x18] sm:$0xff]
  %v3062 = vld [vmem:[%s3057 + $0x20] sm:$0xff]
  %v3063 = vld [vmem:[%s3057 + $0x28] sm:$0xff]
  %v3064 = vld [vmem:[%s3057 + $0x30] sm:$0xff]
  %v3065 = vld [vmem:[%s3057 + $0x38] sm:$0xff]
  %3066 = vmatprep.subr.mxu0 0.0
  %3067 = vmatpush1.msra.mxu0 %v3058
  %3068 = vmatprep.subr.mxu0 0.0
  %3069 = vmatpush1.msra.mxu0 %v3059
  %3070 = vmatprep.subr.mxu0 0.0
  %3071 = vmatpush1.msra.mxu0 %v3060
  %3072 = vmatprep.subr.mxu0 0.0
  %3073 = vmatpush1.msra.mxu0 %v3061
  %3074 = vmatprep.subr.mxu0 0.0
  %3075 = vmatpush1.msra.mxu0 %v3062
  %3076 = vmatprep.subr.mxu0 0.0
  %3077 = vmatpush1.msra.mxu0 %v3063
  %3078 = vmatprep.subr.mxu0 0.0
  %3079 = vmatpush1.msra.mxu0 %v3064
  %3080 = vmatprep.subr.mxu0 0.0
  %3081 = vmatpush1.msra.mxu0 %v3065
  %3082 = vmatprep.subr.mxu0 0.0
  %3083 = vmatpush1.msra.mxu0 0.0
  %3084 = vmatprep.subr.mxu0 0.0
  %3085 = vmatpush1.msra.mxu0 0.0
  %3086 = vmatprep.subr.mxu0 0.0
  %3087 = vmatpush1.msra.mxu0 0.0
  %3088 = vmatprep.subr.mxu0 0.0
  %3089 = vmatpush1.msra.mxu0 0.0
  %3090 = vmatprep.subr.mxu0 0.0
  %3091 = vmatpush1.msra.mxu0 0.0
  %3092 = vmatprep.subr.mxu0 0.0
  %3093 = vmatpush1.msra.mxu0 0.0
  %3094 = vmatprep.subr.mxu0 0.0
  %3095 = vmatpush1.msra.mxu0 0.0
  %3096 = vmatprep.subr.mxu0 0.0
  %3097 = vmatpush1.msra.mxu0 0.0
  %3098 = vmatprep.subr.mxu0 0.0
  %3099 = vmatpush1.msra.mxu0 0.0
  %3100 = vmatprep.subr.mxu0 0.0
  %3101 = vmatpush1.msra.mxu0 0.0
  %3102 = vmatprep.subr.mxu0 0.0
  %3103 = vmatpush1.msra.mxu0 0.0
  %3104 = vmatprep.subr.mxu0 0.0
  %3105 = vmatpush1.msra.mxu0 0.0
  %3106 = vmatprep.subr.mxu0 0.0
  %3107 = vmatpush1.msra.mxu0 0.0
  %3108 = vmatprep.subr.mxu0 0.0
  %3109 = vmatpush1.msra.mxu0 0.0
  %3110 = vmatprep.subr.mxu0 0.0
  %3111 = vmatpush1.msra.mxu0 0.0
  %3112 = vmatprep.subr.mxu0 0.0
  %3113 = vmatpush1.msra.mxu0 0.0
  %3114 = vmatprep.subr.mxu0 0.0
  %3115 = vmatpush1.msra.mxu0 0.0
  %3116 = vmatprep.subr.mxu0 0.0
  %3117 = vmatpush1.msra.mxu0 0.0
  %3118 = vmatprep.subr.mxu0 0.0
  %3119 = vmatpush1.msra.mxu0 0.0
  %3120 = vmatprep.subr.mxu0 0.0
  %3121 = vmatpush1.msra.mxu0 0.0
  %3122 = vmatprep.subr.mxu0 0.0
  %3123 = vmatpush1.msra.mxu0 0.0
  %3124 = vmatprep.subr.mxu0 0.0
  %3125 = vmatpush1.msra.mxu0 0.0
  %3126 = vmatprep.subr.mxu0 0.0
  %3127 = vmatpush1.msra.mxu0 0.0
  %3128 = vmatprep.subr.mxu0 0.0
  %3129 = vmatpush1.msra.mxu0 0.0
  %3130 = vmatprep.mubr.f32.mxu0 0.0
  %3131 = vmatmul.mubr.f32.gmra.mrb[0].mxu0 %v2883
  %v3132 = vpop.f32.mrb[0].mxu0
  %v3133 = vadd.f32 0.0, %v3132
  %v3134 = vpop.f32.mrb[0].mxu0
  %3135 = vdwg.mxu0
  %v3136 = vadd.f32 %v3055, 0.0
  %v3137 = vadd.f32 %v3056, %v3133
  %v3138 = vmax.f32 %v3136, 0.0
  %v3139 = vmax.f32 %v3137, 0.0
  %v3140 = vld [vmem:[%s16] sm:$0xff]
  %v3141 = vld [vmem:[%s16 + $0x8] sm:$0xff]
  %v3142 = vld [vmem:[%s16 + $0x10] sm:$0xff]
  %v3143 = vld [vmem:[%s16 + $0x18] sm:$0xff]
  %v3144 = vld [vmem:[%s17] sm:$0x1]
  %v3146 = vlaneseq
  %v3147 = vshrl.u32 %v3146, 7
  %v3148 = vsub.s32 0, %v3147
  %v3149 = vrot.slane %v3144, %v3148
  %3151 = vmatprep.subr.mxu0 0.0
  %3152 = vmatpush1.msra.mxu0 %v3140
  %3153 = vmatprep.subr.mxu0 0.0
  %3154 = vmatpush1.msra.mxu0 %v3141
  %3155 = vmatprep.subr.mxu0 0.0
  %3156 = vmatpush1.msra.mxu0 %v3142
  %3157 = vmatprep.subr.mxu0 0.0
  %3158 = vmatpush1.msra.mxu0 %v3143
  %3159 = vmatprep.subr.mxu0 0.0
  %3160 = vmatpush1.msra.mxu0 0.0
  %3161 = vmatprep.subr.mxu0 0.0
  %3162 = vmatpush1.msra.mxu0 0.0
  %3163 = vmatprep.subr.mxu0 0.0
  %3164 = vmatpush1.msra.mxu0 0.0
  %3165 = vmatprep.subr.mxu0 0.0
  %3166 = vmatpush1.msra.mxu0 0.0
  %3167 = vmatprep.subr.mxu0 0.0
  %3168 = vmatpush1.msra.mxu0 0.0
  %3169 = vmatprep.subr.mxu0 0.0
  %3170 = vmatpush1.msra.mxu0 0.0
  %3171 = vmatprep.subr.mxu0 0.0
  %3172 = vmatpush1.msra.mxu0 0.0
  %3173 = vmatprep.subr.mxu0 0.0
  %3174 = vmatpush1.msra.mxu0 0.0
  %3175 = vmatprep.subr.mxu0 0.0
  %3176 = vmatpush1.msra.mxu0 0.0
  %3177 = vmatprep.subr.mxu0 0.0
  %3178 = vmatpush1.msra.mxu0 0.0
  %3179 = vmatprep.subr.mxu0 0.0
  %3180 = vmatpush1.msra.mxu0 0.0
  %3181 = vmatprep.subr.mxu0 0.0
  %3182 = vmatpush1.msra.mxu0 0.0
  %3183 = vmatprep.subr.mxu0 0.0
  %3184 = vmatpush1.msra.mxu0 0.0
  %3185 = vmatprep.subr.mxu0 0.0
  %3186 = vmatpush1.msra.mxu0 0.0
  %3187 = vmatprep.subr.mxu0 0.0
  %3188 = vmatpush1.msra.mxu0 0.0
  %3189 = vmatprep.subr.mxu0 0.0
  %3190 = vmatpush1.msra.mxu0 0.0
  %3191 = vmatprep.subr.mxu0 0.0
  %3192 = vmatpush1.msra.mxu0 0.0
  %3193 = vmatprep.subr.mxu0 0.0
  %3194 = vmatpush1.msra.mxu0 0.0
  %3195 = vmatprep.subr.mxu0 0.0
  %3196 = vmatpush1.msra.mxu0 0.0
  %3197 = vmatprep.subr.mxu0 0.0
  %3198 = vmatpush1.msra.mxu0 0.0
  %3199 = vmatprep.subr.mxu0 0.0
  %3200 = vmatpush1.msra.mxu0 0.0
  %3201 = vmatprep.subr.mxu0 0.0
  %3202 = vmatpush1.msra.mxu0 0.0
  %3203 = vmatprep.subr.mxu0 0.0
  %3204 = vmatpush1.msra.mxu0 0.0
  %3205 = vmatprep.subr.mxu0 0.0
  %3206 = vmatpush1.msra.mxu0 0.0
  %3207 = vmatprep.subr.mxu0 0.0
  %3208 = vmatpush1.msra.mxu0 0.0
  %3209 = vmatprep.subr.mxu0 0.0
  %3210 = vmatpush1.msra.mxu0 0.0
  %3211 = vmatprep.subr.mxu0 0.0
  %3212 = vmatpush1.msra.mxu0 0.0
  %3213 = vmatprep.subr.mxu0 0.0
  %3214 = vmatpush1.msra.mxu0 0.0
  %3215 = vmatprep.mubr.f32.mxu0 0.0
  %3216 = vmatmul.mubr.f32.gmra.mrb[0].mxu0 %v2617
  %v3217 = vpop.f32.mrb[0].mxu0
  %v3218 = vadd.f32 %v3149, %v3217
  %v3219 = vpop.f32.mrb[0].mxu0
  %3220 = vmatprep.mubr.f32.mxu0 0.0
  %3221 = vmatmul.mubr.f32.gmra.mrb[0].mxu0 %v2620
  %v3222 = vpop.f32.mrb[0].mxu0
  %v3223 = vadd.f32 %v3149, %v3222
  %v3224 = vpop.f32.mrb[0].mxu0
  %3225 = vdwg.mxu0
  %v3226 = vadd.f32 %v3138, %v3218
  %v3227 = vadd.f32 %v3139, %v3223
  %v3228 = vmax.f32 %v3226, 0.0
  %v3229 = vmax.f32 %v3227, 0.0
  %3230 = vst.msk [vmem:[%s20] sm:$0xff] %vm2881, %v3228
  %3231 = vst.msk [vmem:[%s20 + $0x8] sm:$0xff] %vm2881, %v3229
  %3233 = vrot.lane.b32.xlu0 %v2029, 80
  %v3234 = vpop.permute.xlu0 %3233
  %v3236 = vsel %vm184, %v1921, %v3234
  %v3237 = vld [vmem:[%s18] sm:$0xff]
  %v3238 = vld [vmem:[%s18 + $0x8] sm:$0xff]
  %v3239 = vld [vmem:[%s18 + $0x10] sm:$0xff]
  %v3240 = vld [vmem:[%s18 + $0x18] sm:$0xff]
  %v3241 = vld [vmem:[%s19] sm:$0x1]
  %v3243 = vlaneseq
  %v3244 = vshrl.u32 %v3243, 7
  %v3245 = vsub.s32 0, %v3244
  %v3246 = vrot.slane %v3241, %v3245
  %v3249 = vsel %vm2061, %v3236, 0
  %3251 = vmatprep.subr.mxu0 0.0
  %3252 = vmatpush1.msra.mxu0 %v3237
  %3253 = vmatprep.subr.mxu0 0.0
  %3254 = vmatpush1.msra.mxu0 %v3238
  %3255 = vmatprep.subr.mxu0 0.0
  %3256 = vmatpush1.msra.mxu0 %v3239
  %3257 = vmatprep.subr.mxu0 0.0
  %3258 = vmatpush1.msra.mxu0 %v3240
  %3259 = vmatprep.subr.mxu0 0.0
  %3260 = vmatpush1.msra.mxu0 0.0
  %3261 = vmatprep.subr.mxu0 0.0
  %3262 = vmatpush1.msra.mxu0 0.0
  %3263 = vmatprep.subr.mxu0 0.0
  %3264 = vmatpush1.msra.mxu0 0.0
  %3265 = vmatprep.subr.mxu0 0.0
  %3266 = vmatpush1.msra.mxu0 0.0
  %3267 = vmatprep.subr.mxu0 0.0
  %3268 = vmatpush1.msra.mxu0 0.0
  %3269 = vmatprep.subr.mxu0 0.0
  %3270 = vmatpush1.msra.mxu0 0.0
  %3271 = vmatprep.subr.mxu0 0.0
  %3272 = vmatpush1.msra.mxu0 0.0
  %3273 = vmatprep.subr.mxu0 0.0
  %3274 = vmatpush1.msra.mxu0 0.0
  %3275 = vmatprep.subr.mxu0 0.0
  %3276 = vmatpush1.msra.mxu0 0.0
  %3277 = vmatprep.subr.mxu0 0.0
  %3278 = vmatpush1.msra.mxu0 0.0
  %3279 = vmatprep.subr.mxu0 0.0
  %3280 = vmatpush1.msra.mxu0 0.0
  %3281 = vmatprep.subr.mxu0 0.0
  %3282 = vmatpush1.msra.mxu0 0.0
  %3283 = vmatprep.subr.mxu0 0.0
  %3284 = vmatpush1.msra.mxu0 0.0
  %3285 = vmatprep.subr.mxu0 0.0
  %3286 = vmatpush1.msra.mxu0 0.0
  %3287 = vmatprep.subr.mxu0 0.0
  %3288 = vmatpush1.msra.mxu0 0.0
  %3289 = vmatprep.subr.mxu0 0.0
  %3290 = vmatpush1.msra.mxu0 0.0
  %3291 = vmatprep.subr.mxu0 0.0
  %3292 = vmatpush1.msra.mxu0 0.0
  %3293 = vmatprep.subr.mxu0 0.0
  %3294 = vmatpush1.msra.mxu0 0.0
  %3295 = vmatprep.subr.mxu0 0.0
  %3296 = vmatpush1.msra.mxu0 0.0
  %3297 = vmatprep.subr.mxu0 0.0
  %3298 = vmatpush1.msra.mxu0 0.0
  %3299 = vmatprep.subr.mxu0 0.0
  %3300 = vmatpush1.msra.mxu0 0.0
  %3301 = vmatprep.subr.mxu0 0.0
  %3302 = vmatpush1.msra.mxu0 0.0
  %3303 = vmatprep.subr.mxu0 0.0
  %3304 = vmatpush1.msra.mxu0 0.0
  %3305 = vmatprep.subr.mxu0 0.0
  %3306 = vmatpush1.msra.mxu0 0.0
  %3307 = vmatprep.subr.mxu0 0.0
  %3308 = vmatpush1.msra.mxu0 0.0
  %3309 = vmatprep.subr.mxu0 0.0
  %3310 = vmatpush1.msra.mxu0 0.0
  %3311 = vmatprep.subr.mxu0 0.0
  %3312 = vmatpush1.msra.mxu0 0.0
  %3313 = vmatprep.subr.mxu0 0.0
  %3314 = vmatpush1.msra.mxu0 0.0
  %3315 = vmatprep.mubr.f32.mxu0 0.0
  %3316 = vmatmul.mubr.f32.gmra.mrb[0].mxu0 %v3249
  %v3317 = vpop.f32.mrb[0].mxu0
  %v3318 = vadd.f32 %v3246, %v3317
  %v3319 = vpop.f32.mrb[0].mxu0
  %3320 = vdwg.mxu0
  %vm3321 = vcmp.ge.f32.partialorder %v3318, 0.0
  %v3322 = vmul.f32 %v3318, 0.01
  %v3323 = vsel %vm3321, %v3318, %v3322
  %vm3324 = vcmask 254976
  %3325 = vst.msk [vmem:[%s21] sm:$0x3] %vm3324, %v3323
  // Predicated region
  $region82: #{parallel_selector_forward.2} parent=0 // pred_check
    _
  $region83: #{parallel_selector_forward.2} parent=0 // pred_check_branch
    %3327 = sbr.rel (0) target = $region85
  $region84: #{parallel_selector_forward.2} parent=0 // pred_region
    _
  $region85: #{parallel_selector_forward.2} parent=0 // pred_fallthru
    _
  // Predicated region
  $region86: #{parallel_selector_forward.2} parent=0 // pred_check
    _
  $region87: #{parallel_selector_forward.2} parent=0 // pred_check_branch
    %3329 = sbr.rel (0) target = $region89
  $region88: #{parallel_selector_forward.2} parent=0 // pred_region
    _
  $region89: #{parallel_selector_forward.2} parent=0 // pred_fallthru
    _
  // Predicated region
  $region90: #{parallel_selector_forward.2} parent=0 // pred_check
    _
  $region91: #{parallel_selector_forward.2} parent=0 // pred_check_branch
    %3331 = sbr.rel (0) target = $region93
  $region92: #{parallel_selector_forward.2} parent=0 // pred_region
    _
  $region93: #{parallel_selector_forward.2} parent=0 // pred_fallthru
    _
  // Predicated region
  $region94: #{parallel_selector_forward.2} parent=0 // pred_check
    _
  $region95: #{parallel_selector_forward.2} parent=0 // pred_check_branch
    %3333 = sbr.rel (0) target = $region97
  $region96: #{parallel_selector_forward.2} parent=0 // pred_region
    _
  $region97: #{parallel_selector_forward.2} parent=0 // pred_fallthru
    _

</llo_original>
